<compile_context>
chip_gen: v7x
topology: tpu7x:2x2x1
jax: 0.10.0
libtpu: 0.0.40
codegen_flags: <defaults>
</compile_context>

<pallas_src>
import functools
import math

import jax
import jax.numpy as jnp
from jax import lax
from jax.experimental import pallas as pl
from jax.experimental.pallas import tpu as pltpu

# ---- model config (MambaConfig-equivalent, small & deterministic) -----------
D_MODEL = 32
N_LAYER = 2
VOCAB = 75
PAD_MULT = 8
VOCAB_PADDED = ((VOCAB + PAD_MULT - 1) // PAD_MULT) * PAD_MULT  # 80
D_STATE = 16
D_CONV = 4
EXPAND = 2
D_INNER = EXPAND * D_MODEL                # 64
DT_RANK = math.ceil(D_MODEL / 16)         # 2
EPS = 1e-5
EMB_PAD = 128                             # one-hot / embedding rows padded to 128
HEAD_PAD = 128                            # 80 logits | 1 time | 47 zero pad
XPROJ_PAD = 128                           # 64 delta | 16 B | 16 C | 32 zero pad


# ---- small helpers used inside the kernel ------------------------------------
def _softplus(x):
    # matches torch.nn.functional.softplus (beta=1, threshold=20); clamp the exp arg
    return jnp.where(x > 20.0, x, jnp.log1p(jnp.exp(jnp.minimum(x, 20.0))))


def _silu(x):
    return x * jax.nn.sigmoid(x)


def _rmsnorm(x, w):
    var = jnp.mean(x * x, axis=-1, keepdims=True)
    return x * jax.lax.rsqrt(var + EPS) * w


def _pick_tblk(seqlen, bb):
    """Largest divisor of seqlen with a (preferably 8-aligned) row block <= 64."""
    divs = [t for t in range(1, seqlen + 1) if seqlen % t == 0 and t * bb <= 64]
    aligned = [t for t in divs if (t * bb) % 8 == 0]
    return max(aligned) if aligned else max(divs)


# ---- fused forward kernel -----------------------------------------------------
def fused_forward_kernel(ids_ref, emb_ref, normw_ref, inw_ref, convw_ref,
                         convb_ref, wdbc_ref, dtb_ref, alogt_ref, dskip_ref,
                         outw_ref, normf_ref, headw_ref,
                         out_ref,
                         da_scr, dbu_scr, cb_scr, y_scr,
                         *, bb, seqlen, t_blk):
    Lb = seqlen * bb                       # rows in this batch block (L-major)

    # ---- embedding gather + tanh, fused as a one-hot MXU matmul -------------
    ids = ids_ref[...]                                          # (Lb, 1) int32
    lane = jax.lax.broadcasted_iota(jnp.int32, (Lb, EMB_PAD), 1)
    onehot = (lane == ids).astype(jnp.float32)                  # (Lb, 128)
    hid = jnp.tanh(jnp.dot(onehot, emb_ref[...],
                           preferred_element_type=jnp.float32))  # (Lb, D)
    res = jnp.zeros_like(hid)

    # row-index iota & per-tap causal masks for the depthwise conv (hoisted)
    ridx = jax.lax.broadcasted_iota(jnp.int32, (Lb, 1), 0)
    tap_masks = [ridx >= (s * bb) for s in range(1, D_CONV)]

    for l in range(N_LAYER):               # static; weights indexed statically
        # prenorm residual add + RMSNorm
        res = hid + res
        xn = _rmsnorm(res, normw_ref[l])                        # (Lb, D)

        # lane-dense in_proj: one (D, 128) matmul, static lane split of x / z
        xz = jnp.dot(xn, inw_ref[l], preferred_element_type=jnp.float32)
        x = xz[:, :D_INNER]                                     # (Lb, 64)
        z = xz[:, D_INNER:]                                     # (Lb, 64)

        # causal depthwise conv1d (groups = d_inner) via roll + boundary mask
        convw = convw_ref[l]                                    # (D_CONV, 64)
        xc = jnp.broadcast_to(convb_ref[l], (Lb, D_INNER))
        for k in range(D_CONV):
            s = D_CONV - 1 - k                                  # time shift of tap k
            if s == 0:
                tap = x
            else:
                tap = jnp.where(tap_masks[s - 1],
                                pltpu.roll(x, s * bb, 0), 0.0)
            xc = xc + tap * convw[k:k + 1, :]
        xc = _silu(xc)                                          # (Lb, 64)

        # lane-dense fused x_proj (+ pre-folded dt_proj): delta|B|C|pad, one dot
        proj = jnp.dot(xc, wdbc_ref[l], preferred_element_type=jnp.float32)
        delta = _softplus(proj[:, :D_INNER] + dtb_ref[l])       # (Lb, 64)
        bm = proj[:, D_INNER:D_INNER + D_STATE]                 # (Lb, 16)
        cm = proj[:, D_INNER + D_STATE:D_INNER + 2 * D_STATE]   # (Lb, 16)

        # ---- hoisted scan precompute (vectorized, OFF the serial path) ------
        a_t = -jnp.exp(alogt_ref[l])                            # (ds, di)
        da_scr[...] = jnp.exp(delta[:, None, :] * a_t[None, :, :])      # (Lb,ds,di)
        dbu_scr[...] = (delta * xc)[:, None, :] * bm[:, :, None]        # (Lb,ds,di)
        cb_scr[...] = jnp.broadcast_to(cm[:, :, None],
                                       (Lb, D_STATE, D_INNER))          # (Lb,ds,di)

        # ---- blocked + unrolled selective scan ------------------------------
        def scan_block(blk, h):
            base = blk * t_blk
            ys = []
            for j in range(t_blk):                              # static unroll
                r0 = (base + j) * bb
                a = da_scr[pl.ds(r0, bb), :, :]                 # (bb, ds, di)
                b = dbu_scr[pl.ds(r0, bb), :, :]
                c = cb_scr[pl.ds(r0, bb), :, :]
                h = a * h + b
                ys.append(jnp.sum(h * c, axis=1))               # (bb, di)
            y_blk = jnp.concatenate(ys, axis=0) if t_blk > 1 else ys[0]
            base_row = base * bb
            if (t_blk * bb) % 8 == 0:
                base_row = pl.multiple_of(base_row, 8)
            y_scr[pl.ds(base_row, t_blk * bb), :] = y_blk       # full-sublane store
            return h

        h0 = jnp.zeros((bb, D_STATE, D_INNER), jnp.float32)
        lax.fori_loop(0, seqlen // t_blk, scan_block, h0)

        # D skip + gating + out_proj
        y = (y_scr[...] + xc * dskip_ref[l]) * _silu(z)
        hid = jnp.dot(y, outw_ref[l], preferred_element_type=jnp.float32)

    # final add + RMSNorm + fused (type head | time head | pad) lane-dense matmul
    res = hid + res
    hn = _rmsnorm(res, normf_ref[...])                          # (Lb, D)
    out_ref[...] = jnp.dot(hn, headw_ref[...],
                           preferred_element_type=jnp.float32)  # (Lb, 128)


# ---- pallas_call wrapper ------------------------------------------------------
def _wspec(arr):
    nd = arr.ndim
    return pl.BlockSpec(arr.shape, lambda i, _nd=nd: (0,) * _nd)


def fused_forward(ids, fp, *, batch_blocks, seqlen):
    bb = 1                                 # samples per grid step (batch block)
    Lb = seqlen * bb
    t_blk = _pick_tblk(seqlen, bb)
    kernel = functools.partial(fused_forward_kernel, bb=bb, seqlen=seqlen,
                               t_blk=t_blk)
    weights = [fp['emb_pad'], fp['norm_w'], fp['in_w'], fp['conv_w'],
               fp['conv_b'], fp['w_dbc'], fp['dt_b'], fp['A_logT'], fp['D'],
               fp['out_w'], fp['norm_f'], fp['head_w']]
    return pl.pallas_call(
        kernel,
        out_shape=jax.ShapeDtypeStruct((batch_blocks, Lb, HEAD_PAD), jnp.float32),
        grid_spec=pltpu.PrefetchScalarGridSpec(
            num_scalar_prefetch=0,
            grid=(batch_blocks,),
            in_specs=[pl.BlockSpec((None, Lb, 1), lambda i: (i, 0, 0))]
                     + [_wspec(a) for a in weights],
            out_specs=pl.BlockSpec((None, Lb, HEAD_PAD), lambda i: (i, 0, 0)),
            scratch_shapes=[
                pltpu.VMEM((Lb, D_STATE, D_INNER), jnp.float32),   # dA
                pltpu.VMEM((Lb, D_STATE, D_INNER), jnp.float32),   # dBu
                pltpu.VMEM((Lb, D_STATE, D_INNER), jnp.float32),   # C (broadcast)
                pltpu.VMEM((Lb, D_INNER), jnp.float32),            # y
            ]),
        compiler_params=pltpu.CompilerParams(
            dimension_semantics=("parallel",),
            # headroom for the per-layer dA/dBu/C precompute when L scales up
            # (v5e default scoped limit is only 16 MiB).
            vmem_limit_bytes=32 * 1024 * 1024),
    )(ids, *weights)


# ---- deterministic parameter init (synthetic, mirrors module shapes) ---------
def init_params(key):
    keys = jax.random.split(key, 2 + N_LAYER)
    emb = 0.02 * jax.random.normal(keys[0], (VOCAB_PADDED, D_MODEL), jnp.float32)
    emb = emb.at[75].set(0.0)                              # padding_idx = 75
    time_w = 0.02 * jax.random.normal(keys[1], (1, D_MODEL), jnp.float32)
    norm_f = jnp.ones((1, D_MODEL), jnp.float32)
    layers = []
    scale = 0.1
    for i in range(N_LAYER):
        lk = jax.random.split(keys[2 + i], 7)
        layers.append({
            'norm_w': jnp.ones((1, D_MODEL), jnp.float32),
            'in_w': scale * jax.random.normal(lk[0], (D_MODEL, 2 * D_INNER), jnp.float32),
            'conv_w': scale * jax.random.normal(lk[1], (D_CONV, D_INNER), jnp.float32),
            'conv_b': scale * jax.random.normal(lk[2], (1, D_INNER), jnp.float32),
            'xproj_w': scale * jax.random.normal(lk[3], (D_INNER, DT_RANK + 2 * D_STATE), jnp.float32),
            'dt_w': scale * jax.random.normal(lk[4], (DT_RANK, D_INNER), jnp.float32),
            'dt_b': scale * jax.random.normal(lk[5], (1, D_INNER), jnp.float32),
            'A_log': jnp.log(jnp.broadcast_to(
                jnp.arange(1, D_STATE + 1, dtype=jnp.float32), (D_INNER, D_STATE))),
            'D': jnp.ones((1, D_INNER), jnp.float32),
            # out_proj rescaled by 1/sqrt(n_layer) as in _init_weights
            'out_w': (scale / math.sqrt(N_LAYER)) *
                     jax.random.normal(lk[6], (D_INNER, D_MODEL), jnp.float32),
        })
    return {'emb': emb, 'time_w': time_w, 'norm_f': norm_f, 'layers': layers}


def prepare_params(params):
    """Offline pre-folding: stack layers, fold dt_proj into x_proj, pad the
    embedding to 128 rows, and build lane-dense 128-wide fused weights."""
    L = params['layers']
    stk = lambda name: jnp.stack([l[name] for l in L], axis=0)
    emb = params['emb']                                            # (80, D)
    emb_pad = jnp.zeros((EMB_PAD, D_MODEL), jnp.float32).at[:VOCAB_PADDED].set(emb)
    head_w = jnp.concatenate(                                      # (D, 128)
        [emb.T,                                                    # tied type head
         params['time_w'].T,                                       # time head (no bias)
         jnp.zeros((D_MODEL, HEAD_PAD - VOCAB_PADDED - 1), jnp.float32)], axis=1)
    w_dbc = jnp.stack([                                            # (NL, Di, 128)
        jnp.concatenate([
            l['xproj_w'][:, :DT_RANK] @ l['dt_w'],                 # folded delta  (64)
            l['xproj_w'][:, DT_RANK:DT_RANK + 2 * D_STATE],        # B | C         (32)
            jnp.zeros((D_INNER, XPROJ_PAD - D_INNER - 2 * D_STATE), jnp.float32)],
            axis=1)
        for l in L], axis=0)
    return {
        'emb_pad': emb_pad,
        'head_w': head_w,
        'norm_f': params['norm_f'],
        'norm_w': stk('norm_w'),                                   # (NL,1,D)
        'in_w': stk('in_w'),                                       # (NL,D,128)
        'conv_w': stk('conv_w'),                                   # (NL,K,Di)
        'conv_b': stk('conv_b'),                                   # (NL,1,Di)
        'w_dbc': w_dbc,                                            # (NL,Di,128)
        'dt_b': stk('dt_b'),                                       # (NL,1,Di)
        'A_logT': jnp.stack([l['A_log'].T for l in L], axis=0),    # (NL,Ns,Di)
        'D': stk('D'),                                             # (NL,1,Di)
        'out_w': stk('out_w'),                                     # (NL,Di,D)
    }


# ---- full forward (MambaTPPModel.forward) ------------------------------------
def mamba_tpp_forward(fp, type_seq, time_seq, num_last_tokens=0):
    del time_seq  # unused by the reference forward math
    B, L = type_seq.shape
    ids = type_seq.astype(jnp.int32)[:, :, None]                  # (B, L, 1)
    out = fused_forward(ids, fp, batch_blocks=B, seqlen=L)        # (B, L, 128)
    # NOTE: returns all 80 padded logit columns, matching the padded-vocab head.
    type_logits = out[..., :VOCAB_PADDED]                         # (B, L, 80)
    time_pred = out[..., VOCAB_PADDED:VOCAB_PADDED + 1]           # (B, L, 1)
    if num_last_tokens > 0:
        type_logits = type_logits[:, -num_last_tokens:]
        time_pred = time_pred[:, -num_last_tokens:]
    return type_logits, time_pred


if __name__ == "__main__":
    key = jax.random.PRNGKey(0)
    pkey, dkey, tkey = jax.random.split(key, 3)
    params = prepare_params(init_params(pkey))

    B, L = 2, 8
    type_seq = jax.random.randint(dkey, (B, L), 0, VOCAB, dtype=jnp.int32)
    time_seq = jax.random.uniform(tkey, (B, L), dtype=jnp.float32)

    fwd = jax.jit(functools.partial(mamba_tpp_forward, num_last_tokens=0))
    type_logits, time_pred = fwd(params, type_seq, time_seq)
    jax.block_until_ready((type_logits, time_pred))

    assert type_logits.shape == (B, L, VOCAB_PADDED)
    assert time_pred.shape == (B, L, 1)
    assert bool(jnp.all(jnp.isfinite(type_logits)))
    assert bool(jnp.all(jnp.isfinite(time_pred)))
    print("KERNEL_OK")
</pallas_src>

<mosaic_0001>
module attributes {stable_mosaic.version = 11 : i64} {
  func.func @fused_forward_kernel(%arg0: i32, %arg1: memref<1x8x1xi32, #tpu.memory_space<vmem>>, %arg2: memref<128x32xf32, #tpu.memory_space<vmem>>, %arg3: memref<2x1x32xf32, #tpu.memory_space<vmem>>, %arg4: memref<2x32x128xf32, #tpu.memory_space<vmem>>, %arg5: memref<2x4x64xf32, #tpu.memory_space<vmem>>, %arg6: memref<2x1x64xf32, #tpu.memory_space<vmem>>, %arg7: memref<2x64x128xf32, #tpu.memory_space<vmem>>, %arg8: memref<2x1x64xf32, #tpu.memory_space<vmem>>, %arg9: memref<2x16x64xf32, #tpu.memory_space<vmem>>, %arg10: memref<2x1x64xf32, #tpu.memory_space<vmem>>, %arg11: memref<2x64x32xf32, #tpu.memory_space<vmem>>, %arg12: memref<1x32xf32, #tpu.memory_space<vmem>>, %arg13: memref<32x128xf32, #tpu.memory_space<vmem>>, %arg14: memref<1x8x128xf32, #tpu.memory_space<vmem>>, %arg15: memref<8x16x64xf32, #tpu.memory_space<vmem>>, %arg16: memref<8x16x64xf32, #tpu.memory_space<vmem>>, %arg17: memref<8x16x64xf32, #tpu.memory_space<vmem>>, %arg18: memref<8x64xf32, #tpu.memory_space<vmem>>) attributes {dimension_semantics = [#tpu.dimension_semantics<parallel>], iteration_bounds = array<i64: 2>, scalar_prefetch = 0 : i64, scratch_operands = 4 : i64, tpu.core_type = #tpu.core_type<tc>, window_params = [{transform_indices = @transform_0, window_bounds = array<i64: 1, 8, 1>}, {pipeline_mode = #tpu.pipeline_mode<synchronous>, transform_indices = @transform_1, window_bounds = array<i64: 128, 32>}, {pipeline_mode = #tpu.pipeline_mode<synchronous>, transform_indices = @transform_2, window_bounds = array<i64: 2, 1, 32>}, {pipeline_mode = #tpu.pipeline_mode<synchronous>, transform_indices = @transform_3, window_bounds = array<i64: 2, 32, 128>}, {pipeline_mode = #tpu.pipeline_mode<synchronous>, transform_indices = @transform_4, window_bounds = array<i64: 2, 4, 64>}, {pipeline_mode = #tpu.pipeline_mode<synchronous>, transform_indices = @transform_5, window_bounds = array<i64: 2, 1, 64>}, {pipeline_mode = #tpu.pipeline_mode<synchronous>, transform_indices = @transform_6, window_bounds = array<i64: 2, 64, 128>}, {pipeline_mode = #tpu.pipeline_mode<synchronous>, transform_indices = @transform_7, window_bounds = array<i64: 2, 1, 64>}, {pipeline_mode = #tpu.pipeline_mode<synchronous>, transform_indices = @transform_8, window_bounds = array<i64: 2, 16, 64>}, {pipeline_mode = #tpu.pipeline_mode<synchronous>, transform_indices = @transform_9, window_bounds = array<i64: 2, 1, 64>}, {pipeline_mode = #tpu.pipeline_mode<synchronous>, transform_indices = @transform_10, window_bounds = array<i64: 2, 64, 32>}, {pipeline_mode = #tpu.pipeline_mode<synchronous>, transform_indices = @transform_11, window_bounds = array<i64: 1, 32>}, {pipeline_mode = #tpu.pipeline_mode<synchronous>, transform_indices = @transform_12, window_bounds = array<i64: 32, 128>}, {transform_indices = @transform_13, window_bounds = array<i64: 1, 8, 128>}]} {
    %c0 = arith.constant 0 : index
    %c0_0 = arith.constant 0 : index
    %c0_1 = arith.constant 0 : index
    %0 = vector.load %arg1[%c0, %c0_0, %c0_1] : memref<1x8x1xi32, #tpu.memory_space<vmem>>, vector<1x8x1xi32>
    %1 = vector.shape_cast %0 : vector<1x8x1xi32> to vector<8x1xi32>
    %2 = tpu.iota {dimensions = array<i32: 1>} : vector<8x128xi32>
    %3 = vector.broadcast %1 : vector<8x1xi32> to vector<8x128xi32>
    %4 = arith.cmpi eq, %2, %3 : vector<8x128xi32>
    %5 = arith.extui %4 : vector<8x128xi1> to vector<8x128xi32>
    %6 = arith.sitofp %5 : vector<8x128xi32> to vector<8x128xf32>
    %c0_2 = arith.constant 0 : index
    %c0_3 = arith.constant 0 : index
    %7 = vector.load %arg2[%c0_2, %c0_3] : memref<128x32xf32, #tpu.memory_space<vmem>>, vector<128x32xf32>
    %cst = arith.constant dense<0.000000e+00> : vector<8x32xf32>
    %8 = tpu.matmul %6, %7, %cst {dimension_numbers = #tpu.dot_dimension_numbers<[1], [0], [0], [1], [0, 0, 1, 1], [], []>} : vector<8x128xf32>, vector<128x32xf32>, vector<8x32xf32> -> vector<8x32xf32>
    %9 = math.tanh %8 : vector<8x32xf32>
    %cst_4 = arith.constant 0.000000e+00 : f32
    %10 = vector.broadcast %cst_4 : f32 to vector<8x32xf32>
    %11 = tpu.iota {dimensions = array<i32: 0>} : vector<8x1xi32>
    %c1_i32 = arith.constant 1 : i32
    %12 = vector.broadcast %c1_i32 : i32 to vector<8x1xi32>
    %13 = arith.cmpi sge, %11, %12 : vector<8x1xi32>
    %c2_i32 = arith.constant 2 : i32
    %14 = vector.broadcast %c2_i32 : i32 to vector<8x1xi32>
    %15 = arith.cmpi sge, %11, %14 : vector<8x1xi32>
    %c3_i32 = arith.constant 3 : i32
    %16 = vector.broadcast %c3_i32 : i32 to vector<8x1xi32>
    %17 = arith.cmpi sge, %11, %16 : vector<8x1xi32>
    %18 = arith.addf %9, %10 : vector<8x32xf32>
    %c0_5 = arith.constant 0 : index
    %c0_6 = arith.constant 0 : index
    %c0_7 = arith.constant 0 : index
    %19 = vector.load %arg3[%c0_5, %c0_6, %c0_7] : memref<2x1x32xf32, #tpu.memory_space<vmem>>, vector<1x1x32xf32>
    %20 = vector.shape_cast %19 : vector<1x1x32xf32> to vector<1x32xf32>
    %21 = arith.mulf %18, %18 : vector<8x32xf32>
    %cst_8 = arith.constant dense<0.000000e+00> : vector<8xf32>
    %22 = vector.multi_reduction <add>, %21, %cst_8 [1] : vector<8x32xf32> to vector<8xf32>
    %23 = vector.shape_cast %22 : vector<8xf32> to vector<8x1xf32>
    %cst_9 = arith.constant 3.200000e+01 : f32
    %24 = vector.broadcast %cst_9 : f32 to vector<8x1xf32>
    %25 = arith.divf %23, %24 : vector<8x1xf32>
    %cst_10 = arith.constant 9.99999974E-6 : f32
    %26 = vector.broadcast %cst_10 : f32 to vector<8x1xf32>
    %27 = arith.addf %25, %26 : vector<8x1xf32>
    %28 = math.rsqrt %27 : vector<8x1xf32>
    %29 = vector.broadcast %28 : vector<8x1xf32> to vector<8x32xf32>
    %30 = arith.mulf %18, %29 : vector<8x32xf32>
    %31 = vector.broadcast %20 : vector<1x32xf32> to vector<8x32xf32>
    %32 = arith.mulf %30, %31 : vector<8x32xf32>
    %c0_11 = arith.constant 0 : index
    %c0_12 = arith.constant 0 : index
    %c0_13 = arith.constant 0 : index
    %33 = vector.load %arg4[%c0_11, %c0_12, %c0_13] : memref<2x32x128xf32, #tpu.memory_space<vmem>>, vector<1x32x128xf32>
    %34 = vector.shape_cast %33 : vector<1x32x128xf32> to vector<32x128xf32>
    %cst_14 = arith.constant dense<0.000000e+00> : vector<8x128xf32>
    %35 = tpu.matmul %32, %34, %cst_14 {dimension_numbers = #tpu.dot_dimension_numbers<[1], [0], [0], [1], [0, 0, 1, 1], [], []>} : vector<8x32xf32>, vector<32x128xf32>, vector<8x128xf32> -> vector<8x128xf32>
    %36 = vector.extract_strided_slice %35 {offsets = [0, 0], sizes = [8, 64], strides = [1, 1]} : vector<8x128xf32> to vector<8x64xf32>
    %37 = vector.extract_strided_slice %35 {offsets = [0, 64], sizes = [8, 64], strides = [1, 1]} : vector<8x128xf32> to vector<8x64xf32>
    %c0_15 = arith.constant 0 : index
    %c0_16 = arith.constant 0 : index
    %c0_17 = arith.constant 0 : index
    %38 = vector.load %arg5[%c0_15, %c0_16, %c0_17] : memref<2x4x64xf32, #tpu.memory_space<vmem>>, vector<1x4x64xf32>
    %39 = vector.shape_cast %38 : vector<1x4x64xf32> to vector<4x64xf32>
    %c0_18 = arith.constant 0 : index
    %c0_19 = arith.constant 0 : index
    %c0_20 = arith.constant 0 : index
    %40 = vector.load %arg6[%c0_18, %c0_19, %c0_20] : memref<2x1x64xf32, #tpu.memory_space<vmem>>, vector<1x1x64xf32>
    %41 = vector.shape_cast %40 : vector<1x1x64xf32> to vector<1x64xf32>
    %42 = vector.shape_cast %41 : vector<1x64xf32> to vector<1x64xf32>
    %43 = vector.broadcast %42 : vector<1x64xf32> to vector<8x64xf32>
    %c3_i32_21 = arith.constant 3 : i32
    %44 = tpu.dynamic_rotate %36 by %c3_i32_21 dim 0 : vector<8x64xf32>, i32 -> vector<8x64xf32>
    %cst_22 = arith.constant 0.000000e+00 : f32
    %45 = vector.shape_cast %17 : vector<8x1xi1> to vector<8x1xi1>
    %46 = vector.broadcast %45 : vector<8x1xi1> to vector<8x64xi1>
    %47 = vector.broadcast %cst_22 : f32 to vector<8x64xf32>
    %48 = arith.select %46, %44, %47 : vector<8x64xi1>, vector<8x64xf32>
    %49 = vector.extract_strided_slice %39 {offsets = [0, 0], sizes = [1, 64], strides = [1, 1]} : vector<4x64xf32> to vector<1x64xf32>
    %50 = vector.broadcast %49 : vector<1x64xf32> to vector<8x64xf32>
    %51 = arith.mulf %48, %50 : vector<8x64xf32>
    %52 = arith.addf %43, %51 : vector<8x64xf32>
    %c2_i32_23 = arith.constant 2 : i32
    %53 = tpu.dynamic_rotate %36 by %c2_i32_23 dim 0 : vector<8x64xf32>, i32 -> vector<8x64xf32>
    %cst_24 = arith.constant 0.000000e+00 : f32
    %54 = vector.shape_cast %15 : vector<8x1xi1> to vector<8x1xi1>
    %55 = vector.broadcast %54 : vector<8x1xi1> to vector<8x64xi1>
    %56 = vector.broadcast %cst_24 : f32 to vector<8x64xf32>
    %57 = arith.select %55, %53, %56 : vector<8x64xi1>, vector<8x64xf32>
    %58 = vector.extract_strided_slice %39 {offsets = [1, 0], sizes = [1, 64], strides = [1, 1]} : vector<4x64xf32> to vector<1x64xf32>
    %59 = vector.broadcast %58 : vector<1x64xf32> to vector<8x64xf32>
    %60 = arith.mulf %57, %59 : vector<8x64xf32>
    %61 = arith.addf %52, %60 : vector<8x64xf32>
    %c1_i32_25 = arith.constant 1 : i32
    %62 = tpu.dynamic_rotate %36 by %c1_i32_25 dim 0 : vector<8x64xf32>, i32 -> vector<8x64xf32>
    %cst_26 = arith.constant 0.000000e+00 : f32
    %63 = vector.shape_cast %13 : vector<8x1xi1> to vector<8x1xi1>
    %64 = vector.broadcast %63 : vector<8x1xi1> to vector<8x64xi1>
    %65 = vector.broadcast %cst_26 : f32 to vector<8x64xf32>
    %66 = arith.select %64, %62, %65 : vector<8x64xi1>, vector<8x64xf32>
    %67 = vector.extract_strided_slice %39 {offsets = [2, 0], sizes = [1, 64], strides = [1, 1]} : vector<4x64xf32> to vector<1x64xf32>
    %68 = vector.broadcast %67 : vector<1x64xf32> to vector<8x64xf32>
    %69 = arith.mulf %66, %68 : vector<8x64xf32>
    %70 = arith.addf %61, %69 : vector<8x64xf32>
    %71 = vector.extract_strided_slice %39 {offsets = [3, 0], sizes = [1, 64], strides = [1, 1]} : vector<4x64xf32> to vector<1x64xf32>
    %72 = vector.broadcast %71 : vector<1x64xf32> to vector<8x64xf32>
    %73 = arith.mulf %36, %72 : vector<8x64xf32>
    %74 = arith.addf %70, %73 : vector<8x64xf32>
    %75 = arith.negf %74 : vector<8x64xf32>
    %76 = math.exp %75 : vector<8x64xf32>
    %cst_27 = arith.constant 1.000000e+00 : f32
    %77 = vector.broadcast %cst_27 : f32 to vector<8x64xf32>
    %78 = arith.addf %77, %76 : vector<8x64xf32>
    %79 = arith.divf %77, %78 : vector<8x64xf32>
    %80 = arith.mulf %74, %79 : vector<8x64xf32>
    %c0_28 = arith.constant 0 : index
    %c0_29 = arith.constant 0 : index
    %c0_30 = arith.constant 0 : index
    %81 = vector.load %arg7[%c0_28, %c0_29, %c0_30] : memref<2x64x128xf32, #tpu.memory_space<vmem>>, vector<1x64x128xf32>
    %82 = vector.shape_cast %81 : vector<1x64x128xf32> to vector<64x128xf32>
    %cst_31 = arith.constant dense<0.000000e+00> : vector<8x128xf32>
    %83 = tpu.matmul %80, %82, %cst_31 {dimension_numbers = #tpu.dot_dimension_numbers<[1], [0], [0], [1], [0, 0, 1, 1], [], []>} : vector<8x64xf32>, vector<64x128xf32>, vector<8x128xf32> -> vector<8x128xf32>
    %84 = vector.extract_strided_slice %83 {offsets = [0, 0], sizes = [8, 64], strides = [1, 1]} : vector<8x128xf32> to vector<8x64xf32>
    %c0_32 = arith.constant 0 : index
    %c0_33 = arith.constant 0 : index
    %c0_34 = arith.constant 0 : index
    %85 = vector.load %arg8[%c0_32, %c0_33, %c0_34] : memref<2x1x64xf32, #tpu.memory_space<vmem>>, vector<1x1x64xf32>
    %86 = vector.shape_cast %85 : vector<1x1x64xf32> to vector<1x64xf32>
    %87 = vector.broadcast %86 : vector<1x64xf32> to vector<8x64xf32>
    %88 = arith.addf %84, %87 : vector<8x64xf32>
    %cst_35 = arith.constant 2.000000e+01 : f32
    %89 = vector.broadcast %cst_35 : f32 to vector<8x64xf32>
    %90 = arith.cmpf ogt, %88, %89 : vector<8x64xf32>
    %cst_36 = arith.constant 2.000000e+01 : f32
    %91 = vector.broadcast %cst_36 : f32 to vector<8x64xf32>
    %92 = arith.minimumf %88, %91 : vector<8x64xf32>
    %93 = math.exp %92 : vector<8x64xf32>
    %94 = math.log1p %93 : vector<8x64xf32>
    %95 = arith.select %90, %88, %94 : vector<8x64xi1>, vector<8x64xf32>
    %96 = vector.extract_strided_slice %83 {offsets = [0, 64], sizes = [8, 16], strides = [1, 1]} : vector<8x128xf32> to vector<8x16xf32>
    %97 = vector.extract_strided_slice %83 {offsets = [0, 80], sizes = [8, 16], strides = [1, 1]} : vector<8x128xf32> to vector<8x16xf32>
    %c0_37 = arith.constant 0 : index
    %c0_38 = arith.constant 0 : index
    %c0_39 = arith.constant 0 : index
    %98 = vector.load %arg9[%c0_37, %c0_38, %c0_39] : memref<2x16x64xf32, #tpu.memory_space<vmem>>, vector<1x16x64xf32>
    %99 = vector.shape_cast %98 : vector<1x16x64xf32> to vector<16x64xf32>
    %100 = math.exp %99 : vector<16x64xf32>
    %cst_40 = arith.constant 0.000000e+00 : f32
    %101 = vector.broadcast %cst_40 : f32 to vector<16x64xf32>
    %102 = arith.subf %101, %100 : vector<16x64xf32>
    %103 = vector.shape_cast %95 : vector<8x64xf32> to vector<8x1x64xf32>
    %104 = vector.shape_cast %102 : vector<16x64xf32> to vector<1x16x64xf32>
    %105 = vector.broadcast %103 : vector<8x1x64xf32> to vector<8x16x64xf32>
    %106 = vector.broadcast %104 : vector<1x16x64xf32> to vector<8x16x64xf32>
    %107 = arith.mulf %105, %106 : vector<8x16x64xf32>
    %108 = math.exp %107 : vector<8x16x64xf32>
    %c0_41 = arith.constant 0 : index
    %c0_42 = arith.constant 0 : index
    %c0_43 = arith.constant 0 : index
    %109 = vector.load %arg15[%c0_41, %c0_42, %c0_43] : memref<8x16x64xf32, #tpu.memory_space<vmem>>, vector<8x16x64xf32>
    tpu.vector_store %arg15[%c0_41, %c0_42, %c0_43], %108 {strides = array<i32>} : memref<8x16x64xf32, #tpu.memory_space<vmem>>, vector<8x16x64xf32>,
    %110 = arith.mulf %95, %80 : vector<8x64xf32>
    %111 = vector.shape_cast %110 : vector<8x64xf32> to vector<8x1x64xf32>
    %112 = vector.shape_cast %96 : vector<8x16xf32> to vector<8x16x1xf32>
    %113 = vector.broadcast %111 : vector<8x1x64xf32> to vector<8x16x64xf32>
    %114 = vector.broadcast %112 : vector<8x16x1xf32> to vector<8x16x64xf32>
    %115 = arith.mulf %113, %114 : vector<8x16x64xf32>
    %c0_44 = arith.constant 0 : index
    %c0_45 = arith.constant 0 : index
    %c0_46 = arith.constant 0 : index
    %116 = vector.load %arg16[%c0_44, %c0_45, %c0_46] : memref<8x16x64xf32, #tpu.memory_space<vmem>>, vector<8x16x64xf32>
    tpu.vector_store %arg16[%c0_44, %c0_45, %c0_46], %115 {strides = array<i32>} : memref<8x16x64xf32, #tpu.memory_space<vmem>>, vector<8x16x64xf32>,
    %117 = vector.shape_cast %97 : vector<8x16xf32> to vector<8x16x1xf32>
    %118 = vector.shape_cast %117 : vector<8x16x1xf32> to vector<8x16x1xf32>
    %119 = vector.broadcast %118 : vector<8x16x1xf32> to vector<8x16x64xf32>
    %c0_47 = arith.constant 0 : index
    %c0_48 = arith.constant 0 : index
    %c0_49 = arith.constant 0 : index
    %120 = vector.load %arg17[%c0_47, %c0_48, %c0_49] : memref<8x16x64xf32, #tpu.memory_space<vmem>>, vector<8x16x64xf32>
    tpu.vector_store %arg17[%c0_47, %c0_48, %c0_49], %119 {strides = array<i32>} : memref<8x16x64xf32, #tpu.memory_space<vmem>>, vector<8x16x64xf32>,
    %cst_50 = arith.constant 0.000000e+00 : f32
    %121 = vector.broadcast %cst_50 : f32 to vector<1x16x64xf32>
    %c0_i32 = arith.constant 0 : i32
    %c8_i32 = arith.constant 8 : i32
    %122 = arith.muli %c0_i32, %c8_i32 : i32
    %c0_i32_51 = arith.constant 0 : i32
    %123 = arith.addi %122, %c0_i32_51 : i32
    %c1_i32_52 = arith.constant 1 : i32
    %124 = arith.muli %123, %c1_i32_52 : i32
    %125 = arith.index_cast %124 : i32 to index
    %c0_53 = arith.constant 0 : index
    %c0_54 = arith.constant 0 : index
    %126 = vector.load %arg15[%125, %c0_53, %c0_54] : memref<8x16x64xf32, #tpu.memory_space<vmem>>, vector<1x16x64xf32>
    %127 = arith.index_cast %124 : i32 to index
    %c0_55 = arith.constant 0 : index
    %c0_56 = arith.constant 0 : index
    %128 = vector.load %arg16[%127, %c0_55, %c0_56] : memref<8x16x64xf32, #tpu.memory_space<vmem>>, vector<1x16x64xf32>
    %129 = arith.index_cast %124 : i32 to index
    %c0_57 = arith.constant 0 : index
    %c0_58 = arith.constant 0 : index
    %130 = vector.load %arg17[%129, %c0_57, %c0_58] : memref<8x16x64xf32, #tpu.memory_space<vmem>>, vector<1x16x64xf32>
    %131 = arith.mulf %126, %121 : vector<1x16x64xf32>
    %132 = arith.addf %131, %128 : vector<1x16x64xf32>
    %133 = arith.mulf %132, %130 : vector<1x16x64xf32>
    %cst_59 = arith.constant dense<0.000000e+00> : vector<1x64xf32>
    %134 = vector.multi_reduction <add>, %133, %cst_59 [1] : vector<1x16x64xf32> to vector<1x64xf32>
    %c1_i32_60 = arith.constant 1 : i32
    %135 = arith.addi %122, %c1_i32_60 : i32
    %c1_i32_61 = arith.constant 1 : i32
    %136 = arith.muli %135, %c1_i32_61 : i32
    %137 = arith.index_cast %136 : i32 to index
    %c0_62 = arith.constant 0 : index
    %c0_63 = arith.constant 0 : index
    %138 = vector.load %arg15[%137, %c0_62, %c0_63] : memref<8x16x64xf32, #tpu.memory_space<vmem>>, vector<1x16x64xf32>
    %139 = arith.index_cast %136 : i32 to index
    %c0_64 = arith.constant 0 : index
    %c0_65 = arith.constant 0 : index
    %140 = vector.load %arg16[%139, %c0_64, %c0_65] : memref<8x16x64xf32, #tpu.memory_space<vmem>>, vector<1x16x64xf32>
    %141 = arith.index_cast %136 : i32 to index
    %c0_66 = arith.constant 0 : index
    %c0_67 = arith.constant 0 : index
    %142 = vector.load %arg17[%141, %c0_66, %c0_67] : memref<8x16x64xf32, #tpu.memory_space<vmem>>, vector<1x16x64xf32>
    %143 = arith.mulf %138, %132 : vector<1x16x64xf32>
    %144 = arith.addf %143, %140 : vector<1x16x64xf32>
    %145 = arith.mulf %144, %142 : vector<1x16x64xf32>
    %cst_68 = arith.constant dense<0.000000e+00> : vector<1x64xf32>
    %146 = vector.multi_reduction <add>, %145, %cst_68 [1] : vector<1x16x64xf32> to vector<1x64xf32>
    %c2_i32_69 = arith.constant 2 : i32
    %147 = arith.addi %122, %c2_i32_69 : i32
    %c1_i32_70 = arith.constant 1 : i32
    %148 = arith.muli %147, %c1_i32_70 : i32
    %149 = arith.index_cast %148 : i32 to index
    %c0_71 = arith.constant 0 : index
    %c0_72 = arith.constant 0 : index
    %150 = vector.load %arg15[%149, %c0_71, %c0_72] : memref<8x16x64xf32, #tpu.memory_space<vmem>>, vector<1x16x64xf32>
    %151 = arith.index_cast %148 : i32 to index
    %c0_73 = arith.constant 0 : index
    %c0_74 = arith.constant 0 : index
    %152 = vector.load %arg16[%151, %c0_73, %c0_74] : memref<8x16x64xf32, #tpu.memory_space<vmem>>, vector<1x16x64xf32>
    %153 = arith.index_cast %148 : i32 to index
    %c0_75 = arith.constant 0 : index
    %c0_76 = arith.constant 0 : index
    %154 = vector.load %arg17[%153, %c0_75, %c0_76] : memref<8x16x64xf32, #tpu.memory_space<vmem>>, vector<1x16x64xf32>
    %155 = arith.mulf %150, %144 : vector<1x16x64xf32>
    %156 = arith.addf %155, %152 : vector<1x16x64xf32>
    %157 = arith.mulf %156, %154 : vector<1x16x64xf32>
    %cst_77 = arith.constant dense<0.000000e+00> : vector<1x64xf32>
    %158 = vector.multi_reduction <add>, %157, %cst_77 [1] : vector<1x16x64xf32> to vector<1x64xf32>
    %c3_i32_78 = arith.constant 3 : i32
    %159 = arith.addi %122, %c3_i32_78 : i32
    %c1_i32_79 = arith.constant 1 : i32
    %160 = arith.muli %159, %c1_i32_79 : i32
    %161 = arith.index_cast %160 : i32 to index
    %c0_80 = arith.constant 0 : index
    %c0_81 = arith.constant 0 : index
    %162 = vector.load %arg15[%161, %c0_80, %c0_81] : memref<8x16x64xf32, #tpu.memory_space<vmem>>, vector<1x16x64xf32>
    %163 = arith.index_cast %160 : i32 to index
    %c0_82 = arith.constant 0 : index
    %c0_83 = arith.constant 0 : index
    %164 = vector.load %arg16[%163, %c0_82, %c0_83] : memref<8x16x64xf32, #tpu.memory_space<vmem>>, vector<1x16x64xf32>
    %165 = arith.index_cast %160 : i32 to index
    %c0_84 = arith.constant 0 : index
    %c0_85 = arith.constant 0 : index
    %166 = vector.load %arg17[%165, %c0_84, %c0_85] : memref<8x16x64xf32, #tpu.memory_space<vmem>>, vector<1x16x64xf32>
    %167 = arith.mulf %162, %156 : vector<1x16x64xf32>
    %168 = arith.addf %167, %164 : vector<1x16x64xf32>
    %169 = arith.mulf %168, %166 : vector<1x16x64xf32>
    %cst_86 = arith.constant dense<0.000000e+00> : vector<1x64xf32>
    %170 = vector.multi_reduction <add>, %169, %cst_86 [1] : vector<1x16x64xf32> to vector<1x64xf32>
    %c4_i32 = arith.constant 4 : i32
    %171 = arith.addi %122, %c4_i32 : i32
    %c1_i32_87 = arith.constant 1 : i32
    %172 = arith.muli %171, %c1_i32_87 : i32
    %173 = arith.index_cast %172 : i32 to index
    %c0_88 = arith.constant 0 : index
    %c0_89 = arith.constant 0 : index
    %174 = vector.load %arg15[%173, %c0_88, %c0_89] : memref<8x16x64xf32, #tpu.memory_space<vmem>>, vector<1x16x64xf32>
    %175 = arith.index_cast %172 : i32 to index
    %c0_90 = arith.constant 0 : index
    %c0_91 = arith.constant 0 : index
    %176 = vector.load %arg16[%175, %c0_90, %c0_91] : memref<8x16x64xf32, #tpu.memory_space<vmem>>, vector<1x16x64xf32>
    %177 = arith.index_cast %172 : i32 to index
    %c0_92 = arith.constant 0 : index
    %c0_93 = arith.constant 0 : index
    %178 = vector.load %arg17[%177, %c0_92, %c0_93] : memref<8x16x64xf32, #tpu.memory_space<vmem>>, vector<1x16x64xf32>
    %179 = arith.mulf %174, %168 : vector<1x16x64xf32>
    %180 = arith.addf %179, %176 : vector<1x16x64xf32>
    %181 = arith.mulf %180, %178 : vector<1x16x64xf32>
    %cst_94 = arith.constant dense<0.000000e+00> : vector<1x64xf32>
    %182 = vector.multi_reduction <add>, %181, %cst_94 [1] : vector<1x16x64xf32> to vector<1x64xf32>
    %c5_i32 = arith.constant 5 : i32
    %183 = arith.addi %122, %c5_i32 : i32
    %c1_i32_95 = arith.constant 1 : i32
    %184 = arith.muli %183, %c1_i32_95 : i32
    %185 = arith.index_cast %184 : i32 to index
    %c0_96 = arith.constant 0 : index
    %c0_97 = arith.constant 0 : index
    %186 = vector.load %arg15[%185, %c0_96, %c0_97] : memref<8x16x64xf32, #tpu.memory_space<vmem>>, vector<1x16x64xf32>
    %187 = arith.index_cast %184 : i32 to index
    %c0_98 = arith.constant 0 : index
    %c0_99 = arith.constant 0 : index
    %188 = vector.load %arg16[%187, %c0_98, %c0_99] : memref<8x16x64xf32, #tpu.memory_space<vmem>>, vector<1x16x64xf32>
    %189 = arith.index_cast %184 : i32 to index
    %c0_100 = arith.constant 0 : index
    %c0_101 = arith.constant 0 : index
    %190 = vector.load %arg17[%189, %c0_100, %c0_101] : memref<8x16x64xf32, #tpu.memory_space<vmem>>, vector<1x16x64xf32>
    %191 = arith.mulf %186, %180 : vector<1x16x64xf32>
    %192 = arith.addf %191, %188 : vector<1x16x64xf32>
    %193 = arith.mulf %192, %190 : vector<1x16x64xf32>
    %cst_102 = arith.constant dense<0.000000e+00> : vector<1x64xf32>
    %194 = vector.multi_reduction <add>, %193, %cst_102 [1] : vector<1x16x64xf32> to vector<1x64xf32>
    %c6_i32 = arith.constant 6 : i32
    %195 = arith.addi %122, %c6_i32 : i32
    %c1_i32_103 = arith.constant 1 : i32
    %196 = arith.muli %195, %c1_i32_103 : i32
    %197 = arith.index_cast %196 : i32 to index
    %c0_104 = arith.constant 0 : index
    %c0_105 = arith.constant 0 : index
    %198 = vector.load %arg15[%197, %c0_104, %c0_105] : memref<8x16x64xf32, #tpu.memory_space<vmem>>, vector<1x16x64xf32>
    %199 = arith.index_cast %196 : i32 to index
    %c0_106 = arith.constant 0 : index
    %c0_107 = arith.constant 0 : index
    %200 = vector.load %arg16[%199, %c0_106, %c0_107] : memref<8x16x64xf32, #tpu.memory_space<vmem>>, vector<1x16x64xf32>
    %201 = arith.index_cast %196 : i32 to index
    %c0_108 = arith.constant 0 : index
    %c0_109 = arith.constant 0 : index
    %202 = vector.load %arg17[%201, %c0_108, %c0_109] : memref<8x16x64xf32, #tpu.memory_space<vmem>>, vector<1x16x64xf32>
    %203 = arith.mulf %198, %192 : vector<1x16x64xf32>
    %204 = arith.addf %203, %200 : vector<1x16x64xf32>
    %205 = arith.mulf %204, %202 : vector<1x16x64xf32>
    %cst_110 = arith.constant dense<0.000000e+00> : vector<1x64xf32>
    %206 = vector.multi_reduction <add>, %205, %cst_110 [1] : vector<1x16x64xf32> to vector<1x64xf32>
    %c7_i32 = arith.constant 7 : i32
    %207 = arith.addi %122, %c7_i32 : i32
    %c1_i32_111 = arith.constant 1 : i32
    %208 = arith.muli %207, %c1_i32_111 : i32
    %209 = arith.index_cast %208 : i32 to index
    %c0_112 = arith.constant 0 : index
    %c0_113 = arith.constant 0 : index
    %210 = vector.load %arg15[%209, %c0_112, %c0_113] : memref<8x16x64xf32, #tpu.memory_space<vmem>>, vector<1x16x64xf32>
    %211 = arith.index_cast %208 : i32 to index
    %c0_114 = arith.constant 0 : index
    %c0_115 = arith.constant 0 : index
    %212 = vector.load %arg16[%211, %c0_114, %c0_115] : memref<8x16x64xf32, #tpu.memory_space<vmem>>, vector<1x16x64xf32>
    %213 = arith.index_cast %208 : i32 to index
    %c0_116 = arith.constant 0 : index
    %c0_117 = arith.constant 0 : index
    %214 = vector.load %arg17[%213, %c0_116, %c0_117] : memref<8x16x64xf32, #tpu.memory_space<vmem>>, vector<1x16x64xf32>
    %215 = arith.mulf %210, %204 : vector<1x16x64xf32>
    %216 = arith.addf %215, %212 : vector<1x16x64xf32>
    %217 = arith.mulf %216, %214 : vector<1x16x64xf32>
    %cst_118 = arith.constant dense<0.000000e+00> : vector<1x64xf32>
    %218 = vector.multi_reduction <add>, %217, %cst_118 [1] : vector<1x16x64xf32> to vector<1x64xf32>
    %219 = tpu.concatenate %134, %146, %158, %170, %182, %194, %206, %218 in 0 : vector<1x64xf32>, vector<1x64xf32>, vector<1x64xf32>, vector<1x64xf32>, vector<1x64xf32>, vector<1x64xf32>, vector<1x64xf32>, vector<1x64xf32> -> vector<8x64xf32>
    %c1_i32_119 = arith.constant 1 : i32
    %220 = arith.muli %122, %c1_i32_119 : i32
    %221 = tpu.assume_multiple %220, 8 : i32
    %222 = arith.index_cast %221 : i32 to index
    %c0_120 = arith.constant 0 : index
    %223 = vector.load %arg18[%222, %c0_120] : memref<8x64xf32, #tpu.memory_space<vmem>>, vector<8x64xf32>
    tpu.vector_store %arg18[%222, %c0_120], %219 {strides = array<i32>} : memref<8x64xf32, #tpu.memory_space<vmem>>, vector<8x64xf32>,
    %c1_i32_121 = arith.constant 1 : i32
    %c0_122 = arith.constant 0 : index
    %c0_123 = arith.constant 0 : index
    %224 = vector.load %arg18[%c0_122, %c0_123] : memref<8x64xf32, #tpu.memory_space<vmem>>, vector<8x64xf32>
    %c0_124 = arith.constant 0 : index
    %c0_125 = arith.constant 0 : index
    %c0_126 = arith.constant 0 : index
    %225 = vector.load %arg10[%c0_124, %c0_125, %c0_126] : memref<2x1x64xf32, #tpu.memory_space<vmem>>, vector<1x1x64xf32>
    %226 = vector.shape_cast %225 : vector<1x1x64xf32> to vector<1x64xf32>
    %227 = vector.broadcast %226 : vector<1x64xf32> to vector<8x64xf32>
    %228 = arith.mulf %80, %227 : vector<8x64xf32>
    %229 = arith.addf %224, %228 : vector<8x64xf32>
    %230 = arith.negf %37 : vector<8x64xf32>
    %231 = math.exp %230 : vector<8x64xf32>
    %cst_127 = arith.constant 1.000000e+00 : f32
    %232 = vector.broadcast %cst_127 : f32 to vector<8x64xf32>
    %233 = arith.addf %232, %231 : vector<8x64xf32>
    %234 = arith.divf %232, %233 : vector<8x64xf32>
    %235 = arith.mulf %37, %234 : vector<8x64xf32>
    %236 = arith.mulf %229, %235 : vector<8x64xf32>
    %c0_128 = arith.constant 0 : index
    %c0_129 = arith.constant 0 : index
    %c0_130 = arith.constant 0 : index
    %237 = vector.load %arg11[%c0_128, %c0_129, %c0_130] : memref<2x64x32xf32, #tpu.memory_space<vmem>>, vector<1x64x32xf32>
    %238 = vector.shape_cast %237 : vector<1x64x32xf32> to vector<64x32xf32>
    %cst_131 = arith.constant dense<0.000000e+00> : vector<8x32xf32>
    %239 = tpu.matmul %236, %238, %cst_131 {dimension_numbers = #tpu.dot_dimension_numbers<[1], [0], [0], [1], [0, 0, 1, 1], [], []>} : vector<8x64xf32>, vector<64x32xf32>, vector<8x32xf32> -> vector<8x32xf32>
    %240 = arith.addf %239, %18 : vector<8x32xf32>
    %c1 = arith.constant 1 : index
    %c0_132 = arith.constant 0 : index
    %c0_133 = arith.constant 0 : index
    %241 = vector.load %arg3[%c1, %c0_132, %c0_133] : memref<2x1x32xf32, #tpu.memory_space<vmem>>, vector<1x1x32xf32>
    %242 = vector.shape_cast %241 : vector<1x1x32xf32> to vector<1x32xf32>
    %243 = arith.mulf %240, %240 : vector<8x32xf32>
    %cst_134 = arith.constant dense<0.000000e+00> : vector<8xf32>
    %244 = vector.multi_reduction <add>, %243, %cst_134 [1] : vector<8x32xf32> to vector<8xf32>
    %245 = vector.shape_cast %244 : vector<8xf32> to vector<8x1xf32>
    %cst_135 = arith.constant 3.200000e+01 : f32
    %246 = vector.broadcast %cst_135 : f32 to vector<8x1xf32>
    %247 = arith.divf %245, %246 : vector<8x1xf32>
    %cst_136 = arith.constant 9.99999974E-6 : f32
    %248 = vector.broadcast %cst_136 : f32 to vector<8x1xf32>
    %249 = arith.addf %247, %248 : vector<8x1xf32>
    %250 = math.rsqrt %249 : vector<8x1xf32>
    %251 = vector.broadcast %250 : vector<8x1xf32> to vector<8x32xf32>
    %252 = arith.mulf %240, %251 : vector<8x32xf32>
    %253 = vector.broadcast %242 : vector<1x32xf32> to vector<8x32xf32>
    %254 = arith.mulf %252, %253 : vector<8x32xf32>
    %c1_137 = arith.constant 1 : index
    %c0_138 = arith.constant 0 : index
    %c0_139 = arith.constant 0 : index
    %255 = vector.load %arg4[%c1_137, %c0_138, %c0_139] : memref<2x32x128xf32, #tpu.memory_space<vmem>>, vector<1x32x128xf32>
    %256 = vector.shape_cast %255 : vector<1x32x128xf32> to vector<32x128xf32>
    %cst_140 = arith.constant dense<0.000000e+00> : vector<8x128xf32>
    %257 = tpu.matmul %254, %256, %cst_140 {dimension_numbers = #tpu.dot_dimension_numbers<[1], [0], [0], [1], [0, 0, 1, 1], [], []>} : vector<8x32xf32>, vector<32x128xf32>, vector<8x128xf32> -> vector<8x128xf32>
    %258 = vector.extract_strided_slice %257 {offsets = [0, 0], sizes = [8, 64], strides = [1, 1]} : vector<8x128xf32> to vector<8x64xf32>
    %259 = vector.extract_strided_slice %257 {offsets = [0, 64], sizes = [8, 64], strides = [1, 1]} : vector<8x128xf32> to vector<8x64xf32>
    %c1_141 = arith.constant 1 : index
    %c0_142 = arith.constant 0 : index
    %c0_143 = arith.constant 0 : index
    %260 = vector.load %arg5[%c1_141, %c0_142, %c0_143] : memref<2x4x64xf32, #tpu.memory_space<vmem>>, vector<1x4x64xf32>
    %261 = vector.shape_cast %260 : vector<1x4x64xf32> to vector<4x64xf32>
    %c1_144 = arith.constant 1 : index
    %c0_145 = arith.constant 0 : index
    %c0_146 = arith.constant 0 : index
    %262 = vector.load %arg6[%c1_144, %c0_145, %c0_146] : memref<2x1x64xf32, #tpu.memory_space<vmem>>, vector<1x1x64xf32>
    %263 = vector.shape_cast %262 : vector<1x1x64xf32> to vector<1x64xf32>
    %264 = vector.shape_cast %263 : vector<1x64xf32> to vector<1x64xf32>
    %265 = vector.broadcast %264 : vector<1x64xf32> to vector<8x64xf32>
    %c3_i32_147 = arith.constant 3 : i32
    %266 = tpu.dynamic_rotate %258 by %c3_i32_147 dim 0 : vector<8x64xf32>, i32 -> vector<8x64xf32>
    %cst_148 = arith.constant 0.000000e+00 : f32
    %267 = vector.shape_cast %17 : vector<8x1xi1> to vector<8x1xi1>
    %268 = vector.broadcast %267 : vector<8x1xi1> to vector<8x64xi1>
    %269 = vector.broadcast %cst_148 : f32 to vector<8x64xf32>
    %270 = arith.select %268, %266, %269 : vector<8x64xi1>, vector<8x64xf32>
    %271 = vector.extract_strided_slice %261 {offsets = [0, 0], sizes = [1, 64], strides = [1, 1]} : vector<4x64xf32> to vector<1x64xf32>
    %272 = vector.broadcast %271 : vector<1x64xf32> to vector<8x64xf32>
    %273 = arith.mulf %270, %272 : vector<8x64xf32>
    %274 = arith.addf %265, %273 : vector<8x64xf32>
    %c2_i32_149 = arith.constant 2 : i32
    %275 = tpu.dynamic_rotate %258 by %c2_i32_149 dim 0 : vector<8x64xf32>, i32 -> vector<8x64xf32>
    %cst_150 = arith.constant 0.000000e+00 : f32
    %276 = vector.shape_cast %15 : vector<8x1xi1> to vector<8x1xi1>
    %277 = vector.broadcast %276 : vector<8x1xi1> to vector<8x64xi1>
    %278 = vector.broadcast %cst_150 : f32 to vector<8x64xf32>
    %279 = arith.select %277, %275, %278 : vector<8x64xi1>, vector<8x64xf32>
    %280 = vector.extract_strided_slice %261 {offsets = [1, 0], sizes = [1, 64], strides = [1, 1]} : vector<4x64xf32> to vector<1x64xf32>
    %281 = vector.broadcast %280 : vector<1x64xf32> to vector<8x64xf32>
    %282 = arith.mulf %279, %281 : vector<8x64xf32>
    %283 = arith.addf %274, %282 : vector<8x64xf32>
    %c1_i32_151 = arith.constant 1 : i32
    %284 = tpu.dynamic_rotate %258 by %c1_i32_151 dim 0 : vector<8x64xf32>, i32 -> vector<8x64xf32>
    %cst_152 = arith.constant 0.000000e+00 : f32
    %285 = vector.shape_cast %13 : vector<8x1xi1> to vector<8x1xi1>
    %286 = vector.broadcast %285 : vector<8x1xi1> to vector<8x64xi1>
    %287 = vector.broadcast %cst_152 : f32 to vector<8x64xf32>
    %288 = arith.select %286, %284, %287 : vector<8x64xi1>, vector<8x64xf32>
    %289 = vector.extract_strided_slice %261 {offsets = [2, 0], sizes = [1, 64], strides = [1, 1]} : vector<4x64xf32> to vector<1x64xf32>
    %290 = vector.broadcast %289 : vector<1x64xf32> to vector<8x64xf32>
    %291 = arith.mulf %288, %290 : vector<8x64xf32>
    %292 = arith.addf %283, %291 : vector<8x64xf32>
    %293 = vector.extract_strided_slice %261 {offsets = [3, 0], sizes = [1, 64], strides = [1, 1]} : vector<4x64xf32> to vector<1x64xf32>
    %294 = vector.broadcast %293 : vector<1x64xf32> to vector<8x64xf32>
    %295 = arith.mulf %258, %294 : vector<8x64xf32>
    %296 = arith.addf %292, %295 : vector<8x64xf32>
    %297 = arith.negf %296 : vector<8x64xf32>
    %298 = math.exp %297 : vector<8x64xf32>
    %cst_153 = arith.constant 1.000000e+00 : f32
    %299 = vector.broadcast %cst_153 : f32 to vector<8x64xf32>
    %300 = arith.addf %299, %298 : vector<8x64xf32>
    %301 = arith.divf %299, %300 : vector<8x64xf32>
    %302 = arith.mulf %296, %301 : vector<8x64xf32>
    %c1_154 = arith.constant 1 : index
    %c0_155 = arith.constant 0 : index
    %c0_156 = arith.constant 0 : index
    %303 = vector.load %arg7[%c1_154, %c0_155, %c0_156] : memref<2x64x128xf32, #tpu.memory_space<vmem>>, vector<1x64x128xf32>
    %304 = vector.shape_cast %303 : vector<1x64x128xf32> to vector<64x128xf32>
    %cst_157 = arith.constant dense<0.000000e+00> : vector<8x128xf32>
    %305 = tpu.matmul %302, %304, %cst_157 {dimension_numbers = #tpu.dot_dimension_numbers<[1], [0], [0], [1], [0, 0, 1, 1], [], []>} : vector<8x64xf32>, vector<64x128xf32>, vector<8x128xf32> -> vector<8x128xf32>
    %306 = vector.extract_strided_slice %305 {offsets = [0, 0], sizes = [8, 64], strides = [1, 1]} : vector<8x128xf32> to vector<8x64xf32>
    %c1_158 = arith.constant 1 : index
    %c0_159 = arith.constant 0 : index
    %c0_160 = arith.constant 0 : index
    %307 = vector.load %arg8[%c1_158, %c0_159, %c0_160] : memref<2x1x64xf32, #tpu.memory_space<vmem>>, vector<1x1x64xf32>
    %308 = vector.shape_cast %307 : vector<1x1x64xf32> to vector<1x64xf32>
    %309 = vector.broadcast %308 : vector<1x64xf32> to vector<8x64xf32>
    %310 = arith.addf %306, %309 : vector<8x64xf32>
    %cst_161 = arith.constant 2.000000e+01 : f32
    %311 = vector.broadcast %cst_161 : f32 to vector<8x64xf32>
    %312 = arith.cmpf ogt, %310, %311 : vector<8x64xf32>
    %cst_162 = arith.constant 2.000000e+01 : f32
    %313 = vector.broadcast %cst_162 : f32 to vector<8x64xf32>
    %314 = arith.minimumf %310, %313 : vector<8x64xf32>
    %315 = math.exp %314 : vector<8x64xf32>
    %316 = math.log1p %315 : vector<8x64xf32>
    %317 = arith.select %312, %310, %316 : vector<8x64xi1>, vector<8x64xf32>
    %318 = vector.extract_strided_slice %305 {offsets = [0, 64], sizes = [8, 16], strides = [1, 1]} : vector<8x128xf32> to vector<8x16xf32>
    %319 = vector.extract_strided_slice %305 {offsets = [0, 80], sizes = [8, 16], strides = [1, 1]} : vector<8x128xf32> to vector<8x16xf32>
    %c1_163 = arith.constant 1 : index
    %c0_164 = arith.constant 0 : index
    %c0_165 = arith.constant 0 : index
    %320 = vector.load %arg9[%c1_163, %c0_164, %c0_165] : memref<2x16x64xf32, #tpu.memory_space<vmem>>, vector<1x16x64xf32>
    %321 = vector.shape_cast %320 : vector<1x16x64xf32> to vector<16x64xf32>
    %322 = math.exp %321 : vector<16x64xf32>
    %cst_166 = arith.constant 0.000000e+00 : f32
    %323 = vector.broadcast %cst_166 : f32 to vector<16x64xf32>
    %324 = arith.subf %323, %322 : vector<16x64xf32>
    %325 = vector.shape_cast %317 : vector<8x64xf32> to vector<8x1x64xf32>
    %326 = vector.shape_cast %324 : vector<16x64xf32> to vector<1x16x64xf32>
    %327 = vector.broadcast %325 : vector<8x1x64xf32> to vector<8x16x64xf32>
    %328 = vector.broadcast %326 : vector<1x16x64xf32> to vector<8x16x64xf32>
    %329 = arith.mulf %327, %328 : vector<8x16x64xf32>
    %330 = math.exp %329 : vector<8x16x64xf32>
    %c0_167 = arith.constant 0 : index
    %c0_168 = arith.constant 0 : index
    %c0_169 = arith.constant 0 : index
    %331 = vector.load %arg15[%c0_167, %c0_168, %c0_169] : memref<8x16x64xf32, #tpu.memory_space<vmem>>, vector<8x16x64xf32>
    tpu.vector_store %arg15[%c0_167, %c0_168, %c0_169], %330 {strides = array<i32>} : memref<8x16x64xf32, #tpu.memory_space<vmem>>, vector<8x16x64xf32>,
    %332 = arith.mulf %317, %302 : vector<8x64xf32>
    %333 = vector.shape_cast %332 : vector<8x64xf32> to vector<8x1x64xf32>
    %334 = vector.shape_cast %318 : vector<8x16xf32> to vector<8x16x1xf32>
    %335 = vector.broadcast %333 : vector<8x1x64xf32> to vector<8x16x64xf32>
    %336 = vector.broadcast %334 : vector<8x16x1xf32> to vector<8x16x64xf32>
    %337 = arith.mulf %335, %336 : vector<8x16x64xf32>
    %c0_170 = arith.constant 0 : index
    %c0_171 = arith.constant 0 : index
    %c0_172 = arith.constant 0 : index
    %338 = vector.load %arg16[%c0_170, %c0_171, %c0_172] : memref<8x16x64xf32, #tpu.memory_space<vmem>>, vector<8x16x64xf32>
    tpu.vector_store %arg16[%c0_170, %c0_171, %c0_172], %337 {strides = array<i32>} : memref<8x16x64xf32, #tpu.memory_space<vmem>>, vector<8x16x64xf32>,
    %339 = vector.shape_cast %319 : vector<8x16xf32> to vector<8x16x1xf32>
    %340 = vector.shape_cast %339 : vector<8x16x1xf32> to vector<8x16x1xf32>
    %341 = vector.broadcast %340 : vector<8x16x1xf32> to vector<8x16x64xf32>
    %c0_173 = arith.constant 0 : index
    %c0_174 = arith.constant 0 : index
    %c0_175 = arith.constant 0 : index
    %342 = vector.load %arg17[%c0_173, %c0_174, %c0_175] : memref<8x16x64xf32, #tpu.memory_space<vmem>>, vector<8x16x64xf32>
    tpu.vector_store %arg17[%c0_173, %c0_174, %c0_175], %341 {strides = array<i32>} : memref<8x16x64xf32, #tpu.memory_space<vmem>>, vector<8x16x64xf32>,
    %cst_176 = arith.constant 0.000000e+00 : f32
    %343 = vector.broadcast %cst_176 : f32 to vector<1x16x64xf32>
    %c0_i32_177 = arith.constant 0 : i32
    %c8_i32_178 = arith.constant 8 : i32
    %344 = arith.muli %c0_i32_177, %c8_i32_178 : i32
    %c0_i32_179 = arith.constant 0 : i32
    %345 = arith.addi %344, %c0_i32_179 : i32
    %c1_i32_180 = arith.constant 1 : i32
    %346 = arith.muli %345, %c1_i32_180 : i32
    %347 = arith.index_cast %346 : i32 to index
    %c0_181 = arith.constant 0 : index
    %c0_182 = arith.constant 0 : index
    %348 = vector.load %arg15[%347, %c0_181, %c0_182] : memref<8x16x64xf32, #tpu.memory_space<vmem>>, vector<1x16x64xf32>
    %349 = arith.index_cast %346 : i32 to index
    %c0_183 = arith.constant 0 : index
    %c0_184 = arith.constant 0 : index
    %350 = vector.load %arg16[%349, %c0_183, %c0_184] : memref<8x16x64xf32, #tpu.memory_space<vmem>>, vector<1x16x64xf32>
    %351 = arith.index_cast %346 : i32 to index
    %c0_185 = arith.constant 0 : index
    %c0_186 = arith.constant 0 : index
    %352 = vector.load %arg17[%351, %c0_185, %c0_186] : memref<8x16x64xf32, #tpu.memory_space<vmem>>, vector<1x16x64xf32>
    %353 = arith.mulf %348, %343 : vector<1x16x64xf32>
    %354 = arith.addf %353, %350 : vector<1x16x64xf32>
    %355 = arith.mulf %354, %352 : vector<1x16x64xf32>
    %cst_187 = arith.constant dense<0.000000e+00> : vector<1x64xf32>
    %356 = vector.multi_reduction <add>, %355, %cst_187 [1] : vector<1x16x64xf32> to vector<1x64xf32>
    %c1_i32_188 = arith.constant 1 : i32
    %357 = arith.addi %344, %c1_i32_188 : i32
    %c1_i32_189 = arith.constant 1 : i32
    %358 = arith.muli %357, %c1_i32_189 : i32
    %359 = arith.index_cast %358 : i32 to index
    %c0_190 = arith.constant 0 : index
    %c0_191 = arith.constant 0 : index
    %360 = vector.load %arg15[%359, %c0_190, %c0_191] : memref<8x16x64xf32, #tpu.memory_space<vmem>>, vector<1x16x64xf32>
    %361 = arith.index_cast %358 : i32 to index
    %c0_192 = arith.constant 0 : index
    %c0_193 = arith.constant 0 : index
    %362 = vector.load %arg16[%361, %c0_192, %c0_193] : memref<8x16x64xf32, #tpu.memory_space<vmem>>, vector<1x16x64xf32>
    %363 = arith.index_cast %358 : i32 to index
    %c0_194 = arith.constant 0 : index
    %c0_195 = arith.constant 0 : index
    %364 = vector.load %arg17[%363, %c0_194, %c0_195] : memref<8x16x64xf32, #tpu.memory_space<vmem>>, vector<1x16x64xf32>
    %365 = arith.mulf %360, %354 : vector<1x16x64xf32>
    %366 = arith.addf %365, %362 : vector<1x16x64xf32>
    %367 = arith.mulf %366, %364 : vector<1x16x64xf32>
    %cst_196 = arith.constant dense<0.000000e+00> : vector<1x64xf32>
    %368 = vector.multi_reduction <add>, %367, %cst_196 [1] : vector<1x16x64xf32> to vector<1x64xf32>
    %c2_i32_197 = arith.constant 2 : i32
    %369 = arith.addi %344, %c2_i32_197 : i32
    %c1_i32_198 = arith.constant 1 : i32
    %370 = arith.muli %369, %c1_i32_198 : i32
    %371 = arith.index_cast %370 : i32 to index
    %c0_199 = arith.constant 0 : index
    %c0_200 = arith.constant 0 : index
    %372 = vector.load %arg15[%371, %c0_199, %c0_200] : memref<8x16x64xf32, #tpu.memory_space<vmem>>, vector<1x16x64xf32>
    %373 = arith.index_cast %370 : i32 to index
    %c0_201 = arith.constant 0 : index
    %c0_202 = arith.constant 0 : index
    %374 = vector.load %arg16[%373, %c0_201, %c0_202] : memref<8x16x64xf32, #tpu.memory_space<vmem>>, vector<1x16x64xf32>
    %375 = arith.index_cast %370 : i32 to index
    %c0_203 = arith.constant 0 : index
    %c0_204 = arith.constant 0 : index
    %376 = vector.load %arg17[%375, %c0_203, %c0_204] : memref<8x16x64xf32, #tpu.memory_space<vmem>>, vector<1x16x64xf32>
    %377 = arith.mulf %372, %366 : vector<1x16x64xf32>
    %378 = arith.addf %377, %374 : vector<1x16x64xf32>
    %379 = arith.mulf %378, %376 : vector<1x16x64xf32>
    %cst_205 = arith.constant dense<0.000000e+00> : vector<1x64xf32>
    %380 = vector.multi_reduction <add>, %379, %cst_205 [1] : vector<1x16x64xf32> to vector<1x64xf32>
    %c3_i32_206 = arith.constant 3 : i32
    %381 = arith.addi %344, %c3_i32_206 : i32
    %c1_i32_207 = arith.constant 1 : i32
    %382 = arith.muli %381, %c1_i32_207 : i32
    %383 = arith.index_cast %382 : i32 to index
    %c0_208 = arith.constant 0 : index
    %c0_209 = arith.constant 0 : index
    %384 = vector.load %arg15[%383, %c0_208, %c0_209] : memref<8x16x64xf32, #tpu.memory_space<vmem>>, vector<1x16x64xf32>
    %385 = arith.index_cast %382 : i32 to index
    %c0_210 = arith.constant 0 : index
    %c0_211 = arith.constant 0 : index
    %386 = vector.load %arg16[%385, %c0_210, %c0_211] : memref<8x16x64xf32, #tpu.memory_space<vmem>>, vector<1x16x64xf32>
    %387 = arith.index_cast %382 : i32 to index
    %c0_212 = arith.constant 0 : index
    %c0_213 = arith.constant 0 : index
    %388 = vector.load %arg17[%387, %c0_212, %c0_213] : memref<8x16x64xf32, #tpu.memory_space<vmem>>, vector<1x16x64xf32>
    %389 = arith.mulf %384, %378 : vector<1x16x64xf32>
    %390 = arith.addf %389, %386 : vector<1x16x64xf32>
    %391 = arith.mulf %390, %388 : vector<1x16x64xf32>
    %cst_214 = arith.constant dense<0.000000e+00> : vector<1x64xf32>
    %392 = vector.multi_reduction <add>, %391, %cst_214 [1] : vector<1x16x64xf32> to vector<1x64xf32>
    %c4_i32_215 = arith.constant 4 : i32
    %393 = arith.addi %344, %c4_i32_215 : i32
    %c1_i32_216 = arith.constant 1 : i32
    %394 = arith.muli %393, %c1_i32_216 : i32
    %395 = arith.index_cast %394 : i32 to index
    %c0_217 = arith.constant 0 : index
    %c0_218 = arith.constant 0 : index
    %396 = vector.load %arg15[%395, %c0_217, %c0_218] : memref<8x16x64xf32, #tpu.memory_space<vmem>>, vector<1x16x64xf32>
    %397 = arith.index_cast %394 : i32 to index
    %c0_219 = arith.constant 0 : index
    %c0_220 = arith.constant 0 : index
    %398 = vector.load %arg16[%397, %c0_219, %c0_220] : memref<8x16x64xf32, #tpu.memory_space<vmem>>, vector<1x16x64xf32>
    %399 = arith.index_cast %394 : i32 to index
    %c0_221 = arith.constant 0 : index
    %c0_222 = arith.constant 0 : index
    %400 = vector.load %arg17[%399, %c0_221, %c0_222] : memref<8x16x64xf32, #tpu.memory_space<vmem>>, vector<1x16x64xf32>
    %401 = arith.mulf %396, %390 : vector<1x16x64xf32>
    %402 = arith.addf %401, %398 : vector<1x16x64xf32>
    %403 = arith.mulf %402, %400 : vector<1x16x64xf32>
    %cst_223 = arith.constant dense<0.000000e+00> : vector<1x64xf32>
    %404 = vector.multi_reduction <add>, %403, %cst_223 [1] : vector<1x16x64xf32> to vector<1x64xf32>
    %c5_i32_224 = arith.constant 5 : i32
    %405 = arith.addi %344, %c5_i32_224 : i32
    %c1_i32_225 = arith.constant 1 : i32
    %406 = arith.muli %405, %c1_i32_225 : i32
    %407 = arith.index_cast %406 : i32 to index
    %c0_226 = arith.constant 0 : index
    %c0_227 = arith.constant 0 : index
    %408 = vector.load %arg15[%407, %c0_226, %c0_227] : memref<8x16x64xf32, #tpu.memory_space<vmem>>, vector<1x16x64xf32>
    %409 = arith.index_cast %406 : i32 to index
    %c0_228 = arith.constant 0 : index
    %c0_229 = arith.constant 0 : index
    %410 = vector.load %arg16[%409, %c0_228, %c0_229] : memref<8x16x64xf32, #tpu.memory_space<vmem>>, vector<1x16x64xf32>
    %411 = arith.index_cast %406 : i32 to index
    %c0_230 = arith.constant 0 : index
    %c0_231 = arith.constant 0 : index
    %412 = vector.load %arg17[%411, %c0_230, %c0_231] : memref<8x16x64xf32, #tpu.memory_space<vmem>>, vector<1x16x64xf32>
    %413 = arith.mulf %408, %402 : vector<1x16x64xf32>
    %414 = arith.addf %413, %410 : vector<1x16x64xf32>
    %415 = arith.mulf %414, %412 : vector<1x16x64xf32>
    %cst_232 = arith.constant dense<0.000000e+00> : vector<1x64xf32>
    %416 = vector.multi_reduction <add>, %415, %cst_232 [1] : vector<1x16x64xf32> to vector<1x64xf32>
    %c6_i32_233 = arith.constant 6 : i32
    %417 = arith.addi %344, %c6_i32_233 : i32
    %c1_i32_234 = arith.constant 1 : i32
    %418 = arith.muli %417, %c1_i32_234 : i32
    %419 = arith.index_cast %418 : i32 to index
    %c0_235 = arith.constant 0 : index
    %c0_236 = arith.constant 0 : index
    %420 = vector.load %arg15[%419, %c0_235, %c0_236] : memref<8x16x64xf32, #tpu.memory_space<vmem>>, vector<1x16x64xf32>
    %421 = arith.index_cast %418 : i32 to index
    %c0_237 = arith.constant 0 : index
    %c0_238 = arith.constant 0 : index
    %422 = vector.load %arg16[%421, %c0_237, %c0_238] : memref<8x16x64xf32, #tpu.memory_space<vmem>>, vector<1x16x64xf32>
    %423 = arith.index_cast %418 : i32 to index
    %c0_239 = arith.constant 0 : index
    %c0_240 = arith.constant 0 : index
    %424 = vector.load %arg17[%423, %c0_239, %c0_240] : memref<8x16x64xf32, #tpu.memory_space<vmem>>, vector<1x16x64xf32>
    %425 = arith.mulf %420, %414 : vector<1x16x64xf32>
    %426 = arith.addf %425, %422 : vector<1x16x64xf32>
    %427 = arith.mulf %426, %424 : vector<1x16x64xf32>
    %cst_241 = arith.constant dense<0.000000e+00> : vector<1x64xf32>
    %428 = vector.multi_reduction <add>, %427, %cst_241 [1] : vector<1x16x64xf32> to vector<1x64xf32>
    %c7_i32_242 = arith.constant 7 : i32
    %429 = arith.addi %344, %c7_i32_242 : i32
    %c1_i32_243 = arith.constant 1 : i32
    %430 = arith.muli %429, %c1_i32_243 : i32
    %431 = arith.index_cast %430 : i32 to index
    %c0_244 = arith.constant 0 : index
    %c0_245 = arith.constant 0 : index
    %432 = vector.load %arg15[%431, %c0_244, %c0_245] : memref<8x16x64xf32, #tpu.memory_space<vmem>>, vector<1x16x64xf32>
    %433 = arith.index_cast %430 : i32 to index
    %c0_246 = arith.constant 0 : index
    %c0_247 = arith.constant 0 : index
    %434 = vector.load %arg16[%433, %c0_246, %c0_247] : memref<8x16x64xf32, #tpu.memory_space<vmem>>, vector<1x16x64xf32>
    %435 = arith.index_cast %430 : i32 to index
    %c0_248 = arith.constant 0 : index
    %c0_249 = arith.constant 0 : index
    %436 = vector.load %arg17[%435, %c0_248, %c0_249] : memref<8x16x64xf32, #tpu.memory_space<vmem>>, vector<1x16x64xf32>
    %437 = arith.mulf %432, %426 : vector<1x16x64xf32>
    %438 = arith.addf %437, %434 : vector<1x16x64xf32>
    %439 = arith.mulf %438, %436 : vector<1x16x64xf32>
    %cst_250 = arith.constant dense<0.000000e+00> : vector<1x64xf32>
    %440 = vector.multi_reduction <add>, %439, %cst_250 [1] : vector<1x16x64xf32> to vector<1x64xf32>
    %441 = tpu.concatenate %356, %368, %380, %392, %404, %416, %428, %440 in 0 : vector<1x64xf32>, vector<1x64xf32>, vector<1x64xf32>, vector<1x64xf32>, vector<1x64xf32>, vector<1x64xf32>, vector<1x64xf32>, vector<1x64xf32> -> vector<8x64xf32>
    %c1_i32_251 = arith.constant 1 : i32
    %442 = arith.muli %344, %c1_i32_251 : i32
    %443 = tpu.assume_multiple %442, 8 : i32
    %444 = arith.index_cast %443 : i32 to index
    %c0_252 = arith.constant 0 : index
    %445 = vector.load %arg18[%444, %c0_252] : memref<8x64xf32, #tpu.memory_space<vmem>>, vector<8x64xf32>
    tpu.vector_store %arg18[%444, %c0_252], %441 {strides = array<i32>} : memref<8x64xf32, #tpu.memory_space<vmem>>, vector<8x64xf32>,
    %c1_i32_253 = arith.constant 1 : i32
    %c0_254 = arith.constant 0 : index
    %c0_255 = arith.constant 0 : index
    %446 = vector.load %arg18[%c0_254, %c0_255] : memref<8x64xf32, #tpu.memory_space<vmem>>, vector<8x64xf32>
    %c1_256 = arith.constant 1 : index
    %c0_257 = arith.constant 0 : index
    %c0_258 = arith.constant 0 : index
    %447 = vector.load %arg10[%c1_256, %c0_257, %c0_258] : memref<2x1x64xf32, #tpu.memory_space<vmem>>, vector<1x1x64xf32>
    %448 = vector.shape_cast %447 : vector<1x1x64xf32> to vector<1x64xf32>
    %449 = vector.broadcast %448 : vector<1x64xf32> to vector<8x64xf32>
    %450 = arith.mulf %302, %449 : vector<8x64xf32>
    %451 = arith.addf %446, %450 : vector<8x64xf32>
    %452 = arith.negf %259 : vector<8x64xf32>
    %453 = math.exp %452 : vector<8x64xf32>
    %cst_259 = arith.constant 1.000000e+00 : f32
    %454 = vector.broadcast %cst_259 : f32 to vector<8x64xf32>
    %455 = arith.addf %454, %453 : vector<8x64xf32>
    %456 = arith.divf %454, %455 : vector<8x64xf32>
    %457 = arith.mulf %259, %456 : vector<8x64xf32>
    %458 = arith.mulf %451, %457 : vector<8x64xf32>
    %c1_260 = arith.constant 1 : index
    %c0_261 = arith.constant 0 : index
    %c0_262 = arith.constant 0 : index
    %459 = vector.load %arg11[%c1_260, %c0_261, %c0_262] : memref<2x64x32xf32, #tpu.memory_space<vmem>>, vector<1x64x32xf32>
    %460 = vector.shape_cast %459 : vector<1x64x32xf32> to vector<64x32xf32>
    %cst_263 = arith.constant dense<0.000000e+00> : vector<8x32xf32>
    %461 = tpu.matmul %458, %460, %cst_263 {dimension_numbers = #tpu.dot_dimension_numbers<[1], [0], [0], [1], [0, 0, 1, 1], [], []>} : vector<8x64xf32>, vector<64x32xf32>, vector<8x32xf32> -> vector<8x32xf32>
    %462 = arith.addf %461, %240 : vector<8x32xf32>
    %c0_264 = arith.constant 0 : index
    %c0_265 = arith.constant 0 : index
    %463 = vector.load %arg12[%c0_264, %c0_265] : memref<1x32xf32, #tpu.memory_space<vmem>>, vector<1x32xf32>
    %464 = arith.mulf %462, %462 : vector<8x32xf32>
    %cst_266 = arith.constant dense<0.000000e+00> : vector<8xf32>
    %465 = vector.multi_reduction <add>, %464, %cst_266 [1] : vector<8x32xf32> to vector<8xf32>
    %466 = vector.shape_cast %465 : vector<8xf32> to vector<8x1xf32>
    %cst_267 = arith.constant 3.200000e+01 : f32
    %467 = vector.broadcast %cst_267 : f32 to vector<8x1xf32>
    %468 = arith.divf %466, %467 : vector<8x1xf32>
    %cst_268 = arith.constant 9.99999974E-6 : f32
    %469 = vector.broadcast %cst_268 : f32 to vector<8x1xf32>
    %470 = arith.addf %468, %469 : vector<8x1xf32>
    %471 = math.rsqrt %470 : vector<8x1xf32>
    %472 = vector.broadcast %471 : vector<8x1xf32> to vector<8x32xf32>
    %473 = arith.mulf %462, %472 : vector<8x32xf32>
    %474 = vector.broadcast %463 : vector<1x32xf32> to vector<8x32xf32>
    %475 = arith.mulf %473, %474 : vector<8x32xf32>
    %c0_269 = arith.constant 0 : index
    %c0_270 = arith.constant 0 : index
    %476 = vector.load %arg13[%c0_269, %c0_270] : memref<32x128xf32, #tpu.memory_space<vmem>>, vector<32x128xf32>
    %cst_271 = arith.constant dense<0.000000e+00> : vector<8x128xf32>
    %477 = tpu.matmul %475, %476, %cst_271 {dimension_numbers = #tpu.dot_dimension_numbers<[1], [0], [0], [1], [0, 0, 1, 1], [], []>} : vector<8x32xf32>, vector<32x128xf32>, vector<8x128xf32> -> vector<8x128xf32>
    %c0_272 = arith.constant 0 : index
    %c0_273 = arith.constant 0 : index
    %c0_274 = arith.constant 0 : index
    %478 = vector.load %arg14[%c0_272, %c0_273, %c0_274] : memref<1x8x128xf32, #tpu.memory_space<vmem>>, vector<1x8x128xf32>
    %479 = vector.shape_cast %478 : vector<1x8x128xf32> to vector<8x128xf32>
    %480 = vector.shape_cast %477 : vector<8x128xf32> to vector<1x8x128xf32>
    tpu.vector_store %arg14[%c0_272, %c0_273, %c0_274], %480 {strides = array<i32>} : memref<1x8x128xf32, #tpu.memory_space<vmem>>, vector<1x8x128xf32>,
    return
  }
  func.func @transform_0(%arg0: i32) -> (i32, i32, i32) {
    %c0_i32 = arith.constant 0 : i32
    %c0_i32_0 = arith.constant 0 : i32
    %c0_i32_1 = arith.constant 0 : i32
    return %arg0, %c0_i32, %c0_i32_0 : i32, i32, i32
  }
  func.func @transform_1(%arg0: i32) -> (i32, i32) {
    %c0_i32 = arith.constant 0 : i32
    %c0_i32_0 = arith.constant 0 : i32
    %c0_i32_1 = arith.constant 0 : i32
    return %c0_i32, %c0_i32_0 : i32, i32
  }
  func.func @transform_2(%arg0: i32) -> (i32, i32, i32) {
    %c0_i32 = arith.constant 0 : i32
    %c0_i32_0 = arith.constant 0 : i32
    %c0_i32_1 = arith.constant 0 : i32
    %c0_i32_2 = arith.constant 0 : i32
    return %c0_i32, %c0_i32_0, %c0_i32_1 : i32, i32, i32
  }
  func.func @transform_3(%arg0: i32) -> (i32, i32, i32) {
    %c0_i32 = arith.constant 0 : i32
    %c0_i32_0 = arith.constant 0 : i32
    %c0_i32_1 = arith.constant 0 : i32
    %c0_i32_2 = arith.constant 0 : i32
    return %c0_i32, %c0_i32_0, %c0_i32_1 : i32, i32, i32
  }
  func.func @transform_4(%arg0: i32) -> (i32, i32, i32) {
    %c0_i32 = arith.constant 0 : i32
    %c0_i32_0 = arith.constant 0 : i32
    %c0_i32_1 = arith.constant 0 : i32
    %c0_i32_2 = arith.constant 0 : i32
    return %c0_i32, %c0_i32_0, %c0_i32_1 : i32, i32, i32
  }
  func.func @transform_5(%arg0: i32) -> (i32, i32, i32) {
    %c0_i32 = arith.constant 0 : i32
    %c0_i32_0 = arith.constant 0 : i32
    %c0_i32_1 = arith.constant 0 : i32
    %c0_i32_2 = arith.constant 0 : i32
    return %c0_i32, %c0_i32_0, %c0_i32_1 : i32, i32, i32
  }
  func.func @transform_6(%arg0: i32) -> (i32, i32, i32) {
    %c0_i32 = arith.constant 0 : i32
    %c0_i32_0 = arith.constant 0 : i32
    %c0_i32_1 = arith.constant 0 : i32
    %c0_i32_2 = arith.constant 0 : i32
    return %c0_i32, %c0_i32_0, %c0_i32_1 : i32, i32, i32
  }
  func.func @transform_7(%arg0: i32) -> (i32, i32, i32) {
    %c0_i32 = arith.constant 0 : i32
    %c0_i32_0 = arith.constant 0 : i32
    %c0_i32_1 = arith.constant 0 : i32
    %c0_i32_2 = arith.constant 0 : i32
    return %c0_i32, %c0_i32_0, %c0_i32_1 : i32, i32, i32
  }
  func.func @transform_8(%arg0: i32) -> (i32, i32, i32) {
    %c0_i32 = arith.constant 0 : i32
    %c0_i32_0 = arith.constant 0 : i32
    %c0_i32_1 = arith.constant 0 : i32
    %c0_i32_2 = arith.constant 0 : i32
    return %c0_i32, %c0_i32_0, %c0_i32_1 : i32, i32, i32
  }
  func.func @transform_9(%arg0: i32) -> (i32, i32, i32) {
    %c0_i32 = arith.constant 0 : i32
    %c0_i32_0 = arith.constant 0 : i32
    %c0_i32_1 = arith.constant 0 : i32
    %c0_i32_2 = arith.constant 0 : i32
    return %c0_i32, %c0_i32_0, %c0_i32_1 : i32, i32, i32
  }
  func.func @transform_10(%arg0: i32) -> (i32, i32, i32) {
    %c0_i32 = arith.constant 0 : i32
    %c0_i32_0 = arith.constant 0 : i32
    %c0_i32_1 = arith.constant 0 : i32
    %c0_i32_2 = arith.constant 0 : i32
    return %c0_i32, %c0_i32_0, %c0_i32_1 : i32, i32, i32
  }
  func.func @transform_11(%arg0: i32) -> (i32, i32) {
    %c0_i32 = arith.constant 0 : i32
    %c0_i32_0 = arith.constant 0 : i32
    %c0_i32_1 = arith.constant 0 : i32
    return %c0_i32, %c0_i32_0 : i32, i32
  }
  func.func @transform_12(%arg0: i32) -> (i32, i32) {
    %c0_i32 = arith.constant 0 : i32
    %c0_i32_0 = arith.constant 0 : i32
    %c0_i32_1 = arith.constant 0 : i32
    return %c0_i32, %c0_i32_0 : i32, i32
  }
  func.func @transform_13(%arg0: i32) -> (i32, i32, i32) {
    %c0_i32 = arith.constant 0 : i32
    %c0_i32_0 = arith.constant 0 : i32
    %c0_i32_1 = arith.constant 0 : i32
    return %arg0, %c0_i32, %c0_i32_0 : i32, i32, i32
  }
}

</mosaic_0001>

<llo_original>
// kernel: mamba_tpp_forward.1
$region0: #{mamba_tpp_forward.1}
  #allocation0 [shape = 'u32[]', space=smem, size = 0x4, offset = 0x4, fixed_abs, tag = 'smem constant byte address 0x4 - core index']
  #allocation1 [shape = 'u32[144,128]{1,0:T(1,128)}', space=vmem, size = 0x12000, scoped, tag = 'internal scratch']
  #allocation2 [shape = 'f32[8,16,64]{2,1,0:T(8,128)}', space=vmem, size = 0x10000, scoped, tag = 'scratch operand']
  #allocation3 [shape = 'f32[8,16,64]{2,1,0:T(8,128)}', space=vmem, size = 0x10000, scoped, tag = 'scratch operand']
  #allocation4 [shape = 'f32[8,16,64]{2,1,0:T(8,128)}', space=vmem, size = 0x10000, scoped, tag = 'scratch operand']
  #allocation5 [shape = 'f32[8,64]{1,0:T(8,128)}', space=vmem, size = 0x1000, scoped, tag = 'scratch operand']
  %s0 = inlined_call_operand.vmem [shape: s32[2,8,1], index: 0, kind: input, shape index: {}]
  %s1 = inlined_call_operand.vmem [shape: f32[128,32], index: 1, kind: input, shape index: {}]
  %s2 = inlined_call_operand.vmem [shape: f32[2,1,32], index: 2, kind: input, shape index: {}]
  %s3 = inlined_call_operand.vmem [shape: f32[2,32,128], index: 3, kind: input, shape index: {}]
  %s4 = inlined_call_operand.vmem [shape: f32[2,4,64], index: 4, kind: input, shape index: {}]
  %s5 = inlined_call_operand.vmem [shape: f32[2,1,64], index: 5, kind: input, shape index: {}]
  %s6 = inlined_call_operand.vmem [shape: f32[2,64,128], index: 6, kind: input, shape index: {}]
  %s7 = inlined_call_operand.vmem [shape: f32[2,1,64], index: 7, kind: input, shape index: {}]
  %s8 = inlined_call_operand.vmem [shape: f32[2,16,64], index: 8, kind: input, shape index: {}]
  %s9 = inlined_call_operand.vmem [shape: f32[2,1,64], index: 9, kind: input, shape index: {}]
  %s10 = inlined_call_operand.vmem [shape: f32[2,64,32], index: 10, kind: input, shape index: {}]
  %s11 = inlined_call_operand.vmem [shape: f32[1,32], index: 11, kind: input, shape index: {}]
  %s12 = inlined_call_operand.vmem [shape: f32[32,128], index: 12, kind: input, shape index: {}]
  %s13 = inlined_call_operand.vmem [shape: f32[2,8,128], index: 13, kind: output, shape index: {}]
  %s14 = sld [smem:[#allocation0]]
  $region85: #{mamba_tpp_forward.1} parent=0
    _
  %s16 = ssub.s32 1, %s14
  %s17 = scalar_select 0, %s16, %s14
  loop: start=0, step=1, limit=4
  $region2: #{mamba_tpp_forward.1} parent=0 // loop_pre_header
    _
  $region3: #{mamba_tpp_forward.1} parent=0 // loop_header
    %s19 = sphi 0, %s23
    %p20 = scmp.ge.s32.totalorder %s19, 4
    %s29 = sphi 0, %s31
    %s32 = sphi 0, %s29
    %s33 = sphi 0, %s32
    %s49 = sphi 0, %s33
    %s53 = sphi 0, %s53
    %s55 = sphi 0, %s53
    %s56 = sphi 0, %s55
    %s70 = sphi 0, %s56
    %s74 = sphi 0, %s74
    %s76 = sphi 0, %s74
    %s77 = sphi 0, %s76
    %s91 = sphi 0, %s77
    %s95 = sphi 0, %s95
    %s97 = sphi 0, %s95
    %s98 = sphi 0, %s97
    %s112 = sphi 0, %s98
    %s116 = sphi 0, %s116
    %s118 = sphi 0, %s116
    %s119 = sphi 0, %s118
    %s133 = sphi 0, %s119
    %s137 = sphi 0, %s137
    %s139 = sphi 0, %s137
    %s140 = sphi 0, %s139
    %s154 = sphi 0, %s140
    %s158 = sphi 0, %s158
    %s160 = sphi 0, %s158
    %s161 = sphi 0, %s160
    %s175 = sphi 0, %s161
    %s179 = sphi 0, %s179
    %s181 = sphi 0, %s179
    %s182 = sphi 0, %s181
    %s196 = sphi 0, %s182
    %s200 = sphi 0, %s200
    %s202 = sphi 0, %s200
    %s203 = sphi 0, %s202
    %s217 = sphi 0, %s203
    %s221 = sphi 0, %s221
    %s223 = sphi 0, %s221
    %s224 = sphi 0, %s223
    %s238 = sphi 0, %s224
    %s242 = sphi 0, %s242
    %s244 = sphi 0, %s242
    %s245 = sphi 0, %s244
    %s259 = sphi 0, %s245
    %s263 = sphi 0, %s263
    %s265 = sphi 0, %s263
    %s266 = sphi 0, %s265
    %s280 = sphi 0, %s266
    %s284 = sphi 0, %s284
    %s286 = sphi 0, %s284
    %s287 = sphi 0, %s286
    %s301 = sphi 0, %s287
    %s307 = sphi 0, %s309
    %s310 = sphi 0, %s307
    %s311 = sphi 0, %s310
    %s327 = sphi 0, %s311
  $region4: #{mamba_tpp_forward.1} parent=0 // loop_header_branch
    %22 = sbr.rel (%p20) target = $region8
  $region5: #{mamba_tpp_forward.1} parent=0 // loop_body
    %s24 = ssub.s32 %s19, 1
    %s25 = ssub.s32 %s19, 2
    %s26 = sadd.s32 %s19, 1
    %s27 = ssub.s32 %s19, %s26
    %p28 = scmp.eq.s32.totalorder %s27, 0
    %s30 = sadd.s32 %s29, 1
    %s31 = scalar_select %p28, %s29, %s30
    %p34 = pneg %p28
    %p35 = scmp.eq.s32.totalorder %s19, 1
    %p36 = por %p34, %p35
    %p37 = scmp.ne.s32.totalorder %s29, %s32
    %p38 = scmp.eq.s32.totalorder %s19, 0
    %p39 = por %p37, %p38
    %p40 = scmp.ne.s32.totalorder %s29, %s32
    %p41 = scmp.eq.s32.totalorder %s24, 1
    %p42 = por %p40, %p41
    %p43 = scmp.ne.s32.totalorder %s32, %s33
    %p44 = scmp.eq.s32.totalorder %s24, 0
    %p45 = por %p43, %p44
    %p46 = scmp.ne.s32.totalorder %s32, %s33
    %p47 = scmp.eq.s32.totalorder %s25, 1
    %p48 = por %p46, %p47
    %p50 = scmp.ne.s32.totalorder %s33, %s49
    %p51 = scmp.eq.s32.totalorder %s25, 0
    %p52 = por %p50, %p51
    %s54 = sadd.s32 %s53, 1
    %p57 = scmp.eq.s32.totalorder %s19, 1
    %p58 = scmp.ne.s32.totalorder %s53, %s55
    %p59 = scmp.eq.s32.totalorder %s19, 0
    %p60 = por %p58, %p59
    %p61 = scmp.ne.s32.totalorder %s53, %s55
    %p62 = scmp.eq.s32.totalorder %s24, 1
    %p63 = por %p61, %p62
    %p64 = scmp.ne.s32.totalorder %s55, %s56
    %p65 = scmp.eq.s32.totalorder %s24, 0
    %p66 = por %p64, %p65
    %p67 = scmp.ne.s32.totalorder %s55, %s56
    %p68 = scmp.eq.s32.totalorder %s25, 1
    %p69 = por %p67, %p68
    %p71 = scmp.ne.s32.totalorder %s56, %s70
    %p72 = scmp.eq.s32.totalorder %s25, 0
    %p73 = por %p71, %p72
    %s75 = sadd.s32 %s74, 1
    %p78 = scmp.eq.s32.totalorder %s19, 1
    %p79 = scmp.ne.s32.totalorder %s74, %s76
    %p80 = scmp.eq.s32.totalorder %s19, 0
    %p81 = por %p79, %p80
    %p82 = scmp.ne.s32.totalorder %s74, %s76
    %p83 = scmp.eq.s32.totalorder %s24, 1
    %p84 = por %p82, %p83
    %p85 = scmp.ne.s32.totalorder %s76, %s77
    %p86 = scmp.eq.s32.totalorder %s24, 0
    %p87 = por %p85, %p86
    %p88 = scmp.ne.s32.totalorder %s76, %s77
    %p89 = scmp.eq.s32.totalorder %s25, 1
    %p90 = por %p88, %p89
    %p92 = scmp.ne.s32.totalorder %s77, %s91
    %p93 = scmp.eq.s32.totalorder %s25, 0
    %p94 = por %p92, %p93
    %s96 = sadd.s32 %s95, 1
    %p99 = scmp.eq.s32.totalorder %s19, 1
    %p100 = scmp.ne.s32.totalorder %s95, %s97
    %p101 = scmp.eq.s32.totalorder %s19, 0
    %p102 = por %p100, %p101
    %p103 = scmp.ne.s32.totalorder %s95, %s97
    %p104 = scmp.eq.s32.totalorder %s24, 1
    %p105 = por %p103, %p104
    %p106 = scmp.ne.s32.totalorder %s97, %s98
    %p107 = scmp.eq.s32.totalorder %s24, 0
    %p108 = por %p106, %p107
    %p109 = scmp.ne.s32.totalorder %s97, %s98
    %p110 = scmp.eq.s32.totalorder %s25, 1
    %p111 = por %p109, %p110
    %p113 = scmp.ne.s32.totalorder %s98, %s112
    %p114 = scmp.eq.s32.totalorder %s25, 0
    %p115 = por %p113, %p114
    %s117 = sadd.s32 %s116, 1
    %p120 = scmp.eq.s32.totalorder %s19, 1
    %p121 = scmp.ne.s32.totalorder %s116, %s118
    %p122 = scmp.eq.s32.totalorder %s19, 0
    %p123 = por %p121, %p122
    %p124 = scmp.ne.s32.totalorder %s116, %s118
    %p125 = scmp.eq.s32.totalorder %s24, 1
    %p126 = por %p124, %p125
    %p127 = scmp.ne.s32.totalorder %s118, %s119
    %p128 = scmp.eq.s32.totalorder %s24, 0
    %p129 = por %p127, %p128
    %p130 = scmp.ne.s32.totalorder %s118, %s119
    %p131 = scmp.eq.s32.totalorder %s25, 1
    %p132 = por %p130, %p131
    %p134 = scmp.ne.s32.totalorder %s119, %s133
    %p135 = scmp.eq.s32.totalorder %s25, 0
    %p136 = por %p134, %p135
    %s138 = sadd.s32 %s137, 1
    %p141 = scmp.eq.s32.totalorder %s19, 1
    %p142 = scmp.ne.s32.totalorder %s137, %s139
    %p143 = scmp.eq.s32.totalorder %s19, 0
    %p144 = por %p142, %p143
    %p145 = scmp.ne.s32.totalorder %s137, %s139
    %p146 = scmp.eq.s32.totalorder %s24, 1
    %p147 = por %p145, %p146
    %p148 = scmp.ne.s32.totalorder %s139, %s140
    %p149 = scmp.eq.s32.totalorder %s24, 0
    %p150 = por %p148, %p149
    %p151 = scmp.ne.s32.totalorder %s139, %s140
    %p152 = scmp.eq.s32.totalorder %s25, 1
    %p153 = por %p151, %p152
    %p155 = scmp.ne.s32.totalorder %s140, %s154
    %p156 = scmp.eq.s32.totalorder %s25, 0
    %p157 = por %p155, %p156
    %s159 = sadd.s32 %s158, 1
    %p162 = scmp.eq.s32.totalorder %s19, 1
    %p163 = scmp.ne.s32.totalorder %s158, %s160
    %p164 = scmp.eq.s32.totalorder %s19, 0
    %p165 = por %p163, %p164
    %p166 = scmp.ne.s32.totalorder %s158, %s160
    %p167 = scmp.eq.s32.totalorder %s24, 1
    %p168 = por %p166, %p167
    %p169 = scmp.ne.s32.totalorder %s160, %s161
    %p170 = scmp.eq.s32.totalorder %s24, 0
    %p171 = por %p169, %p170
    %p172 = scmp.ne.s32.totalorder %s160, %s161
    %p173 = scmp.eq.s32.totalorder %s25, 1
    %p174 = por %p172, %p173
    %p176 = scmp.ne.s32.totalorder %s161, %s175
    %p177 = scmp.eq.s32.totalorder %s25, 0
    %p178 = por %p176, %p177
    %s180 = sadd.s32 %s179, 1
    %p183 = scmp.eq.s32.totalorder %s19, 1
    %p184 = scmp.ne.s32.totalorder %s179, %s181
    %p185 = scmp.eq.s32.totalorder %s19, 0
    %p186 = por %p184, %p185
    %p187 = scmp.ne.s32.totalorder %s179, %s181
    %p188 = scmp.eq.s32.totalorder %s24, 1
    %p189 = por %p187, %p188
    %p190 = scmp.ne.s32.totalorder %s181, %s182
    %p191 = scmp.eq.s32.totalorder %s24, 0
    %p192 = por %p190, %p191
    %p193 = scmp.ne.s32.totalorder %s181, %s182
    %p194 = scmp.eq.s32.totalorder %s25, 1
    %p195 = por %p193, %p194
    %p197 = scmp.ne.s32.totalorder %s182, %s196
    %p198 = scmp.eq.s32.totalorder %s25, 0
    %p199 = por %p197, %p198
    %s201 = sadd.s32 %s200, 1
    %p204 = scmp.eq.s32.totalorder %s19, 1
    %p205 = scmp.ne.s32.totalorder %s200, %s202
    %p206 = scmp.eq.s32.totalorder %s19, 0
    %p207 = por %p205, %p206
    %p208 = scmp.ne.s32.totalorder %s200, %s202
    %p209 = scmp.eq.s32.totalorder %s24, 1
    %p210 = por %p208, %p209
    %p211 = scmp.ne.s32.totalorder %s202, %s203
    %p212 = scmp.eq.s32.totalorder %s24, 0
    %p213 = por %p211, %p212
    %p214 = scmp.ne.s32.totalorder %s202, %s203
    %p215 = scmp.eq.s32.totalorder %s25, 1
    %p216 = por %p214, %p215
    %p218 = scmp.ne.s32.totalorder %s203, %s217
    %p219 = scmp.eq.s32.totalorder %s25, 0
    %p220 = por %p218, %p219
    %s222 = sadd.s32 %s221, 1
    %p225 = scmp.eq.s32.totalorder %s19, 1
    %p226 = scmp.ne.s32.totalorder %s221, %s223
    %p227 = scmp.eq.s32.totalorder %s19, 0
    %p228 = por %p226, %p227
    %p229 = scmp.ne.s32.totalorder %s221, %s223
    %p230 = scmp.eq.s32.totalorder %s24, 1
    %p231 = por %p229, %p230
    %p232 = scmp.ne.s32.totalorder %s223, %s224
    %p233 = scmp.eq.s32.totalorder %s24, 0
    %p234 = por %p232, %p233
    %p235 = scmp.ne.s32.totalorder %s223, %s224
    %p236 = scmp.eq.s32.totalorder %s25, 1
    %p237 = por %p235, %p236
    %p239 = scmp.ne.s32.totalorder %s224, %s238
    %p240 = scmp.eq.s32.totalorder %s25, 0
    %p241 = por %p239, %p240
    %s243 = sadd.s32 %s242, 1
    %p246 = scmp.eq.s32.totalorder %s19, 1
    %p247 = scmp.ne.s32.totalorder %s242, %s244
    %p248 = scmp.eq.s32.totalorder %s19, 0
    %p249 = por %p247, %p248
    %p250 = scmp.ne.s32.totalorder %s242, %s244
    %p251 = scmp.eq.s32.totalorder %s24, 1
    %p252 = por %p250, %p251
    %p253 = scmp.ne.s32.totalorder %s244, %s245
    %p254 = scmp.eq.s32.totalorder %s24, 0
    %p255 = por %p253, %p254
    %p256 = scmp.ne.s32.totalorder %s244, %s245
    %p257 = scmp.eq.s32.totalorder %s25, 1
    %p258 = por %p256, %p257
    %p260 = scmp.ne.s32.totalorder %s245, %s259
    %p261 = scmp.eq.s32.totalorder %s25, 0
    %p262 = por %p260, %p261
    %s264 = sadd.s32 %s263, 1
    %p267 = scmp.eq.s32.totalorder %s19, 1
    %p268 = scmp.ne.s32.totalorder %s263, %s265
    %p269 = scmp.eq.s32.totalorder %s19, 0
    %p270 = por %p268, %p269
    %p271 = scmp.ne.s32.totalorder %s263, %s265
    %p272 = scmp.eq.s32.totalorder %s24, 1
    %p273 = por %p271, %p272
    %p274 = scmp.ne.s32.totalorder %s265, %s266
    %p275 = scmp.eq.s32.totalorder %s24, 0
    %p276 = por %p274, %p275
    %p277 = scmp.ne.s32.totalorder %s265, %s266
    %p278 = scmp.eq.s32.totalorder %s25, 1
    %p279 = por %p277, %p278
    %p281 = scmp.ne.s32.totalorder %s266, %s280
    %p282 = scmp.eq.s32.totalorder %s25, 0
    %p283 = por %p281, %p282
    %s285 = sadd.s32 %s284, 1
    %p288 = scmp.eq.s32.totalorder %s19, 1
    %p289 = scmp.ne.s32.totalorder %s284, %s286
    %p290 = scmp.eq.s32.totalorder %s19, 0
    %p291 = por %p289, %p290
    %p292 = scmp.ne.s32.totalorder %s284, %s286
    %p293 = scmp.eq.s32.totalorder %s24, 1
    %p294 = por %p292, %p293
    %p295 = scmp.ne.s32.totalorder %s286, %s287
    %p296 = scmp.eq.s32.totalorder %s24, 0
    %p297 = por %p295, %p296
    %p298 = scmp.ne.s32.totalorder %s286, %s287
    %p299 = scmp.eq.s32.totalorder %s25, 1
    %p300 = por %p298, %p299
    %p302 = scmp.ne.s32.totalorder %s287, %s301
    %p303 = scmp.eq.s32.totalorder %s25, 0
    %p304 = por %p302, %p303
    %s305 = ssub.s32 %s19, %s26
    %p306 = scmp.eq.s32.totalorder %s305, 0
    %s308 = sadd.s32 %s307, 1
    %s309 = scalar_select %p306, %s307, %s308
    %p312 = pneg %p306
    %p313 = scmp.eq.s32.totalorder %s19, 1
    %p314 = por %p312, %p313
    %p315 = scmp.ne.s32.totalorder %s307, %s310
    %p316 = scmp.eq.s32.totalorder %s19, 0
    %p317 = por %p315, %p316
    %p318 = scmp.ne.s32.totalorder %s307, %s310
    %p319 = scmp.eq.s32.totalorder %s24, 1
    %p320 = por %p318, %p319
    %p321 = scmp.ne.s32.totalorder %s310, %s311
    %p322 = scmp.eq.s32.totalorder %s24, 0
    %p323 = por %p321, %p322
    %p324 = scmp.ne.s32.totalorder %s310, %s311
    %p325 = scmp.eq.s32.totalorder %s25, 1
    %p326 = por %p324, %p325
    %p328 = scmp.ne.s32.totalorder %s311, %s327
    %p329 = scmp.eq.s32.totalorder %s25, 0
    %p330 = por %p328, %p329
    %p331 = scmp.le.s32.totalorder 1, %s19
    %p332 = scmp.lt.s32.totalorder %s19, 3
    %p333 = pnand %p331, %p332
    %p334 = pneg %p333
    // Predicated region
    $region9: #{mamba_tpp_forward.1} parent=5 // pred_check
      _
    $region10: #{mamba_tpp_forward.1} parent=5 // pred_check_branch
      %336 = sbr.rel (%p333) target = $region12
    $region11: #{mamba_tpp_forward.1} parent=5 // pred_region
      %s337 = ssub.s32 %s19, 1
      // Predicated region
      $region13: #{mamba_tpp_forward.1} parent=11 // pred_check
        %p338 = pneg %p66
      $region14: #{mamba_tpp_forward.1} parent=11 // pred_check_branch
        %340 = sbr.rel (%p338) target = $region16
      $region15: #{mamba_tpp_forward.1} parent=11 // pred_region
        _
      $region16: #{mamba_tpp_forward.1} parent=11 // pred_fallthru
        _
      // Predicated region
      $region17: #{mamba_tpp_forward.1} parent=11 // pred_check
        %p341 = pneg %p87
      $region18: #{mamba_tpp_forward.1} parent=11 // pred_check_branch
        %343 = sbr.rel (%p341) target = $region20
      $region19: #{mamba_tpp_forward.1} parent=11 // pred_region
        _
      $region20: #{mamba_tpp_forward.1} parent=11 // pred_fallthru
        _
      // Predicated region
      $region21: #{mamba_tpp_forward.1} parent=11 // pred_check
        %p344 = pneg %p108
      $region22: #{mamba_tpp_forward.1} parent=11 // pred_check_branch
        %346 = sbr.rel (%p344) target = $region24
      $region23: #{mamba_tpp_forward.1} parent=11 // pred_region
        _
      $region24: #{mamba_tpp_forward.1} parent=11 // pred_fallthru
        _
      // Predicated region
      $region25: #{mamba_tpp_forward.1} parent=11 // pred_check
        %p347 = pneg %p129
      $region26: #{mamba_tpp_forward.1} parent=11 // pred_check_branch
        %349 = sbr.rel (%p347) target = $region28
      $region27: #{mamba_tpp_forward.1} parent=11 // pred_region
        _
      $region28: #{mamba_tpp_forward.1} parent=11 // pred_fallthru
        _
      // Predicated region
      $region29: #{mamba_tpp_forward.1} parent=11 // pred_check
        %p350 = pneg %p150
      $region30: #{mamba_tpp_forward.1} parent=11 // pred_check_branch
        %352 = sbr.rel (%p350) target = $region32
      $region31: #{mamba_tpp_forward.1} parent=11 // pred_region
        _
      $region32: #{mamba_tpp_forward.1} parent=11 // pred_fallthru
        _
      // Predicated region
      $region33: #{mamba_tpp_forward.1} parent=11 // pred_check
        %p353 = pneg %p171
      $region34: #{mamba_tpp_forward.1} parent=11 // pred_check_branch
        %355 = sbr.rel (%p353) target = $region36
      $region35: #{mamba_tpp_forward.1} parent=11 // pred_region
        _
      $region36: #{mamba_tpp_forward.1} parent=11 // pred_fallthru
        _
      // Predicated region
      $region37: #{mamba_tpp_forward.1} parent=11 // pred_check
        %p356 = pneg %p192
      $region38: #{mamba_tpp_forward.1} parent=11 // pred_check_branch
        %358 = sbr.rel (%p356) target = $region40
      $region39: #{mamba_tpp_forward.1} parent=11 // pred_region
        _
      $region40: #{mamba_tpp_forward.1} parent=11 // pred_fallthru
        _
      // Predicated region
      $region41: #{mamba_tpp_forward.1} parent=11 // pred_check
        %p359 = pneg %p213
      $region42: #{mamba_tpp_forward.1} parent=11 // pred_check_branch
        %361 = sbr.rel (%p359) target = $region44
      $region43: #{mamba_tpp_forward.1} parent=11 // pred_region
        _
      $region44: #{mamba_tpp_forward.1} parent=11 // pred_fallthru
        _
      // Predicated region
      $region45: #{mamba_tpp_forward.1} parent=11 // pred_check
        %p362 = pneg %p234
      $region46: #{mamba_tpp_forward.1} parent=11 // pred_check_branch
        %364 = sbr.rel (%p362) target = $region48
      $region47: #{mamba_tpp_forward.1} parent=11 // pred_region
        _
      $region48: #{mamba_tpp_forward.1} parent=11 // pred_fallthru
        _
      // Predicated region
      $region49: #{mamba_tpp_forward.1} parent=11 // pred_check
        %p365 = pneg %p255
      $region50: #{mamba_tpp_forward.1} parent=11 // pred_check_branch
        %367 = sbr.rel (%p365) target = $region52
      $region51: #{mamba_tpp_forward.1} parent=11 // pred_region
        _
      $region52: #{mamba_tpp_forward.1} parent=11 // pred_fallthru
        _
      // Predicated region
      $region53: #{mamba_tpp_forward.1} parent=11 // pred_check
        %p368 = pneg %p276
      $region54: #{mamba_tpp_forward.1} parent=11 // pred_check_branch
        %370 = sbr.rel (%p368) target = $region56
      $region55: #{mamba_tpp_forward.1} parent=11 // pred_region
        _
      $region56: #{mamba_tpp_forward.1} parent=11 // pred_fallthru
        _
      // Predicated region
      $region57: #{mamba_tpp_forward.1} parent=11 // pred_check
        %p371 = pneg %p297
      $region58: #{mamba_tpp_forward.1} parent=11 // pred_check_branch
        %373 = sbr.rel (%p371) target = $region60
      $region59: #{mamba_tpp_forward.1} parent=11 // pred_region
        _
      $region60: #{mamba_tpp_forward.1} parent=11 // pred_fallthru
        _
    $region12: #{mamba_tpp_forward.1} parent=5 // pred_fallthru
      _
    %p374 = scmp.lt.s32.totalorder %s19, 2
    // Predicated region
    $region61: #{mamba_tpp_forward.1} parent=5 // pred_check
      %p375 = pneg %p374
    $region62: #{mamba_tpp_forward.1} parent=5 // pred_check_branch
      %377 = sbr.rel (%p375) target = $region64
    $region63: #{mamba_tpp_forward.1} parent=5 // pred_region
      // Predicated region
      $region65: #{mamba_tpp_forward.1} parent=63 // pred_check
        %p378 = pneg %p39
      $region66: #{mamba_tpp_forward.1} parent=63 // pred_check_branch
        %380 = sbr.rel (%p378) target = $region68
      $region67: #{mamba_tpp_forward.1} parent=63 // pred_region
        %p381 = scmp.lt.s32.totalorder %s19, 1
        %s382 = scalar_select %p381, %s19, 1
        %s383 = smul.addr %s382, 8
        %s384 = scalar_lea.vmem %s0, %s383
      $region68: #{mamba_tpp_forward.1} parent=63 // pred_fallthru
        _
    $region64: #{mamba_tpp_forward.1} parent=5 // pred_fallthru
      _
    %p385 = scmp.le.s32.totalorder 1, %s19
    %p386 = scmp.lt.s32.totalorder %s19, 3
    %p387 = pnand %p385, %p386
    %p388 = pneg %p387
    // Predicated region
    $region69: #{mamba_tpp_forward.1} parent=5 // pred_check
      _
    $region70: #{mamba_tpp_forward.1} parent=5 // pred_check_branch
      %390 = sbr.rel (%p387) target = $region72
    $region71: #{mamba_tpp_forward.1} parent=5 // pred_region
      %s391 = ssub.s32 %s19, 1
      %p392 = scmp.lt.s32.totalorder %s24, 1
      %s393 = scalar_select %p392, %s24, 1
      %s394 = smul.addr %s393, 8
      %s395 = scalar_lea.vmem %s0, %s394
      %p396 = pneg %p45
      %p397 = pneg %p42
      %p398 = pneg %p66
      %p399 = pneg %p63
      %p400 = pneg %p87
      %p401 = pneg %p84
      %p402 = pneg %p108
      %p403 = pneg %p105
      %p404 = pneg %p129
      %p405 = pneg %p126
      %p406 = pneg %p150
      %p407 = pneg %p147
      %p408 = pneg %p171
      %p409 = pneg %p168
      %p410 = pneg %p192
      %p411 = pneg %p189
      %p412 = pneg %p213
      %p413 = pneg %p210
      %p414 = pneg %p234
      %p415 = pneg %p231
      %p416 = pneg %p255
      %p417 = pneg %p252
      %p418 = pneg %p276
      %p419 = pneg %p273
      %p420 = pneg %p297
      %p421 = pneg %p294
      %p422 = pneg %p323
      %p423 = pneg %p320
      %p424 = scmp.lt.s32.totalorder %s24, 1
      %s425 = scalar_select %p424, %s24, 1
      %s426 = smul.addr %s425, 8
      %s427 = scalar_lea.vmem %s13, %s426
      %p428 = scmp.lt.s32.totalorder %s24, 1
      %s429 = scalar_select %p428, %s24, 1
      %s430 = smul.addr %s429, 8
      %s431 = scalar_lea.vmem %s0, %s430
      %p432 = scmp.lt.s32.totalorder %s24, 1
      %s433 = scalar_select %p432, %s24, 1
      %s434 = smul.addr %s433, 8
      %s435 = scalar_lea.vmem %s13, %s434
      %v436 = vld [vmem:[%s431] sm:$0xff]
      %v437 = vlaneseq
      %v438 = vand.u32 %v437, 127
      %439 = vset.pattern.permute.xlu0 0
      %440 = vperm.xlu0 %439, %v436
      %v441 = vpop.permute.xlu0 %440
      %vm442 = vcmp.eq.s32.totalorder %v438, %v441
      %v443 = vsel %vm442, 1, 0
      %v444 = vcvt.s32.f32 %v443
      %v445 = vld [vmem:[%s1] sm:$0xff]
      %v446 = vld [vmem:[%s1 + $0x8] sm:$0xff]
      %v447 = vld [vmem:[%s1 + $0x10] sm:$0xff]
      %v448 = vld [vmem:[%s1 + $0x18] sm:$0xff]
      %v449 = vld [vmem:[%s1 + $0x20] sm:$0xff]
      %v450 = vld [vmem:[%s1 + $0x28] sm:$0xff]
      %v451 = vld [vmem:[%s1 + $0x30] sm:$0xff]
      %v452 = vld [vmem:[%s1 + $0x38] sm:$0xff]
      %v453 = vld [vmem:[%s1 + $0x40] sm:$0xff]
      %v454 = vld [vmem:[%s1 + $0x48] sm:$0xff]
      %v455 = vld [vmem:[%s1 + $0x50] sm:$0xff]
      %v456 = vld [vmem:[%s1 + $0x58] sm:$0xff]
      %v457 = vld [vmem:[%s1 + $0x60] sm:$0xff]
      %v458 = vld [vmem:[%s1 + $0x68] sm:$0xff]
      %v459 = vld [vmem:[%s1 + $0x70] sm:$0xff]
      %v460 = vld [vmem:[%s1 + $0x78] sm:$0xff]
      %461 = vmatprep.subr.mxu0 0.0
      %462 = vmatpush1.msra.mxu0 %v445
      %463 = vmatprep.subr.mxu0 0.0
      %464 = vmatpush1.msra.mxu0 %v446
      %465 = vmatprep.subr.mxu0 0.0
      %466 = vmatpush1.msra.mxu0 %v447
      %467 = vmatprep.subr.mxu0 0.0
      %468 = vmatpush1.msra.mxu0 %v448
      %469 = vmatprep.subr.mxu0 0.0
      %470 = vmatpush1.msra.mxu0 %v449
      %471 = vmatprep.subr.mxu0 0.0
      %472 = vmatpush1.msra.mxu0 %v450
      %473 = vmatprep.subr.mxu0 0.0
      %474 = vmatpush1.msra.mxu0 %v451
      %475 = vmatprep.subr.mxu0 0.0
      %476 = vmatpush1.msra.mxu0 %v452
      %477 = vmatprep.subr.mxu0 0.0
      %478 = vmatpush1.msra.mxu0 %v453
      %479 = vmatprep.subr.mxu0 0.0
      %480 = vmatpush1.msra.mxu0 %v454
      %481 = vmatprep.subr.mxu0 0.0
      %482 = vmatpush1.msra.mxu0 %v455
      %483 = vmatprep.subr.mxu0 0.0
      %484 = vmatpush1.msra.mxu0 %v456
      %485 = vmatprep.subr.mxu0 0.0
      %486 = vmatpush1.msra.mxu0 %v457
      %487 = vmatprep.subr.mxu0 0.0
      %488 = vmatpush1.msra.mxu0 %v458
      %489 = vmatprep.subr.mxu0 0.0
      %490 = vmatpush1.msra.mxu0 %v459
      %491 = vmatprep.subr.mxu0 0.0
      %492 = vmatpush1.msra.mxu0 %v460
      %493 = vmatprep.subr.mxu0 0.0
      %494 = vmatpush1.msra.mxu0 0.0
      %495 = vmatprep.subr.mxu0 0.0
      %496 = vmatpush1.msra.mxu0 0.0
      %497 = vmatprep.subr.mxu0 0.0
      %498 = vmatpush1.msra.mxu0 0.0
      %499 = vmatprep.subr.mxu0 0.0
      %500 = vmatpush1.msra.mxu0 0.0
      %501 = vmatprep.subr.mxu0 0.0
      %502 = vmatpush1.msra.mxu0 0.0
      %503 = vmatprep.subr.mxu0 0.0
      %504 = vmatpush1.msra.mxu0 0.0
      %505 = vmatprep.subr.mxu0 0.0
      %506 = vmatpush1.msra.mxu0 0.0
      %507 = vmatprep.subr.mxu0 0.0
      %508 = vmatpush1.msra.mxu0 0.0
      %509 = vmatprep.subr.mxu0 0.0
      %510 = vmatpush1.msra.mxu0 0.0
      %511 = vmatprep.subr.mxu0 0.0
      %512 = vmatpush1.msra.mxu0 0.0
      %513 = vmatprep.subr.mxu0 0.0
      %514 = vmatpush1.msra.mxu0 0.0
      %515 = vmatprep.subr.mxu0 0.0
      %516 = vmatpush1.msra.mxu0 0.0
      %517 = vmatprep.subr.mxu0 0.0
      %518 = vmatpush1.msra.mxu0 0.0
      %519 = vmatprep.subr.mxu0 0.0
      %520 = vmatpush1.msra.mxu0 0.0
      %521 = vmatprep.subr.mxu0 0.0
      %522 = vmatpush1.msra.mxu0 0.0
      %523 = vmatprep.subr.mxu0 0.0
      %524 = vmatpush1.msra.mxu0 0.0
      %525 = vmatprep.mubr.f32.mxu0 0.0
      %526 = vmatmul.mubr.f32.gmra.mrb[0].mxu0 %v444
      %v527 = vpop.f32.mrb[0].mxu0
      %v528 = vadd.f32 0.0, %v527
      %v529 = vpop.f32.mrb[0].mxu0
      %530 = vdwg.mxu0
      %v531 = vtanh.pop %v528
      %v532 = vlaneseq
      %v533 = vshrl.u32 %v532, 7
      %vm534 = vcmp.ge.s32.totalorder %v533, 1
      %vm535 = vcmp.ge.s32.totalorder %v533, 2
      %vm536 = vcmp.ge.s32.totalorder %v533, 3
      %v537 = vadd.f32 %v531, 0.0
      %v538 = vld [vmem:[%s2] sm:$0x1]
      %v539 = vmul.f32 %v537, %v537
      %vm540 = vcmask 261120
      %v541 = vsel %vm540, %v539, 0.0
      %542 = vadd.xlane.f32.xlu0 %v541
      %v543 = vpop.xlane.xlu0 %542
      %v544 = vrcp.pop 32.0
      %v545 = vmul.f32 %v543, %v544
      %v546 = vadd.f32 %v545, 1e-05
      %v547 = vrsqrt.pop %v546
      %v548 = vmul.f32 %v537, %v547
      %v550 = vlaneseq
      %v551 = vshrl.u32 %v550, 7
      %v552 = vsub.s32 0, %v551
      %v553 = vrot.slane %v538, %v552
      %v555 = vmul.f32 %v548, %v553
      %v556 = vld [vmem:[%s3] sm:$0xff]
      %v557 = vld [vmem:[%s3 + $0x8] sm:$0xff]
      %v558 = vld [vmem:[%s3 + $0x10] sm:$0xff]
      %v559 = vld [vmem:[%s3 + $0x18] sm:$0xff]
      %v561 = vsel %vm540, %v555, 0
      %563 = vmatprep.subr.mxu0 0.0
      %564 = vmatpush1.msra.mxu0 %v556
      %565 = vmatprep.subr.mxu0 0.0
      %566 = vmatpush1.msra.mxu0 %v557
      %567 = vmatprep.subr.mxu0 0.0
      %568 = vmatpush1.msra.mxu0 %v558
      %569 = vmatprep.subr.mxu0 0.0
      %570 = vmatpush1.msra.mxu0 %v559
      %571 = vmatprep.subr.mxu0 0.0
      %572 = vmatpush1.msra.mxu0 0.0
      %573 = vmatprep.subr.mxu0 0.0
      %574 = vmatpush1.msra.mxu0 0.0
      %575 = vmatprep.subr.mxu0 0.0
      %576 = vmatpush1.msra.mxu0 0.0
      %577 = vmatprep.subr.mxu0 0.0
      %578 = vmatpush1.msra.mxu0 0.0
      %579 = vmatprep.subr.mxu0 0.0
      %580 = vmatpush1.msra.mxu0 0.0
      %581 = vmatprep.subr.mxu0 0.0
      %582 = vmatpush1.msra.mxu0 0.0
      %583 = vmatprep.subr.mxu0 0.0
      %584 = vmatpush1.msra.mxu0 0.0
      %585 = vmatprep.subr.mxu0 0.0
      %586 = vmatpush1.msra.mxu0 0.0
      %587 = vmatprep.subr.mxu0 0.0
      %588 = vmatpush1.msra.mxu0 0.0
      %589 = vmatprep.subr.mxu0 0.0
      %590 = vmatpush1.msra.mxu0 0.0
      %591 = vmatprep.subr.mxu0 0.0
      %592 = vmatpush1.msra.mxu0 0.0
      %593 = vmatprep.subr.mxu0 0.0
      %594 = vmatpush1.msra.mxu0 0.0
      %595 = vmatprep.subr.mxu0 0.0
      %596 = vmatpush1.msra.mxu0 0.0
      %597 = vmatprep.subr.mxu0 0.0
      %598 = vmatpush1.msra.mxu0 0.0
      %599 = vmatprep.subr.mxu0 0.0
      %600 = vmatpush1.msra.mxu0 0.0
      %601 = vmatprep.subr.mxu0 0.0
      %602 = vmatpush1.msra.mxu0 0.0
      %603 = vmatprep.subr.mxu0 0.0
      %604 = vmatpush1.msra.mxu0 0.0
      %605 = vmatprep.subr.mxu0 0.0
      %606 = vmatpush1.msra.mxu0 0.0
      %607 = vmatprep.subr.mxu0 0.0
      %608 = vmatpush1.msra.mxu0 0.0
      %609 = vmatprep.subr.mxu0 0.0
      %610 = vmatpush1.msra.mxu0 0.0
      %611 = vmatprep.subr.mxu0 0.0
      %612 = vmatpush1.msra.mxu0 0.0
      %613 = vmatprep.subr.mxu0 0.0
      %614 = vmatpush1.msra.mxu0 0.0
      %615 = vmatprep.subr.mxu0 0.0
      %616 = vmatpush1.msra.mxu0 0.0
      %617 = vmatprep.subr.mxu0 0.0
      %618 = vmatpush1.msra.mxu0 0.0
      %619 = vmatprep.subr.mxu0 0.0
      %620 = vmatpush1.msra.mxu0 0.0
      %621 = vmatprep.subr.mxu0 0.0
      %622 = vmatpush1.msra.mxu0 0.0
      %623 = vmatprep.subr.mxu0 0.0
      %624 = vmatpush1.msra.mxu0 0.0
      %625 = vmatprep.subr.mxu0 0.0
      %626 = vmatpush1.msra.mxu0 0.0
      %627 = vmatprep.mubr.f32.mxu0 0.0
      %628 = vmatmul.mubr.f32.gmra.mrb[0].mxu0 %v561
      %v629 = vpop.f32.mrb[0].mxu0
      %v630 = vadd.f32 0.0, %v629
      %v631 = vpop.f32.mrb[0].mxu0
      %632 = vdwg.mxu0
      %v633 = vld [vmem:[%s4] sm:$0xf]
      %v634 = vld [vmem:[%s5] sm:$0x1]
      %v636 = vlaneseq
      %v637 = vshrl.u32 %v636, 7
      %v638 = vsub.s32 0, %v637
      %v639 = vrot.slane %v634, %v638
      %v641 = vrot.slane %v630, 5
      %v642 = vsel %vm536, 1, 0
      %vm643 = vcmp.eq.s32.totalorder %v642, 1
      %v644 = vsel %vm643, %v641, 0.0
      %v645 = vlaneseq
      %v646 = vshrl.u32 %v645, 7
      %v647 = vsub.s32 0, %v646
      %v648 = vrot.slane %v633, %v647
      %v649 = vmul.f32 %v644, %v648
      %v650 = vadd.f32 %v639, %v649
      %v651 = vrot.slane %v630, 6
      %v652 = vsel %vm535, 1, 0
      %vm653 = vcmp.eq.s32.totalorder %v652, 1
      %v654 = vsel %vm653, %v651, 0.0
      %v655 = vlaneseq
      %v656 = vshrl.u32 %v655, 7
      %v657 = vsub.s32 1, %v656
      %v658 = vrot.slane %v633, %v657
      %v659 = vmul.f32 %v654, %v658
      %v660 = vadd.f32 %v650, %v659
      %v661 = vrot.slane %v630, 7
      %v662 = vsel %vm534, 1, 0
      %vm663 = vcmp.eq.s32.totalorder %v662, 1
      %v664 = vsel %vm663, %v661, 0.0
      %v665 = vlaneseq
      %v666 = vshrl.u32 %v665, 7
      %v667 = vsub.s32 2, %v666
      %v668 = vrot.slane %v633, %v667
      %v669 = vmul.f32 %v664, %v668
      %v670 = vadd.f32 %v660, %v669
      %v671 = vlaneseq
      %v672 = vshrl.u32 %v671, 7
      %v673 = vsub.s32 3, %v672
      %v674 = vrot.slane %v633, %v673
      %v675 = vmul.f32 %v630, %v674
      %v676 = vadd.f32 %v670, %v675
      %v677 = vxor.u32 %v676, 2147483648
      %v678 = vmul.f32 %v677, 1.442695
      %v679 = vpow.pop %v678
      %v680 = vadd.f32 %v679, 1.0
      %v681 = vrcp.pop %v680
      %v682 = vmul.f32 1.0, %v681
      %v683 = vmul.f32 %v676, %v682
      %v684 = vld [vmem:[%s6] sm:$0xff]
      %v685 = vld [vmem:[%s6 + $0x8] sm:$0xff]
      %v686 = vld [vmem:[%s6 + $0x10] sm:$0xff]
      %v687 = vld [vmem:[%s6 + $0x18] sm:$0xff]
      %v688 = vld [vmem:[%s6 + $0x20] sm:$0xff]
      %v689 = vld [vmem:[%s6 + $0x28] sm:$0xff]
      %v690 = vld [vmem:[%s6 + $0x30] sm:$0xff]
      %v691 = vld [vmem:[%s6 + $0x38] sm:$0xff]
      %vm692 = vcmask 523264
      %v694 = vsel %vm692, %v683, 0
      %696 = vmatprep.subr.mxu0 0.0
      %697 = vmatpush1.msra.mxu0 %v684
      %698 = vmatprep.subr.mxu0 0.0
      %699 = vmatpush1.msra.mxu0 %v685
      %700 = vmatprep.subr.mxu0 0.0
      %701 = vmatpush1.msra.mxu0 %v686
      %702 = vmatprep.subr.mxu0 0.0
      %703 = vmatpush1.msra.mxu0 %v687
      %704 = vmatprep.subr.mxu0 0.0
      %705 = vmatpush1.msra.mxu0 %v688
      %706 = vmatprep.subr.mxu0 0.0
      %707 = vmatpush1.msra.mxu0 %v689
      %708 = vmatprep.subr.mxu0 0.0
      %709 = vmatpush1.msra.mxu0 %v690
      %710 = vmatprep.subr.mxu0 0.0
      %711 = vmatpush1.msra.mxu0 %v691
      %712 = vmatprep.subr.mxu0 0.0
      %713 = vmatpush1.msra.mxu0 0.0
      %714 = vmatprep.subr.mxu0 0.0
      %715 = vmatpush1.msra.mxu0 0.0
      %716 = vmatprep.subr.mxu0 0.0
      %717 = vmatpush1.msra.mxu0 0.0
      %718 = vmatprep.subr.mxu0 0.0
      %719 = vmatpush1.msra.mxu0 0.0
      %720 = vmatprep.subr.mxu0 0.0
      %721 = vmatpush1.msra.mxu0 0.0
      %722 = vmatprep.subr.mxu0 0.0
      %723 = vmatpush1.msra.mxu0 0.0
      %724 = vmatprep.subr.mxu0 0.0
      %725 = vmatpush1.msra.mxu0 0.0
      %726 = vmatprep.subr.mxu0 0.0
      %727 = vmatpush1.msra.mxu0 0.0
      %728 = vmatprep.subr.mxu0 0.0
      %729 = vmatpush1.msra.mxu0 0.0
      %730 = vmatprep.subr.mxu0 0.0
      %731 = vmatpush1.msra.mxu0 0.0
      %732 = vmatprep.subr.mxu0 0.0
      %733 = vmatpush1.msra.mxu0 0.0
      %734 = vmatprep.subr.mxu0 0.0
      %735 = vmatpush1.msra.mxu0 0.0
      %736 = vmatprep.subr.mxu0 0.0
      %737 = vmatpush1.msra.mxu0 0.0
      %738 = vmatprep.subr.mxu0 0.0
      %739 = vmatpush1.msra.mxu0 0.0
      %740 = vmatprep.subr.mxu0 0.0
      %741 = vmatpush1.msra.mxu0 0.0
      %742 = vmatprep.subr.mxu0 0.0
      %743 = vmatpush1.msra.mxu0 0.0
      %744 = vmatprep.subr.mxu0 0.0
      %745 = vmatpush1.msra.mxu0 0.0
      %746 = vmatprep.subr.mxu0 0.0
      %747 = vmatpush1.msra.mxu0 0.0
      %748 = vmatprep.subr.mxu0 0.0
      %749 = vmatpush1.msra.mxu0 0.0
      %750 = vmatprep.subr.mxu0 0.0
      %751 = vmatpush1.msra.mxu0 0.0
      %752 = vmatprep.subr.mxu0 0.0
      %753 = vmatpush1.msra.mxu0 0.0
      %754 = vmatprep.subr.mxu0 0.0
      %755 = vmatpush1.msra.mxu0 0.0
      %756 = vmatprep.subr.mxu0 0.0
      %757 = vmatpush1.msra.mxu0 0.0
      %758 = vmatprep.subr.mxu0 0.0
      %759 = vmatpush1.msra.mxu0 0.0
      %760 = vmatprep.mubr.f32.mxu0 0.0
      %761 = vmatmul.mubr.f32.gmra.mrb[0].mxu0 %v694
      %v762 = vpop.f32.mrb[0].mxu0
      %v763 = vadd.f32 0.0, %v762
      %v764 = vpop.f32.mrb[0].mxu0
      %765 = vdwg.mxu0
      %v766 = vld [vmem:[%s7] sm:$0x1]
      %v768 = vlaneseq
      %v769 = vshrl.u32 %v768, 7
      %v770 = vsub.s32 0, %v769
      %v771 = vrot.slane %v766, %v770
      %v773 = vadd.f32 %v763, %v771
      %vm774 = vcmp.gt.f32.partialorder %v773, 20.0
      %v775 = vmin.f32 %v773, 20.0
      %v776 = vmul.f32 %v775, 1.442695
      %v777 = vpow.pop %v776
      %v778 = vadd.f32 %v777, 1.0
      %v779 = vlog2.pop %v778
      %v780 = vmul.f32 %v779, 0.6931472
      %v781 = vmul.f32 -0.5, %v777
      %v782 = vadd.f32 %v781, 1.0
      %v783 = vmul.f32 %v782, %v777
      %v784 = vand.u32 2147483647, %v777
      %vm785 = vcmp.lt.f32.partialorder %v784, 0.0004427343
      %v786 = vsel %vm785, %v783, %v780
      %v787 = vsel %vm774, %v773, %v786
      %v788 = vld [vmem:[%s8] sm:$0xff]
      %v789 = vld [vmem:[%s8 + $0x8] sm:$0xff]
      %v790 = vmul.f32 %v788, 1.442695
      %v791 = vpow.pop %v790
      %v792 = vmul.f32 %v789, 1.442695
      %v793 = vpow.pop %v792
      %v794 = vsub.f32 0.0, %v791
      %v795 = vsub.f32 0.0, %v793
      %v797 = vcombine.high %v787, %v787
      %v799 = vunpack.c.l.s4 1966171168
      %v800 = vunpack.c.0.s8 %v799
      %v801 = vlaneseq
      %v802 = vshrl.u32 %v801, 7
      %v803 = vsub.s32 %v800, %v802
      %v804 = vrot.slane %v787, %v803
      %v806 = vunpack.c.l.s4 1966171168
      %v807 = vunpack.c.0.s8 %v806
      %v808 = vlaneseq
      %v809 = vshrl.u32 %v808, 7
      %v810 = vsub.s32 %v807, %v809
      %v811 = vrot.slane %v797, %v810
      %v812 = vcombine.high %v804, %v804
      %v813 = vcombine.high %v811, %v811
      %v815 = vunpack.c.l.s4 1966171168
      %v816 = vunpack.c.0.s8 %v815
      %v817 = vlaneseq
      %v818 = vshrl.u32 %v817, 7
      %v819 = vsub.s32 %v816, %v818
      %v820 = vrot.slane %v804, %v819
      %v822 = vunpack.c.l.s4 1966171168
      %v823 = vunpack.c.0.s8 %v822
      %v824 = vlaneseq
      %v825 = vshrl.u32 %v824, 7
      %v826 = vsub.s32 %v823, %v825
      %v827 = vrot.slane %v811, %v826
      %v829 = vunpack.c.l.s4 1966171168
      %v830 = vunpack.c.0.s8 %v829
      %v831 = vlaneseq
      %v832 = vshrl.u32 %v831, 7
      %v833 = vsub.s32 %v830, %v832
      %v834 = vrot.slane %v812, %v833
      %v836 = vunpack.c.l.s4 1966171168
      %v837 = vunpack.c.0.s8 %v836
      %v838 = vlaneseq
      %v839 = vshrl.u32 %v838, 7
      %v840 = vsub.s32 %v837, %v839
      %v841 = vrot.slane %v813, %v840
      %v842 = vcombine.high %v820, %v820
      %v843 = vcombine.high %v827, %v827
      %v844 = vcombine.high %v834, %v834
      %v845 = vcombine.high %v841, %v841
      %v846 = vlaneseq
      %v847 = vshrl.u32 %v846, 7
      %v848 = vsub.s32 0, %v847
      %v849 = vrot.slane %v820, %v848
      %v850 = vlaneseq
      %v851 = vshrl.u32 %v850, 7
      %v852 = vsub.s32 0, %v851
      %v853 = vrot.slane %v834, %v852
      %v854 = vlaneseq
      %v855 = vshrl.u32 %v854, 7
      %v856 = vsub.s32 0, %v855
      %v857 = vrot.slane %v842, %v856
      %v858 = vlaneseq
      %v859 = vshrl.u32 %v858, 7
      %v860 = vsub.s32 0, %v859
      %v861 = vrot.slane %v844, %v860
      %v862 = vlaneseq
      %v863 = vshrl.u32 %v862, 7
      %v864 = vsub.s32 0, %v863
      %v865 = vrot.slane %v827, %v864
      %v866 = vlaneseq
      %v867 = vshrl.u32 %v866, 7
      %v868 = vsub.s32 0, %v867
      %v869 = vrot.slane %v841, %v868
      %v870 = vlaneseq
      %v871 = vshrl.u32 %v870, 7
      %v872 = vsub.s32 0, %v871
      %v873 = vrot.slane %v843, %v872
      %v874 = vlaneseq
      %v875 = vshrl.u32 %v874, 7
      %v876 = vsub.s32 0, %v875
      %v877 = vrot.slane %v845, %v876
      %v886 = vmul.f32 %v849, %v794
      %v887 = vmul.f32 %v849, %v795
      %v888 = vmul.f32 %v853, %v794
      %v889 = vmul.f32 %v853, %v795
      %v890 = vmul.f32 %v857, %v794
      %v891 = vmul.f32 %v857, %v795
      %v892 = vmul.f32 %v861, %v794
      %v893 = vmul.f32 %v861, %v795
      %v894 = vmul.f32 %v865, %v794
      %v895 = vmul.f32 %v865, %v795
      %v896 = vmul.f32 %v869, %v794
      %v897 = vmul.f32 %v869, %v795
      %v898 = vmul.f32 %v873, %v794
      %v899 = vmul.f32 %v873, %v795
      %v900 = vmul.f32 %v877, %v794
      %v901 = vmul.f32 %v877, %v795
      %v902 = vmul.f32 %v886, 1.442695
      %v903 = vpow.pop %v902
      %v904 = vmul.f32 %v887, 1.442695
      %v905 = vpow.pop %v904
      %v906 = vmul.f32 %v888, 1.442695
      %v907 = vpow.pop %v906
      %v908 = vmul.f32 %v889, 1.442695
      %v909 = vpow.pop %v908
      %v910 = vmul.f32 %v890, 1.442695
      %v911 = vpow.pop %v910
      %v912 = vmul.f32 %v891, 1.442695
      %v913 = vpow.pop %v912
      %v914 = vmul.f32 %v892, 1.442695
      %v915 = vpow.pop %v914
      %v916 = vmul.f32 %v893, 1.442695
      %v917 = vpow.pop %v916
      %v918 = vmul.f32 %v894, 1.442695
      %v919 = vpow.pop %v918
      %v920 = vmul.f32 %v895, 1.442695
      %v921 = vpow.pop %v920
      %v922 = vmul.f32 %v896, 1.442695
      %v923 = vpow.pop %v922
      %v924 = vmul.f32 %v897, 1.442695
      %v925 = vpow.pop %v924
      %v926 = vmul.f32 %v898, 1.442695
      %v927 = vpow.pop %v926
      %v928 = vmul.f32 %v899, 1.442695
      %v929 = vpow.pop %v928
      %v930 = vmul.f32 %v900, 1.442695
      %v931 = vpow.pop %v930
      %v932 = vmul.f32 %v901, 1.442695
      %v933 = vpow.pop %v932
      %934 = vst.msk [vmem:[#allocation2] sm:$0xff] %vm692, %v903
      %935 = vst.msk [vmem:[#allocation2 + $0x8] sm:$0xff] %vm692, %v905
      %936 = vst.msk [vmem:[#allocation2 + $0x10] sm:$0xff] %vm692, %v907
      %937 = vst.msk [vmem:[#allocation2 + $0x18] sm:$0xff] %vm692, %v909
      %938 = vst.msk [vmem:[#allocation2 + $0x20] sm:$0xff] %vm692, %v911
      %939 = vst.msk [vmem:[#allocation2 + $0x28] sm:$0xff] %vm692, %v913
      %940 = vst.msk [vmem:[#allocation2 + $0x30] sm:$0xff] %vm692, %v915
      %941 = vst.msk [vmem:[#allocation2 + $0x38] sm:$0xff] %vm692, %v917
      %942 = vst.msk [vmem:[#allocation2 + $0x40] sm:$0xff] %vm692, %v919
      %943 = vst.msk [vmem:[#allocation2 + $0x48] sm:$0xff] %vm692, %v921
      %944 = vst.msk [vmem:[#allocation2 + $0x50] sm:$0xff] %vm692, %v923
      %945 = vst.msk [vmem:[#allocation2 + $0x58] sm:$0xff] %vm692, %v925
      %946 = vst.msk [vmem:[#allocation2 + $0x60] sm:$0xff] %vm692, %v927
      %947 = vst.msk [vmem:[#allocation2 + $0x68] sm:$0xff] %vm692, %v929
      %948 = vst.msk [vmem:[#allocation2 + $0x70] sm:$0xff] %vm692, %v931
      %949 = vst.msk [vmem:[#allocation2 + $0x78] sm:$0xff] %vm692, %v933
      %v950 = vmul.f32 %v787, %v683
      %v952 = vcombine.high %v950, %v950
      %v954 = vunpack.c.l.s4 1966171168
      %v955 = vunpack.c.0.s8 %v954
      %v956 = vlaneseq
      %v957 = vshrl.u32 %v956, 7
      %v958 = vsub.s32 %v955, %v957
      %v959 = vrot.slane %v950, %v958
      %v961 = vunpack.c.l.s4 1966171168
      %v962 = vunpack.c.0.s8 %v961
      %v963 = vlaneseq
      %v964 = vshrl.u32 %v963, 7
      %v965 = vsub.s32 %v962, %v964
      %v966 = vrot.slane %v952, %v965
      %v967 = vcombine.high %v959, %v959
      %v968 = vcombine.high %v966, %v966
      %v970 = vunpack.c.l.s4 1966171168
      %v971 = vunpack.c.0.s8 %v970
      %v972 = vlaneseq
      %v973 = vshrl.u32 %v972, 7
      %v974 = vsub.s32 %v971, %v973
      %v975 = vrot.slane %v959, %v974
      %v977 = vunpack.c.l.s4 1966171168
      %v978 = vunpack.c.0.s8 %v977
      %v979 = vlaneseq
      %v980 = vshrl.u32 %v979, 7
      %v981 = vsub.s32 %v978, %v980
      %v982 = vrot.slane %v966, %v981
      %v984 = vunpack.c.l.s4 1966171168
      %v985 = vunpack.c.0.s8 %v984
      %v986 = vlaneseq
      %v987 = vshrl.u32 %v986, 7
      %v988 = vsub.s32 %v985, %v987
      %v989 = vrot.slane %v967, %v988
      %v991 = vunpack.c.l.s4 1966171168
      %v992 = vunpack.c.0.s8 %v991
      %v993 = vlaneseq
      %v994 = vshrl.u32 %v993, 7
      %v995 = vsub.s32 %v992, %v994
      %v996 = vrot.slane %v968, %v995
      %v997 = vcombine.high %v975, %v975
      %v998 = vcombine.high %v982, %v982
      %v999 = vcombine.high %v989, %v989
      %v1000 = vcombine.high %v996, %v996
      %v1001 = vlaneseq
      %v1002 = vshrl.u32 %v1001, 7
      %v1003 = vsub.s32 0, %v1002
      %v1004 = vrot.slane %v763, %v1003
      %s1006 = sor.u32 256, 64
      %1007 = vbcast.lane.b32.xlu0 %v1004, %s1006
      %v1008 = vpop.permute.xlu0 %1007
      %s1010 = sor.u32 256, 72
      %1011 = vbcast.lane.b32.xlu0 %v1004, %s1010
      %v1012 = vpop.permute.xlu0 %1011
      %v1013 = vlaneseq
      %v1014 = vshrl.u32 %v1013, 7
      %v1015 = vsub.s32 1, %v1014
      %v1016 = vrot.slane %v763, %v1015
      %s1018 = sor.u32 256, 64
      %1019 = vbcast.lane.b32.xlu0 %v1016, %s1018
      %v1020 = vpop.permute.xlu0 %1019
      %s1022 = sor.u32 256, 72
      %1023 = vbcast.lane.b32.xlu0 %v1016, %s1022
      %v1024 = vpop.permute.xlu0 %1023
      %v1025 = vlaneseq
      %v1026 = vshrl.u32 %v1025, 7
      %v1027 = vsub.s32 2, %v1026
      %v1028 = vrot.slane %v763, %v1027
      %s1030 = sor.u32 256, 64
      %1031 = vbcast.lane.b32.xlu0 %v1028, %s1030
      %v1032 = vpop.permute.xlu0 %1031
      %s1034 = sor.u32 256, 72
      %1035 = vbcast.lane.b32.xlu0 %v1028, %s1034
      %v1036 = vpop.permute.xlu0 %1035
      %v1037 = vlaneseq
      %v1038 = vshrl.u32 %v1037, 7
      %v1039 = vsub.s32 3, %v1038
      %v1040 = vrot.slane %v763, %v1039
      %s1042 = sor.u32 256, 64
      %1043 = vbcast.lane.b32.xlu0 %v1040, %s1042
      %v1044 = vpop.permute.xlu0 %1043
      %s1046 = sor.u32 256, 72
      %1047 = vbcast.lane.b32.xlu0 %v1040, %s1046
      %v1048 = vpop.permute.xlu0 %1047
      %v1049 = vlaneseq
      %v1050 = vshrl.u32 %v1049, 7
      %v1051 = vsub.s32 4, %v1050
      %v1052 = vrot.slane %v763, %v1051
      %s1054 = sor.u32 256, 64
      %1055 = vbcast.lane.b32.xlu0 %v1052, %s1054
      %v1056 = vpop.permute.xlu0 %1055
      %s1058 = sor.u32 256, 72
      %1059 = vbcast.lane.b32.xlu0 %v1052, %s1058
      %v1060 = vpop.permute.xlu0 %1059
      %v1061 = vlaneseq
      %v1062 = vshrl.u32 %v1061, 7
      %v1063 = vsub.s32 5, %v1062
      %v1064 = vrot.slane %v763, %v1063
      %s1066 = sor.u32 256, 64
      %1067 = vbcast.lane.b32.xlu0 %v1064, %s1066
      %v1068 = vpop.permute.xlu0 %1067
      %s1070 = sor.u32 256, 72
      %1071 = vbcast.lane.b32.xlu0 %v1064, %s1070
      %v1072 = vpop.permute.xlu0 %1071
      %v1073 = vlaneseq
      %v1074 = vshrl.u32 %v1073, 7
      %v1075 = vsub.s32 6, %v1074
      %v1076 = vrot.slane %v763, %v1075
      %s1078 = sor.u32 256, 64
      %1079 = vbcast.lane.b32.xlu0 %v1076, %s1078
      %v1080 = vpop.permute.xlu0 %1079
      %s1082 = sor.u32 256, 72
      %1083 = vbcast.lane.b32.xlu0 %v1076, %s1082
      %v1084 = vpop.permute.xlu0 %1083
      %v1085 = vlaneseq
      %v1086 = vshrl.u32 %v1085, 7
      %v1087 = vsub.s32 7, %v1086
      %v1088 = vrot.slane %v763, %v1087
      %s1090 = sor.u32 256, 64
      %1091 = vbcast.lane.b32.xlu0 %v1088, %s1090
      %v1092 = vpop.permute.xlu0 %1091
      %s1094 = sor.u32 256, 72
      %1095 = vbcast.lane.b32.xlu0 %v1088, %s1094
      %v1096 = vpop.permute.xlu0 %1095
      %v1097 = vlaneseq
      %v1098 = vshrl.u32 %v1097, 7
      %v1099 = vsub.s32 0, %v1098
      %v1100 = vrot.slane %v975, %v1099
      %v1101 = vlaneseq
      %v1102 = vshrl.u32 %v1101, 7
      %v1103 = vsub.s32 0, %v1102
      %v1104 = vrot.slane %v989, %v1103
      %v1105 = vlaneseq
      %v1106 = vshrl.u32 %v1105, 7
      %v1107 = vsub.s32 0, %v1106
      %v1108 = vrot.slane %v997, %v1107
      %v1109 = vlaneseq
      %v1110 = vshrl.u32 %v1109, 7
      %v1111 = vsub.s32 0, %v1110
      %v1112 = vrot.slane %v999, %v1111
      %v1113 = vlaneseq
      %v1114 = vshrl.u32 %v1113, 7
      %v1115 = vsub.s32 0, %v1114
      %v1116 = vrot.slane %v982, %v1115
      %v1117 = vlaneseq
      %v1118 = vshrl.u32 %v1117, 7
      %v1119 = vsub.s32 0, %v1118
      %v1120 = vrot.slane %v996, %v1119
      %v1121 = vlaneseq
      %v1122 = vshrl.u32 %v1121, 7
      %v1123 = vsub.s32 0, %v1122
      %v1124 = vrot.slane %v998, %v1123
      %v1125 = vlaneseq
      %v1126 = vshrl.u32 %v1125, 7
      %v1127 = vsub.s32 0, %v1126
      %v1128 = vrot.slane %v1000, %v1127
      %v1137 = vmul.f32 %v1100, %v1008
      %v1138 = vmul.f32 %v1100, %v1012
      %v1139 = vmul.f32 %v1104, %v1020
      %v1140 = vmul.f32 %v1104, %v1024
      %v1141 = vmul.f32 %v1108, %v1032
      %v1142 = vmul.f32 %v1108, %v1036
      %v1143 = vmul.f32 %v1112, %v1044
      %v1144 = vmul.f32 %v1112, %v1048
      %v1145 = vmul.f32 %v1116, %v1056
      %v1146 = vmul.f32 %v1116, %v1060
      %v1147 = vmul.f32 %v1120, %v1068
      %v1148 = vmul.f32 %v1120, %v1072
      %v1149 = vmul.f32 %v1124, %v1080
      %v1150 = vmul.f32 %v1124, %v1084
      %v1151 = vmul.f32 %v1128, %v1092
      %v1152 = vmul.f32 %v1128, %v1096
      %1153 = vst.msk [vmem:[#allocation3] sm:$0xff] %vm692, %v1137
      %1154 = vst.msk [vmem:[#allocation3 + $0x8] sm:$0xff] %vm692, %v1138
      %1155 = vst.msk [vmem:[#allocation3 + $0x10] sm:$0xff] %vm692, %v1139
      %1156 = vst.msk [vmem:[#allocation3 + $0x18] sm:$0xff] %vm692, %v1140
      %1157 = vst.msk [vmem:[#allocation3 + $0x20] sm:$0xff] %vm692, %v1141
      %1158 = vst.msk [vmem:[#allocation3 + $0x28] sm:$0xff] %vm692, %v1142
      %1159 = vst.msk [vmem:[#allocation3 + $0x30] sm:$0xff] %vm692, %v1143
      %1160 = vst.msk [vmem:[#allocation3 + $0x38] sm:$0xff] %vm692, %v1144
      %1161 = vst.msk [vmem:[#allocation3 + $0x40] sm:$0xff] %vm692, %v1145
      %1162 = vst.msk [vmem:[#allocation3 + $0x48] sm:$0xff] %vm692, %v1146
      %1163 = vst.msk [vmem:[#allocation3 + $0x50] sm:$0xff] %vm692, %v1147
      %1164 = vst.msk [vmem:[#allocation3 + $0x58] sm:$0xff] %vm692, %v1148
      %1165 = vst.msk [vmem:[#allocation3 + $0x60] sm:$0xff] %vm692, %v1149
      %1166 = vst.msk [vmem:[#allocation3 + $0x68] sm:$0xff] %vm692, %v1150
      %1167 = vst.msk [vmem:[#allocation3 + $0x70] sm:$0xff] %vm692, %v1151
      %1168 = vst.msk [vmem:[#allocation3 + $0x78] sm:$0xff] %vm692, %v1152
      %s1170 = sor.u32 256, 80
      %1171 = vbcast.lane.b32.xlu0 %v1004, %s1170
      %v1172 = vpop.permute.xlu0 %1171
      %s1174 = sor.u32 256, 88
      %1175 = vbcast.lane.b32.xlu0 %v1004, %s1174
      %v1176 = vpop.permute.xlu0 %1175
      %s1178 = sor.u32 256, 80
      %1179 = vbcast.lane.b32.xlu0 %v1016, %s1178
      %v1180 = vpop.permute.xlu0 %1179
      %s1182 = sor.u32 256, 88
      %1183 = vbcast.lane.b32.xlu0 %v1016, %s1182
      %v1184 = vpop.permute.xlu0 %1183
      %s1186 = sor.u32 256, 80
      %1187 = vbcast.lane.b32.xlu0 %v1028, %s1186
      %v1188 = vpop.permute.xlu0 %1187
      %s1190 = sor.u32 256, 88
      %1191 = vbcast.lane.b32.xlu0 %v1028, %s1190
      %v1192 = vpop.permute.xlu0 %1191
      %s1194 = sor.u32 256, 80
      %1195 = vbcast.lane.b32.xlu0 %v1040, %s1194
      %v1196 = vpop.permute.xlu0 %1195
      %s1198 = sor.u32 256, 88
      %1199 = vbcast.lane.b32.xlu0 %v1040, %s1198
      %v1200 = vpop.permute.xlu0 %1199
      %s1202 = sor.u32 256, 80
      %1203 = vbcast.lane.b32.xlu0 %v1052, %s1202
      %v1204 = vpop.permute.xlu0 %1203
      %s1206 = sor.u32 256, 88
      %1207 = vbcast.lane.b32.xlu0 %v1052, %s1206
      %v1208 = vpop.permute.xlu0 %1207
      %s1210 = sor.u32 256, 80
      %1211 = vbcast.lane.b32.xlu0 %v1064, %s1210
      %v1212 = vpop.permute.xlu0 %1211
      %s1214 = sor.u32 256, 88
      %1215 = vbcast.lane.b32.xlu0 %v1064, %s1214
      %v1216 = vpop.permute.xlu0 %1215
      %s1218 = sor.u32 256, 80
      %1219 = vbcast.lane.b32.xlu0 %v1076, %s1218
      %v1220 = vpop.permute.xlu0 %1219
      %s1222 = sor.u32 256, 88
      %1223 = vbcast.lane.b32.xlu0 %v1076, %s1222
      %v1224 = vpop.permute.xlu0 %1223
      %s1226 = sor.u32 256, 80
      %1227 = vbcast.lane.b32.xlu0 %v1088, %s1226
      %v1228 = vpop.permute.xlu0 %1227
      %s1230 = sor.u32 256, 88
      %1231 = vbcast.lane.b32.xlu0 %v1088, %s1230
      %v1232 = vpop.permute.xlu0 %1231
      %1233 = vst.msk [vmem:[#allocation4] sm:$0xff] %vm692, %v1172
      %1234 = vst.msk [vmem:[#allocation4 + $0x8] sm:$0xff] %vm692, %v1176
      %1235 = vst.msk [vmem:[#allocation4 + $0x10] sm:$0xff] %vm692, %v1180
      %1236 = vst.msk [vmem:[#allocation4 + $0x18] sm:$0xff] %vm692, %v1184
      %1237 = vst.msk [vmem:[#allocation4 + $0x20] sm:$0xff] %vm692, %v1188
      %1238 = vst.msk [vmem:[#allocation4 + $0x28] sm:$0xff] %vm692, %v1192
      %1239 = vst.msk [vmem:[#allocation4 + $0x30] sm:$0xff] %vm692, %v1196
      %1240 = vst.msk [vmem:[#allocation4 + $0x38] sm:$0xff] %vm692, %v1200
      %1241 = vst.msk [vmem:[#allocation4 + $0x40] sm:$0xff] %vm692, %v1204
      %1242 = vst.msk [vmem:[#allocation4 + $0x48] sm:$0xff] %vm692, %v1208
      %1243 = vst.msk [vmem:[#allocation4 + $0x50] sm:$0xff] %vm692, %v1212
      %1244 = vst.msk [vmem:[#allocation4 + $0x58] sm:$0xff] %vm692, %v1216
      %1245 = vst.msk [vmem:[#allocation4 + $0x60] sm:$0xff] %vm692, %v1220
      %1246 = vst.msk [vmem:[#allocation4 + $0x68] sm:$0xff] %vm692, %v1224
      %1247 = vst.msk [vmem:[#allocation4 + $0x70] sm:$0xff] %vm692, %v1228
      %1248 = vst.msk [vmem:[#allocation4 + $0x78] sm:$0xff] %vm692, %v1232
      %v1249 = vld [vmem:[#allocation2] sm:$0xff]
      %v1250 = vld [vmem:[#allocation2 + $0x8] sm:$0xff]
      %v1251 = vld [vmem:[#allocation3] sm:$0xff]
      %v1252 = vld [vmem:[#allocation3 + $0x8] sm:$0xff]
      %v1253 = vld [vmem:[#allocation4] sm:$0xff]
      %v1254 = vld [vmem:[#allocation4 + $0x8] sm:$0xff]
      %v1255 = vmul.f32 %v1249, 0.0
      %v1256 = vmul.f32 %v1250, 0.0
      %v1257 = vadd.f32 %v1255, %v1251
      %v1258 = vadd.f32 %v1256, %v1252
      %v1259 = vmul.f32 %v1257, %v1253
      %v1260 = vmul.f32 %v1258, %v1254
      %v1261 = vsel %vm692, %v1259, 0.0
      %v1262 = vsel %vm692, %v1260, 0.0
      %v1263 = vadd.f32 %v1261, %v1262
      %v1264 = vrot.slane %v1263, 4
      %v1265 = vadd.f32 %v1263, %v1264
      %v1266 = vrot.slane %v1265, 2
      %v1267 = vadd.f32 %v1265, %v1266
      %v1268 = vrot.slane %v1267, 1
      %v1269 = vadd.f32 %v1267, %v1268
      %s1270 = scalar_lea.vmem [#allocation2], 16
      %v1271 = vld [vmem:[%s1270] sm:$0xff]
      %v1272 = vld [vmem:[%s1270 + $0x8] sm:$0xff]
      %s1273 = scalar_lea.vmem [#allocation3], 16
      %v1274 = vld [vmem:[%s1273] sm:$0xff]
      %v1275 = vld [vmem:[%s1273 + $0x8] sm:$0xff]
      %s1276 = scalar_lea.vmem [#allocation4], 16
      %v1277 = vld [vmem:[%s1276] sm:$0xff]
      %v1278 = vld [vmem:[%s1276 + $0x8] sm:$0xff]
      %v1279 = vmul.f32 %v1271, %v1257
      %v1280 = vmul.f32 %v1272, %v1258
      %v1281 = vadd.f32 %v1279, %v1274
      %v1282 = vadd.f32 %v1280, %v1275
      %v1283 = vmul.f32 %v1281, %v1277
      %v1284 = vmul.f32 %v1282, %v1278
      %v1285 = vsel %vm692, %v1283, 0.0
      %v1286 = vsel %vm692, %v1284, 0.0
      %v1287 = vadd.f32 %v1285, %v1286
      %v1288 = vrot.slane %v1287, 4
      %v1289 = vadd.f32 %v1287, %v1288
      %v1290 = vrot.slane %v1289, 2
      %v1291 = vadd.f32 %v1289, %v1290
      %v1292 = vrot.slane %v1291, 1
      %v1293 = vadd.f32 %v1291, %v1292
      %s1294 = scalar_lea.vmem [#allocation2], 32
      %v1295 = vld [vmem:[%s1294] sm:$0xff]
      %v1296 = vld [vmem:[%s1294 + $0x8] sm:$0xff]
      %s1297 = scalar_lea.vmem [#allocation3], 32
      %v1298 = vld [vmem:[%s1297] sm:$0xff]
      %v1299 = vld [vmem:[%s1297 + $0x8] sm:$0xff]
      %s1300 = scalar_lea.vmem [#allocation4], 32
      %v1301 = vld [vmem:[%s1300] sm:$0xff]
      %v1302 = vld [vmem:[%s1300 + $0x8] sm:$0xff]
      %v1303 = vmul.f32 %v1295, %v1281
      %v1304 = vmul.f32 %v1296, %v1282
      %v1305 = vadd.f32 %v1303, %v1298
      %v1306 = vadd.f32 %v1304, %v1299
      %v1307 = vmul.f32 %v1305, %v1301
      %v1308 = vmul.f32 %v1306, %v1302
      %v1309 = vsel %vm692, %v1307, 0.0
      %v1310 = vsel %vm692, %v1308, 0.0
      %v1311 = vadd.f32 %v1309, %v1310
      %v1312 = vrot.slane %v1311, 4
      %v1313 = vadd.f32 %v1311, %v1312
      %v1314 = vrot.slane %v1313, 2
      %v1315 = vadd.f32 %v1313, %v1314
      %v1316 = vrot.slane %v1315, 1
      %v1317 = vadd.f32 %v1315, %v1316
      %s1318 = scalar_lea.vmem [#allocation2], 48
      %v1319 = vld [vmem:[%s1318] sm:$0xff]
      %v1320 = vld [vmem:[%s1318 + $0x8] sm:$0xff]
      %s1321 = scalar_lea.vmem [#allocation3], 48
      %v1322 = vld [vmem:[%s1321] sm:$0xff]
      %v1323 = vld [vmem:[%s1321 + $0x8] sm:$0xff]
      %s1324 = scalar_lea.vmem [#allocation4], 48
      %v1325 = vld [vmem:[%s1324] sm:$0xff]
      %v1326 = vld [vmem:[%s1324 + $0x8] sm:$0xff]
      %v1327 = vmul.f32 %v1319, %v1305
      %v1328 = vmul.f32 %v1320, %v1306
      %v1329 = vadd.f32 %v1327, %v1322
      %v1330 = vadd.f32 %v1328, %v1323
      %v1331 = vmul.f32 %v1329, %v1325
      %v1332 = vmul.f32 %v1330, %v1326
      %v1333 = vsel %vm692, %v1331, 0.0
      %v1334 = vsel %vm692, %v1332, 0.0
      %v1335 = vadd.f32 %v1333, %v1334
      %v1336 = vrot.slane %v1335, 4
      %v1337 = vadd.f32 %v1335, %v1336
      %v1338 = vrot.slane %v1337, 2
      %v1339 = vadd.f32 %v1337, %v1338
      %v1340 = vrot.slane %v1339, 1
      %v1341 = vadd.f32 %v1339, %v1340
      %s1342 = scalar_lea.vmem [#allocation2], 64
      %v1343 = vld [vmem:[%s1342] sm:$0xff]
      %v1344 = vld [vmem:[%s1342 + $0x8] sm:$0xff]
      %s1345 = scalar_lea.vmem [#allocation3], 64
      %v1346 = vld [vmem:[%s1345] sm:$0xff]
      %v1347 = vld [vmem:[%s1345 + $0x8] sm:$0xff]
      %s1348 = scalar_lea.vmem [#allocation4], 64
      %v1349 = vld [vmem:[%s1348] sm:$0xff]
      %v1350 = vld [vmem:[%s1348 + $0x8] sm:$0xff]
      %v1351 = vmul.f32 %v1343, %v1329
      %v1352 = vmul.f32 %v1344, %v1330
      %v1353 = vadd.f32 %v1351, %v1346
      %v1354 = vadd.f32 %v1352, %v1347
      %v1355 = vmul.f32 %v1353, %v1349
      %v1356 = vmul.f32 %v1354, %v1350
      %v1357 = vsel %vm692, %v1355, 0.0
      %v1358 = vsel %vm692, %v1356, 0.0
      %v1359 = vadd.f32 %v1357, %v1358
      %v1360 = vrot.slane %v1359, 4
      %v1361 = vadd.f32 %v1359, %v1360
      %v1362 = vrot.slane %v1361, 2
      %v1363 = vadd.f32 %v1361, %v1362
      %v1364 = vrot.slane %v1363, 1
      %v1365 = vadd.f32 %v1363, %v1364
      %s1366 = scalar_lea.vmem [#allocation2], 80
      %v1367 = vld [vmem:[%s1366] sm:$0xff]
      %v1368 = vld [vmem:[%s1366 + $0x8] sm:$0xff]
      %s1369 = scalar_lea.vmem [#allocation3], 80
      %v1370 = vld [vmem:[%s1369] sm:$0xff]
      %v1371 = vld [vmem:[%s1369 + $0x8] sm:$0xff]
      %s1372 = scalar_lea.vmem [#allocation4], 80
      %v1373 = vld [vmem:[%s1372] sm:$0xff]
      %v1374 = vld [vmem:[%s1372 + $0x8] sm:$0xff]
      %v1375 = vmul.f32 %v1367, %v1353
      %v1376 = vmul.f32 %v1368, %v1354
      %v1377 = vadd.f32 %v1375, %v1370
      %v1378 = vadd.f32 %v1376, %v1371
      %v1379 = vmul.f32 %v1377, %v1373
      %v1380 = vmul.f32 %v1378, %v1374
      %v1381 = vsel %vm692, %v1379, 0.0
      %v1382 = vsel %vm692, %v1380, 0.0
      %v1383 = vadd.f32 %v1381, %v1382
      %v1384 = vrot.slane %v1383, 4
      %v1385 = vadd.f32 %v1383, %v1384
      %v1386 = vrot.slane %v1385, 2
      %v1387 = vadd.f32 %v1385, %v1386
      %v1388 = vrot.slane %v1387, 1
      %v1389 = vadd.f32 %v1387, %v1388
      %s1390 = scalar_lea.vmem [#allocation2], 96
      %v1391 = vld [vmem:[%s1390] sm:$0xff]
      %v1392 = vld [vmem:[%s1390 + $0x8] sm:$0xff]
      %s1393 = scalar_lea.vmem [#allocation3], 96
      %v1394 = vld [vmem:[%s1393] sm:$0xff]
      %v1395 = vld [vmem:[%s1393 + $0x8] sm:$0xff]
      %s1396 = scalar_lea.vmem [#allocation4], 96
      %v1397 = vld [vmem:[%s1396] sm:$0xff]
      %v1398 = vld [vmem:[%s1396 + $0x8] sm:$0xff]
      %v1399 = vmul.f32 %v1391, %v1377
      %v1400 = vmul.f32 %v1392, %v1378
      %v1401 = vadd.f32 %v1399, %v1394
      %v1402 = vadd.f32 %v1400, %v1395
      %v1403 = vmul.f32 %v1401, %v1397
      %v1404 = vmul.f32 %v1402, %v1398
      %v1405 = vsel %vm692, %v1403, 0.0
      %v1406 = vsel %vm692, %v1404, 0.0
      %v1407 = vadd.f32 %v1405, %v1406
      %v1408 = vrot.slane %v1407, 4
      %v1409 = vadd.f32 %v1407, %v1408
      %v1410 = vrot.slane %v1409, 2
      %v1411 = vadd.f32 %v1409, %v1410
      %v1412 = vrot.slane %v1411, 1
      %v1413 = vadd.f32 %v1411, %v1412
      %s1414 = scalar_lea.vmem [#allocation2], 112
      %v1415 = vld [vmem:[%s1414] sm:$0xff]
      %v1416 = vld [vmem:[%s1414 + $0x8] sm:$0xff]
      %s1417 = scalar_lea.vmem [#allocation3], 112
      %v1418 = vld [vmem:[%s1417] sm:$0xff]
      %v1419 = vld [vmem:[%s1417 + $0x8] sm:$0xff]
      %s1420 = scalar_lea.vmem [#allocation4], 112
      %v1421 = vld [vmem:[%s1420] sm:$0xff]
      %v1422 = vld [vmem:[%s1420 + $0x8] sm:$0xff]
      %v1423 = vmul.f32 %v1415, %v1401
      %v1424 = vmul.f32 %v1416, %v1402
      %v1425 = vadd.f32 %v1423, %v1418
      %v1426 = vadd.f32 %v1424, %v1419
      %v1427 = vmul.f32 %v1425, %v1421
      %v1428 = vmul.f32 %v1426, %v1422
      %v1429 = vsel %vm692, %v1427, 0.0
      %v1430 = vsel %vm692, %v1428, 0.0
      %v1431 = vadd.f32 %v1429, %v1430
      %v1432 = vrot.slane %v1431, 4
      %v1433 = vadd.f32 %v1431, %v1432
      %v1434 = vrot.slane %v1433, 2
      %v1435 = vadd.f32 %v1433, %v1434
      %v1436 = vrot.slane %v1435, 1
      %v1437 = vadd.f32 %v1435, %v1436
      %vm1438 = vcmask 1040384
      %v1439 = vsel %vm1438, %v1269, %v1293
      %vm1440 = vcmask 1041408
      %v1441 = vsel %vm1440, %v1439, %v1317
      %vm1442 = vcmask 1042432
      %v1443 = vsel %vm1442, %v1441, %v1341
      %vm1444 = vcmask 1043456
      %v1445 = vsel %vm1444, %v1443, %v1365
      %vm1446 = vcmask 1044480
      %v1447 = vsel %vm1446, %v1445, %v1389
      %vm1448 = vcmask 1045504
      %v1449 = vsel %vm1448, %v1447, %v1413
      %vm1450 = vcmask 1046528
      %v1451 = vsel %vm1450, %v1449, %v1437
      %1452 = vst.msk [vmem:[#allocation5] sm:$0xff] %vm692, %v1451
      %v1453 = vld [vmem:[#allocation5] sm:$0xff]
      %v1454 = vld [vmem:[%s9] sm:$0x1]
      %v1456 = vlaneseq
      %v1457 = vshrl.u32 %v1456, 7
      %v1458 = vsub.s32 0, %v1457
      %v1459 = vrot.slane %v1454, %v1458
      %v1461 = vmul.f32 %v683, %v1459
      %v1462 = vadd.f32 %v1453, %v1461
      %v1463 = vxor.u32 %v630, 2147483648
      %v1464 = vmul.f32 %v1463, 1.442695
      %v1465 = vpow.pop %v1464
      %v1466 = vadd.f32 %v1465, 1.0
      %v1467 = vrcp.pop %v1466
      %v1468 = vmul.f32 1.0, %v1467
      %v1469 = vmul.f32 %v630, %v1468
      %1471 = vrot.lane.b32.xlu0 %v1469, 64
      %v1472 = vpop.permute.xlu0 %1471
      %v1474 = vmul.f32 %v1462, %v1472
      %v1475 = vld [vmem:[%s10] sm:$0xff]
      %v1476 = vld [vmem:[%s10 + $0x8] sm:$0xff]
      %v1477 = vld [vmem:[%s10 + $0x10] sm:$0xff]
      %v1478 = vld [vmem:[%s10 + $0x18] sm:$0xff]
      %v1479 = vld [vmem:[%s10 + $0x20] sm:$0xff]
      %v1480 = vld [vmem:[%s10 + $0x28] sm:$0xff]
      %v1481 = vld [vmem:[%s10 + $0x30] sm:$0xff]
      %v1482 = vld [vmem:[%s10 + $0x38] sm:$0xff]
      %v1484 = vsel %vm692, %v1474, 0
      %1486 = vmatprep.subr.mxu0 0.0
      %1487 = vmatpush1.msra.mxu0 %v1475
      %1488 = vmatprep.subr.mxu0 0.0
      %1489 = vmatpush1.msra.mxu0 %v1476
      %1490 = vmatprep.subr.mxu0 0.0
      %1491 = vmatpush1.msra.mxu0 %v1477
      %1492 = vmatprep.subr.mxu0 0.0
      %1493 = vmatpush1.msra.mxu0 %v1478
      %1494 = vmatprep.subr.mxu0 0.0
      %1495 = vmatpush1.msra.mxu0 %v1479
      %1496 = vmatprep.subr.mxu0 0.0
      %1497 = vmatpush1.msra.mxu0 %v1480
      %1498 = vmatprep.subr.mxu0 0.0
      %1499 = vmatpush1.msra.mxu0 %v1481
      %1500 = vmatprep.subr.mxu0 0.0
      %1501 = vmatpush1.msra.mxu0 %v1482
      %1502 = vmatprep.subr.mxu0 0.0
      %1503 = vmatpush1.msra.mxu0 0.0
      %1504 = vmatprep.subr.mxu0 0.0
      %1505 = vmatpush1.msra.mxu0 0.0
      %1506 = vmatprep.subr.mxu0 0.0
      %1507 = vmatpush1.msra.mxu0 0.0
      %1508 = vmatprep.subr.mxu0 0.0
      %1509 = vmatpush1.msra.mxu0 0.0
      %1510 = vmatprep.subr.mxu0 0.0
      %1511 = vmatpush1.msra.mxu0 0.0
      %1512 = vmatprep.subr.mxu0 0.0
      %1513 = vmatpush1.msra.mxu0 0.0
      %1514 = vmatprep.subr.mxu0 0.0
      %1515 = vmatpush1.msra.mxu0 0.0
      %1516 = vmatprep.subr.mxu0 0.0
      %1517 = vmatpush1.msra.mxu0 0.0
      %1518 = vmatprep.subr.mxu0 0.0
      %1519 = vmatpush1.msra.mxu0 0.0
      %1520 = vmatprep.subr.mxu0 0.0
      %1521 = vmatpush1.msra.mxu0 0.0
      %1522 = vmatprep.subr.mxu0 0.0
      %1523 = vmatpush1.msra.mxu0 0.0
      %1524 = vmatprep.subr.mxu0 0.0
      %1525 = vmatpush1.msra.mxu0 0.0
      %1526 = vmatprep.subr.mxu0 0.0
      %1527 = vmatpush1.msra.mxu0 0.0
      %1528 = vmatprep.subr.mxu0 0.0
      %1529 = vmatpush1.msra.mxu0 0.0
      %1530 = vmatprep.subr.mxu0 0.0
      %1531 = vmatpush1.msra.mxu0 0.0
      %1532 = vmatprep.subr.mxu0 0.0
      %1533 = vmatpush1.msra.mxu0 0.0
      %1534 = vmatprep.subr.mxu0 0.0
      %1535 = vmatpush1.msra.mxu0 0.0
      %1536 = vmatprep.subr.mxu0 0.0
      %1537 = vmatpush1.msra.mxu0 0.0
      %1538 = vmatprep.subr.mxu0 0.0
      %1539 = vmatpush1.msra.mxu0 0.0
      %1540 = vmatprep.subr.mxu0 0.0
      %1541 = vmatpush1.msra.mxu0 0.0
      %1542 = vmatprep.subr.mxu0 0.0
      %1543 = vmatpush1.msra.mxu0 0.0
      %1544 = vmatprep.subr.mxu0 0.0
      %1545 = vmatpush1.msra.mxu0 0.0
      %1546 = vmatprep.subr.mxu0 0.0
      %1547 = vmatpush1.msra.mxu0 0.0
      %1548 = vmatprep.subr.mxu0 0.0
      %1549 = vmatpush1.msra.mxu0 0.0
      %1550 = vmatprep.mubr.f32.mxu0 0.0
      %1551 = vmatmul.mubr.f32.gmra.mrb[0].mxu0 %v1484
      %v1552 = vpop.f32.mrb[0].mxu0
      %v1553 = vadd.f32 %v537, %v1552
      %v1554 = vpop.f32.mrb[0].mxu0
      %1555 = vdwg.mxu0
      %s1556 = scalar_lea.vmem %s2, 1
      %v1557 = vld [vmem:[%s1556] sm:$0x1]
      %v1558 = vmul.f32 %v1553, %v1553
      %v1559 = vsel %vm540, %v1558, 0.0
      %1560 = vadd.xlane.f32.xlu0 %v1559
      %v1561 = vpop.xlane.xlu0 %1560
      %v1562 = vmul.f32 %v1561, %v544
      %v1563 = vadd.f32 %v1562, 1e-05
      %v1564 = vrsqrt.pop %v1563
      %v1565 = vmul.f32 %v1553, %v1564
      %v1567 = vlaneseq
      %v1568 = vshrl.u32 %v1567, 7
      %v1569 = vsub.s32 0, %v1568
      %v1570 = vrot.slane %v1557, %v1569
      %v1572 = vmul.f32 %v1565, %v1570
      %s1573 = scalar_lea.vmem %s3, 32
      %v1574 = vld [vmem:[%s1573] sm:$0xff]
      %v1575 = vld [vmem:[%s1573 + $0x8] sm:$0xff]
      %v1576 = vld [vmem:[%s1573 + $0x10] sm:$0xff]
      %v1577 = vld [vmem:[%s1573 + $0x18] sm:$0xff]
      %v1579 = vsel %vm540, %v1572, 0
      %1581 = vmatprep.subr.mxu0 0.0
      %1582 = vmatpush1.msra.mxu0 %v1574
      %1583 = vmatprep.subr.mxu0 0.0
      %1584 = vmatpush1.msra.mxu0 %v1575
      %1585 = vmatprep.subr.mxu0 0.0
      %1586 = vmatpush1.msra.mxu0 %v1576
      %1587 = vmatprep.subr.mxu0 0.0
      %1588 = vmatpush1.msra.mxu0 %v1577
      %1589 = vmatprep.subr.mxu0 0.0
      %1590 = vmatpush1.msra.mxu0 0.0
      %1591 = vmatprep.subr.mxu0 0.0
      %1592 = vmatpush1.msra.mxu0 0.0
      %1593 = vmatprep.subr.mxu0 0.0
      %1594 = vmatpush1.msra.mxu0 0.0
      %1595 = vmatprep.subr.mxu0 0.0
      %1596 = vmatpush1.msra.mxu0 0.0
      %1597 = vmatprep.subr.mxu0 0.0
      %1598 = vmatpush1.msra.mxu0 0.0
      %1599 = vmatprep.subr.mxu0 0.0
      %1600 = vmatpush1.msra.mxu0 0.0
      %1601 = vmatprep.subr.mxu0 0.0
      %1602 = vmatpush1.msra.mxu0 0.0
      %1603 = vmatprep.subr.mxu0 0.0
      %1604 = vmatpush1.msra.mxu0 0.0
      %1605 = vmatprep.subr.mxu0 0.0
      %1606 = vmatpush1.msra.mxu0 0.0
      %1607 = vmatprep.subr.mxu0 0.0
      %1608 = vmatpush1.msra.mxu0 0.0
      %1609 = vmatprep.subr.mxu0 0.0
      %1610 = vmatpush1.msra.mxu0 0.0
      %1611 = vmatprep.subr.mxu0 0.0
      %1612 = vmatpush1.msra.mxu0 0.0
      %1613 = vmatprep.subr.mxu0 0.0
      %1614 = vmatpush1.msra.mxu0 0.0
      %1615 = vmatprep.subr.mxu0 0.0
      %1616 = vmatpush1.msra.mxu0 0.0
      %1617 = vmatprep.subr.mxu0 0.0
      %1618 = vmatpush1.msra.mxu0 0.0
      %1619 = vmatprep.subr.mxu0 0.0
      %1620 = vmatpush1.msra.mxu0 0.0
      %1621 = vmatprep.subr.mxu0 0.0
      %1622 = vmatpush1.msra.mxu0 0.0
      %1623 = vmatprep.subr.mxu0 0.0
      %1624 = vmatpush1.msra.mxu0 0.0
      %1625 = vmatprep.subr.mxu0 0.0
      %1626 = vmatpush1.msra.mxu0 0.0
      %1627 = vmatprep.subr.mxu0 0.0
      %1628 = vmatpush1.msra.mxu0 0.0
      %1629 = vmatprep.subr.mxu0 0.0
      %1630 = vmatpush1.msra.mxu0 0.0
      %1631 = vmatprep.subr.mxu0 0.0
      %1632 = vmatpush1.msra.mxu0 0.0
      %1633 = vmatprep.subr.mxu0 0.0
      %1634 = vmatpush1.msra.mxu0 0.0
      %1635 = vmatprep.subr.mxu0 0.0
      %1636 = vmatpush1.msra.mxu0 0.0
      %1637 = vmatprep.subr.mxu0 0.0
      %1638 = vmatpush1.msra.mxu0 0.0
      %1639 = vmatprep.subr.mxu0 0.0
      %1640 = vmatpush1.msra.mxu0 0.0
      %1641 = vmatprep.subr.mxu0 0.0
      %1642 = vmatpush1.msra.mxu0 0.0
      %1643 = vmatprep.subr.mxu0 0.0
      %1644 = vmatpush1.msra.mxu0 0.0
      %1645 = vmatprep.mubr.f32.mxu0 0.0
      %1646 = vmatmul.mubr.f32.gmra.mrb[0].mxu0 %v1579
      %v1647 = vpop.f32.mrb[0].mxu0
      %v1648 = vadd.f32 0.0, %v1647
      %v1649 = vpop.f32.mrb[0].mxu0
      %1650 = vdwg.mxu0
      %s1651 = scalar_lea.vmem %s4, 4
      %v1652 = vld [vmem:[%s1651] sm:$0xf]
      %s1653 = scalar_lea.vmem %s5, 1
      %v1654 = vld [vmem:[%s1653] sm:$0x1]
      %v1656 = vlaneseq
      %v1657 = vshrl.u32 %v1656, 7
      %v1658 = vsub.s32 0, %v1657
      %v1659 = vrot.slane %v1654, %v1658
      %v1661 = vrot.slane %v1648, 5
      %v1662 = vsel %vm643, %v1661, 0.0
      %v1663 = vlaneseq
      %v1664 = vshrl.u32 %v1663, 7
      %v1665 = vsub.s32 0, %v1664
      %v1666 = vrot.slane %v1652, %v1665
      %v1667 = vmul.f32 %v1662, %v1666
      %v1668 = vadd.f32 %v1659, %v1667
      %v1669 = vrot.slane %v1648, 6
      %v1670 = vsel %vm653, %v1669, 0.0
      %v1671 = vlaneseq
      %v1672 = vshrl.u32 %v1671, 7
      %v1673 = vsub.s32 1, %v1672
      %v1674 = vrot.slane %v1652, %v1673
      %v1675 = vmul.f32 %v1670, %v1674
      %v1676 = vadd.f32 %v1668, %v1675
      %v1677 = vrot.slane %v1648, 7
      %v1678 = vsel %vm663, %v1677, 0.0
      %v1679 = vlaneseq
      %v1680 = vshrl.u32 %v1679, 7
      %v1681 = vsub.s32 2, %v1680
      %v1682 = vrot.slane %v1652, %v1681
      %v1683 = vmul.f32 %v1678, %v1682
      %v1684 = vadd.f32 %v1676, %v1683
      %v1685 = vlaneseq
      %v1686 = vshrl.u32 %v1685, 7
      %v1687 = vsub.s32 3, %v1686
      %v1688 = vrot.slane %v1652, %v1687
      %v1689 = vmul.f32 %v1648, %v1688
      %v1690 = vadd.f32 %v1684, %v1689
      %v1691 = vxor.u32 %v1690, 2147483648
      %v1692 = vmul.f32 %v1691, 1.442695
      %v1693 = vpow.pop %v1692
      %v1694 = vadd.f32 %v1693, 1.0
      %v1695 = vrcp.pop %v1694
      %v1696 = vmul.f32 1.0, %v1695
      %v1697 = vmul.f32 %v1690, %v1696
      %s1698 = scalar_lea.vmem %s6, 64
      %v1699 = vld [vmem:[%s1698] sm:$0xff]
      %v1700 = vld [vmem:[%s1698 + $0x8] sm:$0xff]
      %v1701 = vld [vmem:[%s1698 + $0x10] sm:$0xff]
      %v1702 = vld [vmem:[%s1698 + $0x18] sm:$0xff]
      %v1703 = vld [vmem:[%s1698 + $0x20] sm:$0xff]
      %v1704 = vld [vmem:[%s1698 + $0x28] sm:$0xff]
      %v1705 = vld [vmem:[%s1698 + $0x30] sm:$0xff]
      %v1706 = vld [vmem:[%s1698 + $0x38] sm:$0xff]
      %v1708 = vsel %vm692, %v1697, 0
      %1710 = vmatprep.subr.mxu0 0.0
      %1711 = vmatpush1.msra.mxu0 %v1699
      %1712 = vmatprep.subr.mxu0 0.0
      %1713 = vmatpush1.msra.mxu0 %v1700
      %1714 = vmatprep.subr.mxu0 0.0
      %1715 = vmatpush1.msra.mxu0 %v1701
      %1716 = vmatprep.subr.mxu0 0.0
      %1717 = vmatpush1.msra.mxu0 %v1702
      %1718 = vmatprep.subr.mxu0 0.0
      %1719 = vmatpush1.msra.mxu0 %v1703
      %1720 = vmatprep.subr.mxu0 0.0
      %1721 = vmatpush1.msra.mxu0 %v1704
      %1722 = vmatprep.subr.mxu0 0.0
      %1723 = vmatpush1.msra.mxu0 %v1705
      %1724 = vmatprep.subr.mxu0 0.0
      %1725 = vmatpush1.msra.mxu0 %v1706
      %1726 = vmatprep.subr.mxu0 0.0
      %1727 = vmatpush1.msra.mxu0 0.0
      %1728 = vmatprep.subr.mxu0 0.0
      %1729 = vmatpush1.msra.mxu0 0.0
      %1730 = vmatprep.subr.mxu0 0.0
      %1731 = vmatpush1.msra.mxu0 0.0
      %1732 = vmatprep.subr.mxu0 0.0
      %1733 = vmatpush1.msra.mxu0 0.0
      %1734 = vmatprep.subr.mxu0 0.0
      %1735 = vmatpush1.msra.mxu0 0.0
      %1736 = vmatprep.subr.mxu0 0.0
      %1737 = vmatpush1.msra.mxu0 0.0
      %1738 = vmatprep.subr.mxu0 0.0
      %1739 = vmatpush1.msra.mxu0 0.0
      %1740 = vmatprep.subr.mxu0 0.0
      %1741 = vmatpush1.msra.mxu0 0.0
      %1742 = vmatprep.subr.mxu0 0.0
      %1743 = vmatpush1.msra.mxu0 0.0
      %1744 = vmatprep.subr.mxu0 0.0
      %1745 = vmatpush1.msra.mxu0 0.0
      %1746 = vmatprep.subr.mxu0 0.0
      %1747 = vmatpush1.msra.mxu0 0.0
      %1748 = vmatprep.subr.mxu0 0.0
      %1749 = vmatpush1.msra.mxu0 0.0
      %1750 = vmatprep.subr.mxu0 0.0
      %1751 = vmatpush1.msra.mxu0 0.0
      %1752 = vmatprep.subr.mxu0 0.0
      %1753 = vmatpush1.msra.mxu0 0.0
      %1754 = vmatprep.subr.mxu0 0.0
      %1755 = vmatpush1.msra.mxu0 0.0
      %1756 = vmatprep.subr.mxu0 0.0
      %1757 = vmatpush1.msra.mxu0 0.0
      %1758 = vmatprep.subr.mxu0 0.0
      %1759 = vmatpush1.msra.mxu0 0.0
      %1760 = vmatprep.subr.mxu0 0.0
      %1761 = vmatpush1.msra.mxu0 0.0
      %1762 = vmatprep.subr.mxu0 0.0
      %1763 = vmatpush1.msra.mxu0 0.0
      %1764 = vmatprep.subr.mxu0 0.0
      %1765 = vmatpush1.msra.mxu0 0.0
      %1766 = vmatprep.subr.mxu0 0.0
      %1767 = vmatpush1.msra.mxu0 0.0
      %1768 = vmatprep.subr.mxu0 0.0
      %1769 = vmatpush1.msra.mxu0 0.0
      %1770 = vmatprep.subr.mxu0 0.0
      %1771 = vmatpush1.msra.mxu0 0.0
      %1772 = vmatprep.subr.mxu0 0.0
      %1773 = vmatpush1.msra.mxu0 0.0
      %1774 = vmatprep.mubr.f32.mxu0 0.0
      %1775 = vmatmul.mubr.f32.gmra.mrb[0].mxu0 %v1708
      %v1776 = vpop.f32.mrb[0].mxu0
      %v1777 = vadd.f32 0.0, %v1776
      %v1778 = vpop.f32.mrb[0].mxu0
      %1779 = vdwg.mxu0
      %s1780 = scalar_lea.vmem %s7, 1
      %v1781 = vld [vmem:[%s1780] sm:$0x1]
      %v1783 = vlaneseq
      %v1784 = vshrl.u32 %v1783, 7
      %v1785 = vsub.s32 0, %v1784
      %v1786 = vrot.slane %v1781, %v1785
      %v1788 = vadd.f32 %v1777, %v1786
      %vm1789 = vcmp.gt.f32.partialorder %v1788, 20.0
      %v1790 = vmin.f32 %v1788, 20.0
      %v1791 = vmul.f32 %v1790, 1.442695
      %v1792 = vpow.pop %v1791
      %v1793 = vadd.f32 %v1792, 1.0
      %v1794 = vlog2.pop %v1793
      %v1795 = vmul.f32 %v1794, 0.6931472
      %v1796 = vmul.f32 -0.5, %v1792
      %v1797 = vadd.f32 %v1796, 1.0
      %v1798 = vmul.f32 %v1797, %v1792
      %v1799 = vand.u32 2147483647, %v1792
      %vm1800 = vcmp.lt.f32.partialorder %v1799, 0.0004427343
      %v1801 = vsel %vm1800, %v1798, %v1795
      %v1802 = vsel %vm1789, %v1788, %v1801
      %s1803 = scalar_lea.vmem %s8, 16
      %v1804 = vld [vmem:[%s1803] sm:$0xff]
      %v1805 = vld [vmem:[%s1803 + $0x8] sm:$0xff]
      %v1806 = vmul.f32 %v1804, 1.442695
      %v1807 = vpow.pop %v1806
      %v1808 = vmul.f32 %v1805, 1.442695
      %v1809 = vpow.pop %v1808
      %v1810 = vsub.f32 0.0, %v1807
      %v1811 = vsub.f32 0.0, %v1809
      %v1813 = vcombine.high %v1802, %v1802
      %v1815 = vunpack.c.l.s4 1966171168
      %v1816 = vunpack.c.0.s8 %v1815
      %v1817 = vlaneseq
      %v1818 = vshrl.u32 %v1817, 7
      %v1819 = vsub.s32 %v1816, %v1818
      %v1820 = vrot.slane %v1802, %v1819
      %v1822 = vunpack.c.l.s4 1966171168
      %v1823 = vunpack.c.0.s8 %v1822
      %v1824 = vlaneseq
      %v1825 = vshrl.u32 %v1824, 7
      %v1826 = vsub.s32 %v1823, %v1825
      %v1827 = vrot.slane %v1813, %v1826
      %v1828 = vcombine.high %v1820, %v1820
      %v1829 = vcombine.high %v1827, %v1827
      %v1831 = vunpack.c.l.s4 1966171168
      %v1832 = vunpack.c.0.s8 %v1831
      %v1833 = vlaneseq
      %v1834 = vshrl.u32 %v1833, 7
      %v1835 = vsub.s32 %v1832, %v1834
      %v1836 = vrot.slane %v1820, %v1835
      %v1838 = vunpack.c.l.s4 1966171168
      %v1839 = vunpack.c.0.s8 %v1838
      %v1840 = vlaneseq
      %v1841 = vshrl.u32 %v1840, 7
      %v1842 = vsub.s32 %v1839, %v1841
      %v1843 = vrot.slane %v1827, %v1842
      %v1845 = vunpack.c.l.s4 1966171168
      %v1846 = vunpack.c.0.s8 %v1845
      %v1847 = vlaneseq
      %v1848 = vshrl.u32 %v1847, 7
      %v1849 = vsub.s32 %v1846, %v1848
      %v1850 = vrot.slane %v1828, %v1849
      %v1852 = vunpack.c.l.s4 1966171168
      %v1853 = vunpack.c.0.s8 %v1852
      %v1854 = vlaneseq
      %v1855 = vshrl.u32 %v1854, 7
      %v1856 = vsub.s32 %v1853, %v1855
      %v1857 = vrot.slane %v1829, %v1856
      %v1858 = vcombine.high %v1836, %v1836
      %v1859 = vcombine.high %v1843, %v1843
      %v1860 = vcombine.high %v1850, %v1850
      %v1861 = vcombine.high %v1857, %v1857
      %v1862 = vlaneseq
      %v1863 = vshrl.u32 %v1862, 7
      %v1864 = vsub.s32 0, %v1863
      %v1865 = vrot.slane %v1836, %v1864
      %v1866 = vlaneseq
      %v1867 = vshrl.u32 %v1866, 7
      %v1868 = vsub.s32 0, %v1867
      %v1869 = vrot.slane %v1850, %v1868
      %v1870 = vlaneseq
      %v1871 = vshrl.u32 %v1870, 7
      %v1872 = vsub.s32 0, %v1871
      %v1873 = vrot.slane %v1858, %v1872
      %v1874 = vlaneseq
      %v1875 = vshrl.u32 %v1874, 7
      %v1876 = vsub.s32 0, %v1875
      %v1877 = vrot.slane %v1860, %v1876
      %v1878 = vlaneseq
      %v1879 = vshrl.u32 %v1878, 7
      %v1880 = vsub.s32 0, %v1879
      %v1881 = vrot.slane %v1843, %v1880
      %v1882 = vlaneseq
      %v1883 = vshrl.u32 %v1882, 7
      %v1884 = vsub.s32 0, %v1883
      %v1885 = vrot.slane %v1857, %v1884
      %v1886 = vlaneseq
      %v1887 = vshrl.u32 %v1886, 7
      %v1888 = vsub.s32 0, %v1887
      %v1889 = vrot.slane %v1859, %v1888
      %v1890 = vlaneseq
      %v1891 = vshrl.u32 %v1890, 7
      %v1892 = vsub.s32 0, %v1891
      %v1893 = vrot.slane %v1861, %v1892
      %v1902 = vmul.f32 %v1865, %v1810
      %v1903 = vmul.f32 %v1865, %v1811
      %v1904 = vmul.f32 %v1869, %v1810
      %v1905 = vmul.f32 %v1869, %v1811
      %v1906 = vmul.f32 %v1873, %v1810
      %v1907 = vmul.f32 %v1873, %v1811
      %v1908 = vmul.f32 %v1877, %v1810
      %v1909 = vmul.f32 %v1877, %v1811
      %v1910 = vmul.f32 %v1881, %v1810
      %v1911 = vmul.f32 %v1881, %v1811
      %v1912 = vmul.f32 %v1885, %v1810
      %v1913 = vmul.f32 %v1885, %v1811
      %v1914 = vmul.f32 %v1889, %v1810
      %v1915 = vmul.f32 %v1889, %v1811
      %v1916 = vmul.f32 %v1893, %v1810
      %v1917 = vmul.f32 %v1893, %v1811
      %v1918 = vmul.f32 %v1902, 1.442695
      %v1919 = vpow.pop %v1918
      %v1920 = vmul.f32 %v1903, 1.442695
      %v1921 = vpow.pop %v1920
      %v1922 = vmul.f32 %v1904, 1.442695
      %v1923 = vpow.pop %v1922
      %v1924 = vmul.f32 %v1905, 1.442695
      %v1925 = vpow.pop %v1924
      %v1926 = vmul.f32 %v1906, 1.442695
      %v1927 = vpow.pop %v1926
      %v1928 = vmul.f32 %v1907, 1.442695
      %v1929 = vpow.pop %v1928
      %v1930 = vmul.f32 %v1908, 1.442695
      %v1931 = vpow.pop %v1930
      %v1932 = vmul.f32 %v1909, 1.442695
      %v1933 = vpow.pop %v1932
      %v1934 = vmul.f32 %v1910, 1.442695
      %v1935 = vpow.pop %v1934
      %v1936 = vmul.f32 %v1911, 1.442695
      %v1937 = vpow.pop %v1936
      %v1938 = vmul.f32 %v1912, 1.442695
      %v1939 = vpow.pop %v1938
      %v1940 = vmul.f32 %v1913, 1.442695
      %v1941 = vpow.pop %v1940
      %v1942 = vmul.f32 %v1914, 1.442695
      %v1943 = vpow.pop %v1942
      %v1944 = vmul.f32 %v1915, 1.442695
      %v1945 = vpow.pop %v1944
      %v1946 = vmul.f32 %v1916, 1.442695
      %v1947 = vpow.pop %v1946
      %v1948 = vmul.f32 %v1917, 1.442695
      %v1949 = vpow.pop %v1948
      %1950 = vst.msk [vmem:[#allocation2] sm:$0xff] %vm692, %v1919
      %1951 = vst.msk [vmem:[#allocation2 + $0x8] sm:$0xff] %vm692, %v1921
      %1952 = vst.msk [vmem:[#allocation2 + $0x10] sm:$0xff] %vm692, %v1923
      %1953 = vst.msk [vmem:[#allocation2 + $0x18] sm:$0xff] %vm692, %v1925
      %1954 = vst.msk [vmem:[#allocation2 + $0x20] sm:$0xff] %vm692, %v1927
      %1955 = vst.msk [vmem:[#allocation2 + $0x28] sm:$0xff] %vm692, %v1929
      %1956 = vst.msk [vmem:[#allocation2 + $0x30] sm:$0xff] %vm692, %v1931
      %1957 = vst.msk [vmem:[#allocation2 + $0x38] sm:$0xff] %vm692, %v1933
      %1958 = vst.msk [vmem:[#allocation2 + $0x40] sm:$0xff] %vm692, %v1935
      %1959 = vst.msk [vmem:[#allocation2 + $0x48] sm:$0xff] %vm692, %v1937
      %1960 = vst.msk [vmem:[#allocation2 + $0x50] sm:$0xff] %vm692, %v1939
      %1961 = vst.msk [vmem:[#allocation2 + $0x58] sm:$0xff] %vm692, %v1941
      %1962 = vst.msk [vmem:[#allocation2 + $0x60] sm:$0xff] %vm692, %v1943
      %1963 = vst.msk [vmem:[#allocation2 + $0x68] sm:$0xff] %vm692, %v1945
      %1964 = vst.msk [vmem:[#allocation2 + $0x70] sm:$0xff] %vm692, %v1947
      %1965 = vst.msk [vmem:[#allocation2 + $0x78] sm:$0xff] %vm692, %v1949
      %v1966 = vmul.f32 %v1802, %v1697
      %v1968 = vcombine.high %v1966, %v1966
      %v1970 = vunpack.c.l.s4 1966171168
      %v1971 = vunpack.c.0.s8 %v1970
      %v1972 = vlaneseq
      %v1973 = vshrl.u32 %v1972, 7
      %v1974 = vsub.s32 %v1971, %v1973
      %v1975 = vrot.slane %v1966, %v1974
      %v1977 = vunpack.c.l.s4 1966171168
      %v1978 = vunpack.c.0.s8 %v1977
      %v1979 = vlaneseq
      %v1980 = vshrl.u32 %v1979, 7
      %v1981 = vsub.s32 %v1978, %v1980
      %v1982 = vrot.slane %v1968, %v1981
      %v1983 = vcombine.high %v1975, %v1975
      %v1984 = vcombine.high %v1982, %v1982
      %v1986 = vunpack.c.l.s4 1966171168
      %v1987 = vunpack.c.0.s8 %v1986
      %v1988 = vlaneseq
      %v1989 = vshrl.u32 %v1988, 7
      %v1990 = vsub.s32 %v1987, %v1989
      %v1991 = vrot.slane %v1975, %v1990
      %v1993 = vunpack.c.l.s4 1966171168
      %v1994 = vunpack.c.0.s8 %v1993
      %v1995 = vlaneseq
      %v1996 = vshrl.u32 %v1995, 7
      %v1997 = vsub.s32 %v1994, %v1996
      %v1998 = vrot.slane %v1982, %v1997
      %v2000 = vunpack.c.l.s4 1966171168
      %v2001 = vunpack.c.0.s8 %v2000
      %v2002 = vlaneseq
      %v2003 = vshrl.u32 %v2002, 7
      %v2004 = vsub.s32 %v2001, %v2003
      %v2005 = vrot.slane %v1983, %v2004
      %v2007 = vunpack.c.l.s4 1966171168
      %v2008 = vunpack.c.0.s8 %v2007
      %v2009 = vlaneseq
      %v2010 = vshrl.u32 %v2009, 7
      %v2011 = vsub.s32 %v2008, %v2010
      %v2012 = vrot.slane %v1984, %v2011
      %v2013 = vcombine.high %v1991, %v1991
      %v2014 = vcombine.high %v1998, %v1998
      %v2015 = vcombine.high %v2005, %v2005
      %v2016 = vcombine.high %v2012, %v2012
      %v2017 = vlaneseq
      %v2018 = vshrl.u32 %v2017, 7
      %v2019 = vsub.s32 0, %v2018
      %v2020 = vrot.slane %v1777, %v2019
      %s2022 = sor.u32 256, 64
      %2023 = vbcast.lane.b32.xlu0 %v2020, %s2022
      %v2024 = vpop.permute.xlu0 %2023
      %s2026 = sor.u32 256, 72
      %2027 = vbcast.lane.b32.xlu0 %v2020, %s2026
      %v2028 = vpop.permute.xlu0 %2027
      %v2029 = vlaneseq
      %v2030 = vshrl.u32 %v2029, 7
      %v2031 = vsub.s32 1, %v2030
      %v2032 = vrot.slane %v1777, %v2031
      %s2034 = sor.u32 256, 64
      %2035 = vbcast.lane.b32.xlu0 %v2032, %s2034
      %v2036 = vpop.permute.xlu0 %2035
      %s2038 = sor.u32 256, 72
      %2039 = vbcast.lane.b32.xlu0 %v2032, %s2038
      %v2040 = vpop.permute.xlu0 %2039
      %v2041 = vlaneseq
      %v2042 = vshrl.u32 %v2041, 7
      %v2043 = vsub.s32 2, %v2042
      %v2044 = vrot.slane %v1777, %v2043
      %s2046 = sor.u32 256, 64
      %2047 = vbcast.lane.b32.xlu0 %v2044, %s2046
      %v2048 = vpop.permute.xlu0 %2047
      %s2050 = sor.u32 256, 72
      %2051 = vbcast.lane.b32.xlu0 %v2044, %s2050
      %v2052 = vpop.permute.xlu0 %2051
      %v2053 = vlaneseq
      %v2054 = vshrl.u32 %v2053, 7
      %v2055 = vsub.s32 3, %v2054
      %v2056 = vrot.slane %v1777, %v2055
      %s2058 = sor.u32 256, 64
      %2059 = vbcast.lane.b32.xlu0 %v2056, %s2058
      %v2060 = vpop.permute.xlu0 %2059
      %s2062 = sor.u32 256, 72
      %2063 = vbcast.lane.b32.xlu0 %v2056, %s2062
      %v2064 = vpop.permute.xlu0 %2063
      %v2065 = vlaneseq
      %v2066 = vshrl.u32 %v2065, 7
      %v2067 = vsub.s32 4, %v2066
      %v2068 = vrot.slane %v1777, %v2067
      %s2070 = sor.u32 256, 64
      %2071 = vbcast.lane.b32.xlu0 %v2068, %s2070
      %v2072 = vpop.permute.xlu0 %2071
      %s2074 = sor.u32 256, 72
      %2075 = vbcast.lane.b32.xlu0 %v2068, %s2074
      %v2076 = vpop.permute.xlu0 %2075
      %v2077 = vlaneseq
      %v2078 = vshrl.u32 %v2077, 7
      %v2079 = vsub.s32 5, %v2078
      %v2080 = vrot.slane %v1777, %v2079
      %s2082 = sor.u32 256, 64
      %2083 = vbcast.lane.b32.xlu0 %v2080, %s2082
      %v2084 = vpop.permute.xlu0 %2083
      %s2086 = sor.u32 256, 72
      %2087 = vbcast.lane.b32.xlu0 %v2080, %s2086
      %v2088 = vpop.permute.xlu0 %2087
      %v2089 = vlaneseq
      %v2090 = vshrl.u32 %v2089, 7
      %v2091 = vsub.s32 6, %v2090
      %v2092 = vrot.slane %v1777, %v2091
      %s2094 = sor.u32 256, 64
      %2095 = vbcast.lane.b32.xlu0 %v2092, %s2094
      %v2096 = vpop.permute.xlu0 %2095
      %s2098 = sor.u32 256, 72
      %2099 = vbcast.lane.b32.xlu0 %v2092, %s2098
      %v2100 = vpop.permute.xlu0 %2099
      %v2101 = vlaneseq
      %v2102 = vshrl.u32 %v2101, 7
      %v2103 = vsub.s32 7, %v2102
      %v2104 = vrot.slane %v1777, %v2103
      %s2106 = sor.u32 256, 64
      %2107 = vbcast.lane.b32.xlu0 %v2104, %s2106
      %v2108 = vpop.permute.xlu0 %2107
      %s2110 = sor.u32 256, 72
      %2111 = vbcast.lane.b32.xlu0 %v2104, %s2110
      %v2112 = vpop.permute.xlu0 %2111
      %v2113 = vlaneseq
      %v2114 = vshrl.u32 %v2113, 7
      %v2115 = vsub.s32 0, %v2114
      %v2116 = vrot.slane %v1991, %v2115
      %v2117 = vlaneseq
      %v2118 = vshrl.u32 %v2117, 7
      %v2119 = vsub.s32 0, %v2118
      %v2120 = vrot.slane %v2005, %v2119
      %v2121 = vlaneseq
      %v2122 = vshrl.u32 %v2121, 7
      %v2123 = vsub.s32 0, %v2122
      %v2124 = vrot.slane %v2013, %v2123
      %v2125 = vlaneseq
      %v2126 = vshrl.u32 %v2125, 7
      %v2127 = vsub.s32 0, %v2126
      %v2128 = vrot.slane %v2015, %v2127
      %v2129 = vlaneseq
      %v2130 = vshrl.u32 %v2129, 7
      %v2131 = vsub.s32 0, %v2130
      %v2132 = vrot.slane %v1998, %v2131
      %v2133 = vlaneseq
      %v2134 = vshrl.u32 %v2133, 7
      %v2135 = vsub.s32 0, %v2134
      %v2136 = vrot.slane %v2012, %v2135
      %v2137 = vlaneseq
      %v2138 = vshrl.u32 %v2137, 7
      %v2139 = vsub.s32 0, %v2138
      %v2140 = vrot.slane %v2014, %v2139
      %v2141 = vlaneseq
      %v2142 = vshrl.u32 %v2141, 7
      %v2143 = vsub.s32 0, %v2142
      %v2144 = vrot.slane %v2016, %v2143
      %v2153 = vmul.f32 %v2116, %v2024
      %v2154 = vmul.f32 %v2116, %v2028
      %v2155 = vmul.f32 %v2120, %v2036
      %v2156 = vmul.f32 %v2120, %v2040
      %v2157 = vmul.f32 %v2124, %v2048
      %v2158 = vmul.f32 %v2124, %v2052
      %v2159 = vmul.f32 %v2128, %v2060
      %v2160 = vmul.f32 %v2128, %v2064
      %v2161 = vmul.f32 %v2132, %v2072
      %v2162 = vmul.f32 %v2132, %v2076
      %v2163 = vmul.f32 %v2136, %v2084
      %v2164 = vmul.f32 %v2136, %v2088
      %v2165 = vmul.f32 %v2140, %v2096
      %v2166 = vmul.f32 %v2140, %v2100
      %v2167 = vmul.f32 %v2144, %v2108
      %v2168 = vmul.f32 %v2144, %v2112
      %2169 = vst.msk [vmem:[#allocation3] sm:$0xff] %vm692, %v2153
      %2170 = vst.msk [vmem:[#allocation3 + $0x8] sm:$0xff] %vm692, %v2154
      %2171 = vst.msk [vmem:[#allocation3 + $0x10] sm:$0xff] %vm692, %v2155
      %2172 = vst.msk [vmem:[#allocation3 + $0x18] sm:$0xff] %vm692, %v2156
      %2173 = vst.msk [vmem:[#allocation3 + $0x20] sm:$0xff] %vm692, %v2157
      %2174 = vst.msk [vmem:[#allocation3 + $0x28] sm:$0xff] %vm692, %v2158
      %2175 = vst.msk [vmem:[#allocation3 + $0x30] sm:$0xff] %vm692, %v2159
      %2176 = vst.msk [vmem:[#allocation3 + $0x38] sm:$0xff] %vm692, %v2160
      %2177 = vst.msk [vmem:[#allocation3 + $0x40] sm:$0xff] %vm692, %v2161
      %2178 = vst.msk [vmem:[#allocation3 + $0x48] sm:$0xff] %vm692, %v2162
      %2179 = vst.msk [vmem:[#allocation3 + $0x50] sm:$0xff] %vm692, %v2163
      %2180 = vst.msk [vmem:[#allocation3 + $0x58] sm:$0xff] %vm692, %v2164
      %2181 = vst.msk [vmem:[#allocation3 + $0x60] sm:$0xff] %vm692, %v2165
      %2182 = vst.msk [vmem:[#allocation3 + $0x68] sm:$0xff] %vm692, %v2166
      %2183 = vst.msk [vmem:[#allocation3 + $0x70] sm:$0xff] %vm692, %v2167
      %2184 = vst.msk [vmem:[#allocation3 + $0x78] sm:$0xff] %vm692, %v2168
      %s2186 = sor.u32 256, 80
      %2187 = vbcast.lane.b32.xlu0 %v2020, %s2186
      %v2188 = vpop.permute.xlu0 %2187
      %s2190 = sor.u32 256, 88
      %2191 = vbcast.lane.b32.xlu0 %v2020, %s2190
      %v2192 = vpop.permute.xlu0 %2191
      %s2194 = sor.u32 256, 80
      %2195 = vbcast.lane.b32.xlu0 %v2032, %s2194
      %v2196 = vpop.permute.xlu0 %2195
      %s2198 = sor.u32 256, 88
      %2199 = vbcast.lane.b32.xlu0 %v2032, %s2198
      %v2200 = vpop.permute.xlu0 %2199
      %s2202 = sor.u32 256, 80
      %2203 = vbcast.lane.b32.xlu0 %v2044, %s2202
      %v2204 = vpop.permute.xlu0 %2203
      %s2206 = sor.u32 256, 88
      %2207 = vbcast.lane.b32.xlu0 %v2044, %s2206
      %v2208 = vpop.permute.xlu0 %2207
      %s2210 = sor.u32 256, 80
      %2211 = vbcast.lane.b32.xlu0 %v2056, %s2210
      %v2212 = vpop.permute.xlu0 %2211
      %s2214 = sor.u32 256, 88
      %2215 = vbcast.lane.b32.xlu0 %v2056, %s2214
      %v2216 = vpop.permute.xlu0 %2215
      %s2218 = sor.u32 256, 80
      %2219 = vbcast.lane.b32.xlu0 %v2068, %s2218
      %v2220 = vpop.permute.xlu0 %2219
      %s2222 = sor.u32 256, 88
      %2223 = vbcast.lane.b32.xlu0 %v2068, %s2222
      %v2224 = vpop.permute.xlu0 %2223
      %s2226 = sor.u32 256, 80
      %2227 = vbcast.lane.b32.xlu0 %v2080, %s2226
      %v2228 = vpop.permute.xlu0 %2227
      %s2230 = sor.u32 256, 88
      %2231 = vbcast.lane.b32.xlu0 %v2080, %s2230
      %v2232 = vpop.permute.xlu0 %2231
      %s2234 = sor.u32 256, 80
      %2235 = vbcast.lane.b32.xlu0 %v2092, %s2234
      %v2236 = vpop.permute.xlu0 %2235
      %s2238 = sor.u32 256, 88
      %2239 = vbcast.lane.b32.xlu0 %v2092, %s2238
      %v2240 = vpop.permute.xlu0 %2239
      %s2242 = sor.u32 256, 80
      %2243 = vbcast.lane.b32.xlu0 %v2104, %s2242
      %v2244 = vpop.permute.xlu0 %2243
      %s2246 = sor.u32 256, 88
      %2247 = vbcast.lane.b32.xlu0 %v2104, %s2246
      %v2248 = vpop.permute.xlu0 %2247
      %2249 = vst.msk [vmem:[#allocation4] sm:$0xff] %vm692, %v2188
      %2250 = vst.msk [vmem:[#allocation4 + $0x8] sm:$0xff] %vm692, %v2192
      %2251 = vst.msk [vmem:[#allocation4 + $0x10] sm:$0xff] %vm692, %v2196
      %2252 = vst.msk [vmem:[#allocation4 + $0x18] sm:$0xff] %vm692, %v2200
      %2253 = vst.msk [vmem:[#allocation4 + $0x20] sm:$0xff] %vm692, %v2204
      %2254 = vst.msk [vmem:[#allocation4 + $0x28] sm:$0xff] %vm692, %v2208
      %2255 = vst.msk [vmem:[#allocation4 + $0x30] sm:$0xff] %vm692, %v2212
      %2256 = vst.msk [vmem:[#allocation4 + $0x38] sm:$0xff] %vm692, %v2216
      %2257 = vst.msk [vmem:[#allocation4 + $0x40] sm:$0xff] %vm692, %v2220
      %2258 = vst.msk [vmem:[#allocation4 + $0x48] sm:$0xff] %vm692, %v2224
      %2259 = vst.msk [vmem:[#allocation4 + $0x50] sm:$0xff] %vm692, %v2228
      %2260 = vst.msk [vmem:[#allocation4 + $0x58] sm:$0xff] %vm692, %v2232
      %2261 = vst.msk [vmem:[#allocation4 + $0x60] sm:$0xff] %vm692, %v2236
      %2262 = vst.msk [vmem:[#allocation4 + $0x68] sm:$0xff] %vm692, %v2240
      %2263 = vst.msk [vmem:[#allocation4 + $0x70] sm:$0xff] %vm692, %v2244
      %2264 = vst.msk [vmem:[#allocation4 + $0x78] sm:$0xff] %vm692, %v2248
      %v2265 = vld [vmem:[#allocation2] sm:$0xff]
      %v2266 = vld [vmem:[#allocation2 + $0x8] sm:$0xff]
      %v2267 = vld [vmem:[#allocation3] sm:$0xff]
      %v2268 = vld [vmem:[#allocation3 + $0x8] sm:$0xff]
      %v2269 = vld [vmem:[#allocation4] sm:$0xff]
      %v2270 = vld [vmem:[#allocation4 + $0x8] sm:$0xff]
      %v2271 = vmul.f32 %v2265, 0.0
      %v2272 = vmul.f32 %v2266, 0.0
      %v2273 = vadd.f32 %v2271, %v2267
      %v2274 = vadd.f32 %v2272, %v2268
      %v2275 = vmul.f32 %v2273, %v2269
      %v2276 = vmul.f32 %v2274, %v2270
      %v2277 = vsel %vm692, %v2275, 0.0
      %v2278 = vsel %vm692, %v2276, 0.0
      %v2279 = vadd.f32 %v2277, %v2278
      %v2280 = vrot.slane %v2279, 4
      %v2281 = vadd.f32 %v2279, %v2280
      %v2282 = vrot.slane %v2281, 2
      %v2283 = vadd.f32 %v2281, %v2282
      %v2284 = vrot.slane %v2283, 1
      %v2285 = vadd.f32 %v2283, %v2284
      %v2286 = vld [vmem:[%s1270] sm:$0xff]
      %v2287 = vld [vmem:[%s1270 + $0x8] sm:$0xff]
      %v2288 = vld [vmem:[%s1273] sm:$0xff]
      %v2289 = vld [vmem:[%s1273 + $0x8] sm:$0xff]
      %v2290 = vld [vmem:[%s1276] sm:$0xff]
      %v2291 = vld [vmem:[%s1276 + $0x8] sm:$0xff]
      %v2292 = vmul.f32 %v2286, %v2273
      %v2293 = vmul.f32 %v2287, %v2274
      %v2294 = vadd.f32 %v2292, %v2288
      %v2295 = vadd.f32 %v2293, %v2289
      %v2296 = vmul.f32 %v2294, %v2290
      %v2297 = vmul.f32 %v2295, %v2291
      %v2298 = vsel %vm692, %v2296, 0.0
      %v2299 = vsel %vm692, %v2297, 0.0
      %v2300 = vadd.f32 %v2298, %v2299
      %v2301 = vrot.slane %v2300, 4
      %v2302 = vadd.f32 %v2300, %v2301
      %v2303 = vrot.slane %v2302, 2
      %v2304 = vadd.f32 %v2302, %v2303
      %v2305 = vrot.slane %v2304, 1
      %v2306 = vadd.f32 %v2304, %v2305
      %v2307 = vld [vmem:[%s1294] sm:$0xff]
      %v2308 = vld [vmem:[%s1294 + $0x8] sm:$0xff]
      %v2309 = vld [vmem:[%s1297] sm:$0xff]
      %v2310 = vld [vmem:[%s1297 + $0x8] sm:$0xff]
      %v2311 = vld [vmem:[%s1300] sm:$0xff]
      %v2312 = vld [vmem:[%s1300 + $0x8] sm:$0xff]
      %v2313 = vmul.f32 %v2307, %v2294
      %v2314 = vmul.f32 %v2308, %v2295
      %v2315 = vadd.f32 %v2313, %v2309
      %v2316 = vadd.f32 %v2314, %v2310
      %v2317 = vmul.f32 %v2315, %v2311
      %v2318 = vmul.f32 %v2316, %v2312
      %v2319 = vsel %vm692, %v2317, 0.0
      %v2320 = vsel %vm692, %v2318, 0.0
      %v2321 = vadd.f32 %v2319, %v2320
      %v2322 = vrot.slane %v2321, 4
      %v2323 = vadd.f32 %v2321, %v2322
      %v2324 = vrot.slane %v2323, 2
      %v2325 = vadd.f32 %v2323, %v2324
      %v2326 = vrot.slane %v2325, 1
      %v2327 = vadd.f32 %v2325, %v2326
      %v2328 = vld [vmem:[%s1318] sm:$0xff]
      %v2329 = vld [vmem:[%s1318 + $0x8] sm:$0xff]
      %v2330 = vld [vmem:[%s1321] sm:$0xff]
      %v2331 = vld [vmem:[%s1321 + $0x8] sm:$0xff]
      %v2332 = vld [vmem:[%s1324] sm:$0xff]
      %v2333 = vld [vmem:[%s1324 + $0x8] sm:$0xff]
      %v2334 = vmul.f32 %v2328, %v2315
      %v2335 = vmul.f32 %v2329, %v2316
      %v2336 = vadd.f32 %v2334, %v2330
      %v2337 = vadd.f32 %v2335, %v2331
      %v2338 = vmul.f32 %v2336, %v2332
      %v2339 = vmul.f32 %v2337, %v2333
      %v2340 = vsel %vm692, %v2338, 0.0
      %v2341 = vsel %vm692, %v2339, 0.0
      %v2342 = vadd.f32 %v2340, %v2341
      %v2343 = vrot.slane %v2342, 4
      %v2344 = vadd.f32 %v2342, %v2343
      %v2345 = vrot.slane %v2344, 2
      %v2346 = vadd.f32 %v2344, %v2345
      %v2347 = vrot.slane %v2346, 1
      %v2348 = vadd.f32 %v2346, %v2347
      %v2349 = vld [vmem:[%s1342] sm:$0xff]
      %v2350 = vld [vmem:[%s1342 + $0x8] sm:$0xff]
      %v2351 = vld [vmem:[%s1345] sm:$0xff]
      %v2352 = vld [vmem:[%s1345 + $0x8] sm:$0xff]
      %v2353 = vld [vmem:[%s1348] sm:$0xff]
      %v2354 = vld [vmem:[%s1348 + $0x8] sm:$0xff]
      %v2355 = vmul.f32 %v2349, %v2336
      %v2356 = vmul.f32 %v2350, %v2337
      %v2357 = vadd.f32 %v2355, %v2351
      %v2358 = vadd.f32 %v2356, %v2352
      %v2359 = vmul.f32 %v2357, %v2353
      %v2360 = vmul.f32 %v2358, %v2354
      %v2361 = vsel %vm692, %v2359, 0.0
      %v2362 = vsel %vm692, %v2360, 0.0
      %v2363 = vadd.f32 %v2361, %v2362
      %v2364 = vrot.slane %v2363, 4
      %v2365 = vadd.f32 %v2363, %v2364
      %v2366 = vrot.slane %v2365, 2
      %v2367 = vadd.f32 %v2365, %v2366
      %v2368 = vrot.slane %v2367, 1
      %v2369 = vadd.f32 %v2367, %v2368
      %v2370 = vld [vmem:[%s1366] sm:$0xff]
      %v2371 = vld [vmem:[%s1366 + $0x8] sm:$0xff]
      %v2372 = vld [vmem:[%s1369] sm:$0xff]
      %v2373 = vld [vmem:[%s1369 + $0x8] sm:$0xff]
      %v2374 = vld [vmem:[%s1372] sm:$0xff]
      %v2375 = vld [vmem:[%s1372 + $0x8] sm:$0xff]
      %v2376 = vmul.f32 %v2370, %v2357
      %v2377 = vmul.f32 %v2371, %v2358
      %v2378 = vadd.f32 %v2376, %v2372
      %v2379 = vadd.f32 %v2377, %v2373
      %v2380 = vmul.f32 %v2378, %v2374
      %v2381 = vmul.f32 %v2379, %v2375
      %v2382 = vsel %vm692, %v2380, 0.0
      %v2383 = vsel %vm692, %v2381, 0.0
      %v2384 = vadd.f32 %v2382, %v2383
      %v2385 = vrot.slane %v2384, 4
      %v2386 = vadd.f32 %v2384, %v2385
      %v2387 = vrot.slane %v2386, 2
      %v2388 = vadd.f32 %v2386, %v2387
      %v2389 = vrot.slane %v2388, 1
      %v2390 = vadd.f32 %v2388, %v2389
      %v2391 = vld [vmem:[%s1390] sm:$0xff]
      %v2392 = vld [vmem:[%s1390 + $0x8] sm:$0xff]
      %v2393 = vld [vmem:[%s1393] sm:$0xff]
      %v2394 = vld [vmem:[%s1393 + $0x8] sm:$0xff]
      %v2395 = vld [vmem:[%s1396] sm:$0xff]
      %v2396 = vld [vmem:[%s1396 + $0x8] sm:$0xff]
      %v2397 = vmul.f32 %v2391, %v2378
      %v2398 = vmul.f32 %v2392, %v2379
      %v2399 = vadd.f32 %v2397, %v2393
      %v2400 = vadd.f32 %v2398, %v2394
      %v2401 = vmul.f32 %v2399, %v2395
      %v2402 = vmul.f32 %v2400, %v2396
      %v2403 = vsel %vm692, %v2401, 0.0
      %v2404 = vsel %vm692, %v2402, 0.0
      %v2405 = vadd.f32 %v2403, %v2404
      %v2406 = vrot.slane %v2405, 4
      %v2407 = vadd.f32 %v2405, %v2406
      %v2408 = vrot.slane %v2407, 2
      %v2409 = vadd.f32 %v2407, %v2408
      %v2410 = vrot.slane %v2409, 1
      %v2411 = vadd.f32 %v2409, %v2410
      %v2412 = vld [vmem:[%s1414] sm:$0xff]
      %v2413 = vld [vmem:[%s1414 + $0x8] sm:$0xff]
      %v2414 = vld [vmem:[%s1417] sm:$0xff]
      %v2415 = vld [vmem:[%s1417 + $0x8] sm:$0xff]
      %v2416 = vld [vmem:[%s1420] sm:$0xff]
      %v2417 = vld [vmem:[%s1420 + $0x8] sm:$0xff]
      %v2418 = vmul.f32 %v2412, %v2399
      %v2419 = vmul.f32 %v2413, %v2400
      %v2420 = vadd.f32 %v2418, %v2414
      %v2421 = vadd.f32 %v2419, %v2415
      %v2422 = vmul.f32 %v2420, %v2416
      %v2423 = vmul.f32 %v2421, %v2417
      %v2424 = vsel %vm692, %v2422, 0.0
      %v2425 = vsel %vm692, %v2423, 0.0
      %v2426 = vadd.f32 %v2424, %v2425
      %v2427 = vrot.slane %v2426, 4
      %v2428 = vadd.f32 %v2426, %v2427
      %v2429 = vrot.slane %v2428, 2
      %v2430 = vadd.f32 %v2428, %v2429
      %v2431 = vrot.slane %v2430, 1
      %v2432 = vadd.f32 %v2430, %v2431
      %v2433 = vsel %vm1438, %v2285, %v2306
      %v2434 = vsel %vm1440, %v2433, %v2327
      %v2435 = vsel %vm1442, %v2434, %v2348
      %v2436 = vsel %vm1444, %v2435, %v2369
      %v2437 = vsel %vm1446, %v2436, %v2390
      %v2438 = vsel %vm1448, %v2437, %v2411
      %v2439 = vsel %vm1450, %v2438, %v2432
      %2440 = vst.msk [vmem:[#allocation5] sm:$0xff] %vm692, %v2439
      %v2441 = vld [vmem:[#allocation5] sm:$0xff]
      %s2442 = scalar_lea.vmem %s9, 1
      %v2443 = vld [vmem:[%s2442] sm:$0x1]
      %v2445 = vlaneseq
      %v2446 = vshrl.u32 %v2445, 7
      %v2447 = vsub.s32 0, %v2446
      %v2448 = vrot.slane %v2443, %v2447
      %v2450 = vmul.f32 %v1697, %v2448
      %v2451 = vadd.f32 %v2441, %v2450
      %v2452 = vxor.u32 %v1648, 2147483648
      %v2453 = vmul.f32 %v2452, 1.442695
      %v2454 = vpow.pop %v2453
      %v2455 = vadd.f32 %v2454, 1.0
      %v2456 = vrcp.pop %v2455
      %v2457 = vmul.f32 1.0, %v2456
      %v2458 = vmul.f32 %v1648, %v2457
      %2460 = vrot.lane.b32.xlu0 %v2458, 64
      %v2461 = vpop.permute.xlu0 %2460
      %v2463 = vmul.f32 %v2451, %v2461
      %s2464 = scalar_lea.vmem %s10, 64
      %v2465 = vld [vmem:[%s2464] sm:$0xff]
      %v2466 = vld [vmem:[%s2464 + $0x8] sm:$0xff]
      %v2467 = vld [vmem:[%s2464 + $0x10] sm:$0xff]
      %v2468 = vld [vmem:[%s2464 + $0x18] sm:$0xff]
      %v2469 = vld [vmem:[%s2464 + $0x20] sm:$0xff]
      %v2470 = vld [vmem:[%s2464 + $0x28] sm:$0xff]
      %v2471 = vld [vmem:[%s2464 + $0x30] sm:$0xff]
      %v2472 = vld [vmem:[%s2464 + $0x38] sm:$0xff]
      %v2474 = vsel %vm692, %v2463, 0
      %2476 = vmatprep.subr.mxu0 0.0
      %2477 = vmatpush1.msra.mxu0 %v2465
      %2478 = vmatprep.subr.mxu0 0.0
      %2479 = vmatpush1.msra.mxu0 %v2466
      %2480 = vmatprep.subr.mxu0 0.0
      %2481 = vmatpush1.msra.mxu0 %v2467
      %2482 = vmatprep.subr.mxu0 0.0
      %2483 = vmatpush1.msra.mxu0 %v2468
      %2484 = vmatprep.subr.mxu0 0.0
      %2485 = vmatpush1.msra.mxu0 %v2469
      %2486 = vmatprep.subr.mxu0 0.0
      %2487 = vmatpush1.msra.mxu0 %v2470
      %2488 = vmatprep.subr.mxu0 0.0
      %2489 = vmatpush1.msra.mxu0 %v2471
      %2490 = vmatprep.subr.mxu0 0.0
      %2491 = vmatpush1.msra.mxu0 %v2472
      %2492 = vmatprep.subr.mxu0 0.0
      %2493 = vmatpush1.msra.mxu0 0.0
      %2494 = vmatprep.subr.mxu0 0.0
      %2495 = vmatpush1.msra.mxu0 0.0
      %2496 = vmatprep.subr.mxu0 0.0
      %2497 = vmatpush1.msra.mxu0 0.0
      %2498 = vmatprep.subr.mxu0 0.0
      %2499 = vmatpush1.msra.mxu0 0.0
      %2500 = vmatprep.subr.mxu0 0.0
      %2501 = vmatpush1.msra.mxu0 0.0
      %2502 = vmatprep.subr.mxu0 0.0
      %2503 = vmatpush1.msra.mxu0 0.0
      %2504 = vmatprep.subr.mxu0 0.0
      %2505 = vmatpush1.msra.mxu0 0.0
      %2506 = vmatprep.subr.mxu0 0.0
      %2507 = vmatpush1.msra.mxu0 0.0
      %2508 = vmatprep.subr.mxu0 0.0
      %2509 = vmatpush1.msra.mxu0 0.0
      %2510 = vmatprep.subr.mxu0 0.0
      %2511 = vmatpush1.msra.mxu0 0.0
      %2512 = vmatprep.subr.mxu0 0.0
      %2513 = vmatpush1.msra.mxu0 0.0
      %2514 = vmatprep.subr.mxu0 0.0
      %2515 = vmatpush1.msra.mxu0 0.0
      %2516 = vmatprep.subr.mxu0 0.0
      %2517 = vmatpush1.msra.mxu0 0.0
      %2518 = vmatprep.subr.mxu0 0.0
      %2519 = vmatpush1.msra.mxu0 0.0
      %2520 = vmatprep.subr.mxu0 0.0
      %2521 = vmatpush1.msra.mxu0 0.0
      %2522 = vmatprep.subr.mxu0 0.0
      %2523 = vmatpush1.msra.mxu0 0.0
      %2524 = vmatprep.subr.mxu0 0.0
      %2525 = vmatpush1.msra.mxu0 0.0
      %2526 = vmatprep.subr.mxu0 0.0
      %2527 = vmatpush1.msra.mxu0 0.0
      %2528 = vmatprep.subr.mxu0 0.0
      %2529 = vmatpush1.msra.mxu0 0.0
      %2530 = vmatprep.subr.mxu0 0.0
      %2531 = vmatpush1.msra.mxu0 0.0
      %2532 = vmatprep.subr.mxu0 0.0
      %2533 = vmatpush1.msra.mxu0 0.0
      %2534 = vmatprep.subr.mxu0 0.0
      %2535 = vmatpush1.msra.mxu0 0.0
      %2536 = vmatprep.subr.mxu0 0.0
      %2537 = vmatpush1.msra.mxu0 0.0
      %2538 = vmatprep.subr.mxu0 0.0
      %2539 = vmatpush1.msra.mxu0 0.0
      %2540 = vmatprep.mubr.f32.mxu0 0.0
      %2541 = vmatmul.mubr.f32.gmra.mrb[0].mxu0 %v2474
      %v2542 = vpop.f32.mrb[0].mxu0
      %v2543 = vadd.f32 %v1553, %v2542
      %v2544 = vpop.f32.mrb[0].mxu0
      %2545 = vdwg.mxu0
      %v2546 = vld [vmem:[%s11] sm:$0x1]
      %v2547 = vmul.f32 %v2543, %v2543
      %v2548 = vsel %vm540, %v2547, 0.0
      %2549 = vadd.xlane.f32.xlu0 %v2548
      %v2550 = vpop.xlane.xlu0 %2549
      %v2551 = vmul.f32 %v2550, %v544
      %v2552 = vadd.f32 %v2551, 1e-05
      %v2553 = vrsqrt.pop %v2552
      %v2554 = vmul.f32 %v2543, %v2553
      %v2556 = vlaneseq
      %v2557 = vshrl.u32 %v2556, 7
      %v2558 = vsub.s32 0, %v2557
      %v2559 = vrot.slane %v2546, %v2558
      %v2561 = vmul.f32 %v2554, %v2559
      %v2562 = vld [vmem:[%s12] sm:$0xff]
      %v2563 = vld [vmem:[%s12 + $0x8] sm:$0xff]
      %v2564 = vld [vmem:[%s12 + $0x10] sm:$0xff]
      %v2565 = vld [vmem:[%s12 + $0x18] sm:$0xff]
      %v2567 = vsel %vm540, %v2561, 0
      %2569 = vmatprep.subr.mxu0 0.0
      %2570 = vmatpush1.msra.mxu0 %v2562
      %2571 = vmatprep.subr.mxu0 0.0
      %2572 = vmatpush1.msra.mxu0 %v2563
      %2573 = vmatprep.subr.mxu0 0.0
      %2574 = vmatpush1.msra.mxu0 %v2564
      %2575 = vmatprep.subr.mxu0 0.0
      %2576 = vmatpush1.msra.mxu0 %v2565
      %2577 = vmatprep.subr.mxu0 0.0
      %2578 = vmatpush1.msra.mxu0 0.0
      %2579 = vmatprep.subr.mxu0 0.0
      %2580 = vmatpush1.msra.mxu0 0.0
      %2581 = vmatprep.subr.mxu0 0.0
      %2582 = vmatpush1.msra.mxu0 0.0
      %2583 = vmatprep.subr.mxu0 0.0
      %2584 = vmatpush1.msra.mxu0 0.0
      %2585 = vmatprep.subr.mxu0 0.0
      %2586 = vmatpush1.msra.mxu0 0.0
      %2587 = vmatprep.subr.mxu0 0.0
      %2588 = vmatpush1.msra.mxu0 0.0
      %2589 = vmatprep.subr.mxu0 0.0
      %2590 = vmatpush1.msra.mxu0 0.0
      %2591 = vmatprep.subr.mxu0 0.0
      %2592 = vmatpush1.msra.mxu0 0.0
      %2593 = vmatprep.subr.mxu0 0.0
      %2594 = vmatpush1.msra.mxu0 0.0
      %2595 = vmatprep.subr.mxu0 0.0
      %2596 = vmatpush1.msra.mxu0 0.0
      %2597 = vmatprep.subr.mxu0 0.0
      %2598 = vmatpush1.msra.mxu0 0.0
      %2599 = vmatprep.subr.mxu0 0.0
      %2600 = vmatpush1.msra.mxu0 0.0
      %2601 = vmatprep.subr.mxu0 0.0
      %2602 = vmatpush1.msra.mxu0 0.0
      %2603 = vmatprep.subr.mxu0 0.0
      %2604 = vmatpush1.msra.mxu0 0.0
      %2605 = vmatprep.subr.mxu0 0.0
      %2606 = vmatpush1.msra.mxu0 0.0
      %2607 = vmatprep.subr.mxu0 0.0
      %2608 = vmatpush1.msra.mxu0 0.0
      %2609 = vmatprep.subr.mxu0 0.0
      %2610 = vmatpush1.msra.mxu0 0.0
      %2611 = vmatprep.subr.mxu0 0.0
      %2612 = vmatpush1.msra.mxu0 0.0
      %2613 = vmatprep.subr.mxu0 0.0
      %2614 = vmatpush1.msra.mxu0 0.0
      %2615 = vmatprep.subr.mxu0 0.0
      %2616 = vmatpush1.msra.mxu0 0.0
      %2617 = vmatprep.subr.mxu0 0.0
      %2618 = vmatpush1.msra.mxu0 0.0
      %2619 = vmatprep.subr.mxu0 0.0
      %2620 = vmatpush1.msra.mxu0 0.0
      %2621 = vmatprep.subr.mxu0 0.0
      %2622 = vmatpush1.msra.mxu0 0.0
      %2623 = vmatprep.subr.mxu0 0.0
      %2624 = vmatpush1.msra.mxu0 0.0
      %2625 = vmatprep.subr.mxu0 0.0
      %2626 = vmatpush1.msra.mxu0 0.0
      %2627 = vmatprep.subr.mxu0 0.0
      %2628 = vmatpush1.msra.mxu0 0.0
      %2629 = vmatprep.subr.mxu0 0.0
      %2630 = vmatpush1.msra.mxu0 0.0
      %2631 = vmatprep.subr.mxu0 0.0
      %2632 = vmatpush1.msra.mxu0 0.0
      %2633 = vmatprep.mubr.f32.mxu0 0.0
      %2634 = vmatmul.mubr.f32.gmra.mrb[0].mxu0 %v2567
      %v2635 = vpop.f32.mrb[0].mxu0
      %v2636 = vadd.f32 0.0, %v2635
      %v2637 = vpop.f32.mrb[0].mxu0
      %2638 = vdwg.mxu0
      %2639 = vst [vmem:[%s435] sm:$0xff] %v2636
      %p2640 = scmp.lt.s32.totalorder %s24, 1
      %s2641 = scalar_select %p2640, %s24, 1
      %s2642 = smul.addr %s2641, 8
      %s2643 = scalar_lea.vmem %s13, %s2642
      // Predicated region
      $region73: #{mamba_tpp_forward.1} parent=71 // pred_check
        %p2644 = pneg %p320
      $region74: #{mamba_tpp_forward.1} parent=71 // pred_check_branch
        %2646 = sbr.rel (%p2644) target = $region76
      $region75: #{mamba_tpp_forward.1} parent=71 // pred_region
        _
      $region76: #{mamba_tpp_forward.1} parent=71 // pred_fallthru
        _
    $region72: #{mamba_tpp_forward.1} parent=5 // pred_fallthru
      _
    %p2647 = scmp.le.s32.totalorder 2, %s19
    // Predicated region
    $region77: #{mamba_tpp_forward.1} parent=5 // pred_check
      %p2648 = pneg %p2647
    $region78: #{mamba_tpp_forward.1} parent=5 // pred_check_branch
      %2650 = sbr.rel (%p2648) target = $region80
    $region79: #{mamba_tpp_forward.1} parent=5 // pred_region
      %s2651 = ssub.s32 %s19, 2
      // Predicated region
      $region81: #{mamba_tpp_forward.1} parent=79 // pred_check
        %p2652 = pneg %p326
      $region82: #{mamba_tpp_forward.1} parent=79 // pred_check_branch
        %2654 = sbr.rel (%p2652) target = $region84
      $region83: #{mamba_tpp_forward.1} parent=79 // pred_region
        %p2655 = scmp.lt.s32.totalorder %s25, 1
        %s2656 = scalar_select %p2655, %s25, 1
        %s2657 = smul.addr %s2656, 8
        %s2658 = scalar_lea.vmem %s13, %s2657
      $region84: #{mamba_tpp_forward.1} parent=79 // pred_fallthru
        _
    $region80: #{mamba_tpp_forward.1} parent=5 // pred_fallthru
      _
  $region6: #{mamba_tpp_forward.1} parent=0 // loop_footer
    %s23 = sadd.s32 1, %s19
  $region7: #{mamba_tpp_forward.1} parent=0 // loop_footer_branch
    %18 = sbr.rel target = $region3
  $region8: #{mamba_tpp_forward.1} parent=0 // loop_exit
    _

</llo_original>
